<compile_context>
chip_gen: v6e
topology: v6e:2x2x1
jax: 0.10.0
libtpu: 0.0.40
codegen_flags: <defaults>
</compile_context>

<pallas_src>
import functools

import jax
import jax.numpy as jnp
from jax.experimental import pallas as pl
from jax.experimental.pallas import tpu as pltpu


# ----------------------------- determinants -------------------------------- #
# All helpers operate on a list-of-lists `a` where a[i][j] is a lane-dense
# (8, 128) float32 array (one matrix element, 1024 batch samples on lanes).

def _det2(a):
    return a[0][0] * a[1][1] - a[0][1] * a[1][0]


def _det3(a):
    return (a[0][0] * (a[1][1] * a[2][2] - a[1][2] * a[2][1])
            - a[0][1] * (a[1][0] * a[2][2] - a[1][2] * a[2][0])
            + a[0][2] * (a[1][0] * a[2][1] - a[1][1] * a[2][0]))


def _det4(a):
    # 2x2-block cofactor formula: 30 mul + 17 add, no selects / divides.
    b0 = a[0][0] * a[1][1] - a[0][1] * a[1][0]
    b1 = a[0][0] * a[1][2] - a[0][2] * a[1][0]
    b2 = a[0][0] * a[1][3] - a[0][3] * a[1][0]
    b3 = a[0][1] * a[1][2] - a[0][2] * a[1][1]
    b4 = a[0][1] * a[1][3] - a[0][3] * a[1][1]
    b5 = a[0][2] * a[1][3] - a[0][3] * a[1][2]
    c0 = a[2][0] * a[3][1] - a[2][1] * a[3][0]
    c1 = a[2][0] * a[3][2] - a[2][2] * a[3][0]
    c2 = a[2][0] * a[3][3] - a[2][3] * a[3][0]
    c3 = a[2][1] * a[3][2] - a[2][2] * a[3][1]
    c4 = a[2][1] * a[3][3] - a[2][3] * a[3][1]
    c5 = a[2][2] * a[3][3] - a[2][3] * a[3][2]
    return b0 * c5 - b1 * c4 + b2 * c3 + b3 * c2 - b4 * c1 + b5 * c0


def _det5(a):
    det = None
    for j in range(5):
        minor = [[a[i][c] for c in range(5) if c != j] for i in range(1, 5)]
        term = a[0][j] * _det4(minor)
        if det is None:
            det = term
        else:
            det = det + term if j % 2 == 0 else det - term
    return det


def _det_closed_form(a, n):
    if n == 1:
        return a[0][0]
    if n == 2:
        return _det2(a)
    if n == 3:
        return _det3(a)
    if n == 4:
        return _det4(a)
    return _det5(a)


def _det_pivoted(a, n):
    """Fully unrolled Gaussian elimination with partial pivoting (n > 5)."""
    neg = None    # swap parity, applied once at the end (VALU trim).
    det = None
    for k in range(n):
        # Partial pivoting via successive conditional swaps (per batch lane).
        for r in range(k + 1, n):
            swap = jnp.abs(a[r][k]) > jnp.abs(a[k][k])
            neg = swap if neg is None else (neg != swap)
            for j in range(k, n):
                ak, ar = a[k][j], a[r][j]
                a[k][j] = jnp.where(swap, ar, ak)
                a[r][j] = jnp.where(swap, ak, ar)
        pivot = a[k][k]
        det = pivot if det is None else det * pivot
        if k < n - 1:
            # Reciprocal on the EUP (off the VALU critical path) + Newton step.
            inv = pl.reciprocal(pivot, approx=True)
            inv = inv * (2.0 - pivot * inv)
            inv = jnp.where(pivot == 0.0, 0.0, inv)   # singular lanes -> det 0
            for r in range(k + 1, n):
                factor = a[r][k] * inv
                for j in range(k + 1, n):
                    a[r][j] = a[r][j] - factor * a[k][j]
    if neg is not None:
        det = jnp.where(neg, -det, det)
    return det


def _batched_det(a, n):
    if n <= 5:
        return _det_closed_form(a, n)
    return _det_pivoted(a, n)


# --------------------------- in-kernel gather ------------------------------ #

def _gather_rows(pos_ref, state_scalars, n, sys_size, row0):
    """Build the n x n Slater matrices for one (8,128) batch chunk.

    pos_ref       : (n, tile_rows, 128) int32 ref (sorted positions, batch on
                    sublane/lane).
    state_scalars : [sys_size][n] list of traced f32 scalars (from SMEM).
    Returns a[i][j] -> (8, 128) f32 arrays with a[i][j] = state[pos[b,i], j].
    """
    a = []
    for i in range(n):
        p = pos_ref[i, pl.ds(row0, 8), :]          # (8, 128) int32
        row = None
        for s in range(sys_size):
            m = p == s
            if row is None:
                row = [jnp.where(m, state_scalars[s][j], 0.0) for j in range(n)]
            else:
                row = [jnp.where(m, state_scalars[s][j], row[j]) for j in range(n)]
        a.append(row)
    return a


# ------------------------------- kernel ------------------------------------ #

def _nnb_det_kernel(state_up_ref, state_down_ref, pos_up_ref, pos_down_ref,
                    out_ref, *, nup, ndown, sys_size, tile_rows):
    # state_*_ref : SMEM, flat (sys_size * n,) f32, index = s * n + j.
    # pos_*_ref   : VMEM, (n, tile_rows, 128) int32.
    # out_ref     : VMEM, (tile_rows, 128) f32.
    su = [[state_up_ref[s * nup + j] for j in range(nup)]
          for s in range(sys_size)]
    sd = [[state_down_ref[s * ndown + j] for j in range(ndown)]
          for s in range(sys_size)]

    # Strip-mine over (8,128) sublane chunks to bound per-chunk vreg liveness.
    for c in range(tile_rows // 8):
        r0 = c * 8
        a_up = _gather_rows(pos_up_ref, su, nup, sys_size, r0)
        det_u = _batched_det(a_up, nup)
        a_dn = _gather_rows(pos_down_ref, sd, ndown, sys_size, r0)
        det_d = _batched_det(a_dn, ndown)
        out_ref[pl.ds(r0, 8), :] = (det_u * det_d).astype(out_ref.dtype)


# ------------------------------- wrapper ------------------------------------ #

def free_nnb_forward(configs, states_up, states_down, sys_size, num_fillings,
                     *, batch_tile=8192):
    """JAX/Pallas equivalent of free_NNB.forward."""
    config_fermion, position_fermion = configs
    del config_fermion  # only used for batch size / dtype cast in the original
    nup, ndown = num_fillings
    b = position_fermion.shape[0]
    position_fermion = position_fermion.astype(jnp.int32)

    # ---- glue (plain JAX, cheap: positions only, no matrix payload) ----
    pos_up = jnp.sort(position_fermion[:, :nup], axis=1)            # (b, nup)
    pos_down = jnp.sort(position_fermion[:, nup:], axis=1) - sys_size

    # Flattened orbital tables for SMEM residency: index = s * n + j.
    state_up_flat = states_up[:, :nup].astype(jnp.float32).reshape(-1)
    state_down_flat = states_down[:, :ndown].astype(jnp.float32).reshape(-1)

    lanes = 128
    assert batch_tile % 1024 == 0 and batch_tile >= 1024, \
        "batch_tile must be a multiple of 1024"
    # Clamp the tile so the grid has >= 2 steps when the batch allows it
    # (v7x megacore sharding + double-buffered DMA/compute overlap).
    tile = batch_tile
    while tile > 1024 and b <= tile:
        tile = max(1024, (tile // 2) // 1024 * 1024)

    b_pad = pl.cdiv(b, tile) * tile
    rows = b_pad // lanes
    tile_rows = tile // lanes

    def to_elem_major(pos, n):
        # (b, n) int32 -> (n, rows, 128); padded lanes get position 0
        # (their output is discarded by the final [:b] slice).
        pad = b_pad - b
        if pad:
            pos = jnp.pad(pos, ((0, pad), (0, 0)))
        return jnp.transpose(pos, (1, 0)).reshape(n, rows, lanes)

    pos_up_t = to_elem_major(pos_up, nup)
    pos_down_t = to_elem_major(pos_down, ndown)

    cost = pl.CostEstimate(
        flops=int(b_pad) * (2 * (nup ** 3 + ndown ** 3)
                            + sys_size * (nup * nup + ndown * ndown)),
        transcendentals=0,
        bytes_accessed=int(b_pad) * ((nup + ndown) * 4 + 4)
                       + 4 * (state_up_flat.size + state_down_flat.size),
    )

    kernel = functools.partial(_nnb_det_kernel, nup=nup, ndown=ndown,
                               sys_size=sys_size, tile_rows=tile_rows)

    out = pl.pallas_call(
        kernel,
        grid=(b_pad // tile,),
        in_specs=[
            pl.BlockSpec(memory_space=pltpu.MemorySpace.SMEM),   # state_up
            pl.BlockSpec(memory_space=pltpu.MemorySpace.SMEM),   # state_down
            pl.BlockSpec((nup, tile_rows, lanes), lambda i: (0, i, 0)),
            pl.BlockSpec((ndown, tile_rows, lanes), lambda i: (0, i, 0)),
        ],
        out_specs=pl.BlockSpec((tile_rows, lanes), lambda i: (i, 0)),
        out_shape=jax.ShapeDtypeStruct((rows, lanes), jnp.float32),
        compiler_params=pltpu.CompilerParams(
            dimension_semantics=("parallel",)),
        cost_estimate=cost,
    )(state_up_flat, state_down_flat, pos_up_t, pos_down_t)

    return out.reshape(b_pad)[:b]  # (b,)


# --------------------------------- demo ------------------------------------- #

if __name__ == "__main__":
    sys_size = 16
    batch = 8
    key = jax.random.PRNGKey(0)
    k_su, k_sd, k_pos = jax.random.split(key, 3)

    # h_model.states_up / states_down: (sys_size, >=N) tables of orbitals.
    states_up = jax.random.normal(k_su, (sys_size, sys_size), dtype=jnp.float32)
    states_down = jax.random.normal(k_sd, (sys_size, sys_size), dtype=jnp.float32)

    def run_case(num_fillings, pos_key):
        nup, ndown = num_fillings
        pos_keys = jax.random.split(pos_key, 2 * batch)
        pos_up_list = [jax.random.permutation(pos_keys[i], sys_size)[:nup]
                       for i in range(batch)]
        pos_down_list = [
            jax.random.permutation(pos_keys[batch + i], sys_size)[:ndown] + sys_size
            for i in range(batch)]
        position_fermion = jnp.concatenate(
            [jnp.stack(pos_up_list), jnp.stack(pos_down_list)], axis=1
        ).astype(jnp.int32)  # (batch, Nup + Ndown)

        # config_fermion: occupation one-hots (unused by the forward math).
        config_fermion = jnp.zeros((batch, 2 * sys_size), dtype=jnp.float32)
        config_fermion = config_fermion.at[
            jnp.arange(batch)[:, None], position_fermion].set(1.0)

        out = free_nnb_forward(
            (config_fermion, position_fermion),
            states_up, states_down, sys_size, num_fillings,
        )
        out = jax.block_until_ready(out)

        # Reference check in plain JAX.
        pos_up = jnp.sort(position_fermion[:, :nup], axis=1)
        pos_down = jnp.sort(position_fermion[:, nup:], axis=1) - sys_size
        ref = (jnp.linalg.det(jnp.take(states_up[:, :nup], pos_up, axis=0)) *
               jnp.linalg.det(jnp.take(states_down[:, :ndown], pos_down, axis=0)))
        assert out.shape == (batch,)
        assert jnp.allclose(out, ref, rtol=1e-3, atol=1e-4), (num_fillings, out, ref)

    k1, k2 = jax.random.split(k_pos)
    run_case([4, 4], k1)   # closed-form cofactor path (the module's hot case)
    run_case([6, 6], k2)   # pivoted Gaussian-elimination fallback path
    print("KERNEL_OK")
</pallas_src>

<mosaic_0001>
module attributes {stable_mosaic.version = 11 : i64} {
  func.func @_nnb_det_kernel(%arg0: i32, %arg1: memref<64xf32, #tpu.memory_space<smem>>, %arg2: memref<64xf32, #tpu.memory_space<smem>>, %arg3: memref<4x8x128xi32, #tpu.memory_space<vmem>>, %arg4: memref<4x8x128xi32, #tpu.memory_space<vmem>>, %arg5: memref<8x128xf32, #tpu.memory_space<vmem>>) attributes {dimension_semantics = [#tpu.dimension_semantics<parallel>], iteration_bounds = array<i64: 1>, scalar_prefetch = 0 : i64, scratch_operands = 0 : i64, tpu.core_type = #tpu.core_type<tc>, window_params = [{transform_indices = @transform_0, window_bounds = array<i64: 64>}, {transform_indices = @transform_1, window_bounds = array<i64: 64>}, {transform_indices = @transform_2, window_bounds = array<i64: 4, 8, 128>}, {transform_indices = @transform_3, window_bounds = array<i64: 4, 8, 128>}, {transform_indices = @transform_4, window_bounds = array<i64: 8, 128>}]} {
    %c0 = arith.constant 0 : index
    %0 = memref.load %arg1[%c0] : memref<64xf32, #tpu.memory_space<smem>>
    %c1 = arith.constant 1 : index
    %1 = memref.load %arg1[%c1] : memref<64xf32, #tpu.memory_space<smem>>
    %c2 = arith.constant 2 : index
    %2 = memref.load %arg1[%c2] : memref<64xf32, #tpu.memory_space<smem>>
    %c3 = arith.constant 3 : index
    %3 = memref.load %arg1[%c3] : memref<64xf32, #tpu.memory_space<smem>>
    %c4 = arith.constant 4 : index
    %4 = memref.load %arg1[%c4] : memref<64xf32, #tpu.memory_space<smem>>
    %c5 = arith.constant 5 : index
    %5 = memref.load %arg1[%c5] : memref<64xf32, #tpu.memory_space<smem>>
    %c6 = arith.constant 6 : index
    %6 = memref.load %arg1[%c6] : memref<64xf32, #tpu.memory_space<smem>>
    %c7 = arith.constant 7 : index
    %7 = memref.load %arg1[%c7] : memref<64xf32, #tpu.memory_space<smem>>
    %c8 = arith.constant 8 : index
    %8 = memref.load %arg1[%c8] : memref<64xf32, #tpu.memory_space<smem>>
    %c9 = arith.constant 9 : index
    %9 = memref.load %arg1[%c9] : memref<64xf32, #tpu.memory_space<smem>>
    %c10 = arith.constant 10 : index
    %10 = memref.load %arg1[%c10] : memref<64xf32, #tpu.memory_space<smem>>
    %c11 = arith.constant 11 : index
    %11 = memref.load %arg1[%c11] : memref<64xf32, #tpu.memory_space<smem>>
    %c12 = arith.constant 12 : index
    %12 = memref.load %arg1[%c12] : memref<64xf32, #tpu.memory_space<smem>>
    %c13 = arith.constant 13 : index
    %13 = memref.load %arg1[%c13] : memref<64xf32, #tpu.memory_space<smem>>
    %c14 = arith.constant 14 : index
    %14 = memref.load %arg1[%c14] : memref<64xf32, #tpu.memory_space<smem>>
    %c15 = arith.constant 15 : index
    %15 = memref.load %arg1[%c15] : memref<64xf32, #tpu.memory_space<smem>>
    %c16 = arith.constant 16 : index
    %16 = memref.load %arg1[%c16] : memref<64xf32, #tpu.memory_space<smem>>
    %c17 = arith.constant 17 : index
    %17 = memref.load %arg1[%c17] : memref<64xf32, #tpu.memory_space<smem>>
    %c18 = arith.constant 18 : index
    %18 = memref.load %arg1[%c18] : memref<64xf32, #tpu.memory_space<smem>>
    %c19 = arith.constant 19 : index
    %19 = memref.load %arg1[%c19] : memref<64xf32, #tpu.memory_space<smem>>
    %c20 = arith.constant 20 : index
    %20 = memref.load %arg1[%c20] : memref<64xf32, #tpu.memory_space<smem>>
    %c21 = arith.constant 21 : index
    %21 = memref.load %arg1[%c21] : memref<64xf32, #tpu.memory_space<smem>>
    %c22 = arith.constant 22 : index
    %22 = memref.load %arg1[%c22] : memref<64xf32, #tpu.memory_space<smem>>
    %c23 = arith.constant 23 : index
    %23 = memref.load %arg1[%c23] : memref<64xf32, #tpu.memory_space<smem>>
    %c24 = arith.constant 24 : index
    %24 = memref.load %arg1[%c24] : memref<64xf32, #tpu.memory_space<smem>>
    %c25 = arith.constant 25 : index
    %25 = memref.load %arg1[%c25] : memref<64xf32, #tpu.memory_space<smem>>
    %c26 = arith.constant 26 : index
    %26 = memref.load %arg1[%c26] : memref<64xf32, #tpu.memory_space<smem>>
    %c27 = arith.constant 27 : index
    %27 = memref.load %arg1[%c27] : memref<64xf32, #tpu.memory_space<smem>>
    %c28 = arith.constant 28 : index
    %28 = memref.load %arg1[%c28] : memref<64xf32, #tpu.memory_space<smem>>
    %c29 = arith.constant 29 : index
    %29 = memref.load %arg1[%c29] : memref<64xf32, #tpu.memory_space<smem>>
    %c30 = arith.constant 30 : index
    %30 = memref.load %arg1[%c30] : memref<64xf32, #tpu.memory_space<smem>>
    %c31 = arith.constant 31 : index
    %31 = memref.load %arg1[%c31] : memref<64xf32, #tpu.memory_space<smem>>
    %c32 = arith.constant 32 : index
    %32 = memref.load %arg1[%c32] : memref<64xf32, #tpu.memory_space<smem>>
    %c33 = arith.constant 33 : index
    %33 = memref.load %arg1[%c33] : memref<64xf32, #tpu.memory_space<smem>>
    %c34 = arith.constant 34 : index
    %34 = memref.load %arg1[%c34] : memref<64xf32, #tpu.memory_space<smem>>
    %c35 = arith.constant 35 : index
    %35 = memref.load %arg1[%c35] : memref<64xf32, #tpu.memory_space<smem>>
    %c36 = arith.constant 36 : index
    %36 = memref.load %arg1[%c36] : memref<64xf32, #tpu.memory_space<smem>>
    %c37 = arith.constant 37 : index
    %37 = memref.load %arg1[%c37] : memref<64xf32, #tpu.memory_space<smem>>
    %c38 = arith.constant 38 : index
    %38 = memref.load %arg1[%c38] : memref<64xf32, #tpu.memory_space<smem>>
    %c39 = arith.constant 39 : index
    %39 = memref.load %arg1[%c39] : memref<64xf32, #tpu.memory_space<smem>>
    %c40 = arith.constant 40 : index
    %40 = memref.load %arg1[%c40] : memref<64xf32, #tpu.memory_space<smem>>
    %c41 = arith.constant 41 : index
    %41 = memref.load %arg1[%c41] : memref<64xf32, #tpu.memory_space<smem>>
    %c42 = arith.constant 42 : index
    %42 = memref.load %arg1[%c42] : memref<64xf32, #tpu.memory_space<smem>>
    %c43 = arith.constant 43 : index
    %43 = memref.load %arg1[%c43] : memref<64xf32, #tpu.memory_space<smem>>
    %c44 = arith.constant 44 : index
    %44 = memref.load %arg1[%c44] : memref<64xf32, #tpu.memory_space<smem>>
    %c45 = arith.constant 45 : index
    %45 = memref.load %arg1[%c45] : memref<64xf32, #tpu.memory_space<smem>>
    %c46 = arith.constant 46 : index
    %46 = memref.load %arg1[%c46] : memref<64xf32, #tpu.memory_space<smem>>
    %c47 = arith.constant 47 : index
    %47 = memref.load %arg1[%c47] : memref<64xf32, #tpu.memory_space<smem>>
    %c48 = arith.constant 48 : index
    %48 = memref.load %arg1[%c48] : memref<64xf32, #tpu.memory_space<smem>>
    %c49 = arith.constant 49 : index
    %49 = memref.load %arg1[%c49] : memref<64xf32, #tpu.memory_space<smem>>
    %c50 = arith.constant 50 : index
    %50 = memref.load %arg1[%c50] : memref<64xf32, #tpu.memory_space<smem>>
    %c51 = arith.constant 51 : index
    %51 = memref.load %arg1[%c51] : memref<64xf32, #tpu.memory_space<smem>>
    %c52 = arith.constant 52 : index
    %52 = memref.load %arg1[%c52] : memref<64xf32, #tpu.memory_space<smem>>
    %c53 = arith.constant 53 : index
    %53 = memref.load %arg1[%c53] : memref<64xf32, #tpu.memory_space<smem>>
    %c54 = arith.constant 54 : index
    %54 = memref.load %arg1[%c54] : memref<64xf32, #tpu.memory_space<smem>>
    %c55 = arith.constant 55 : index
    %55 = memref.load %arg1[%c55] : memref<64xf32, #tpu.memory_space<smem>>
    %c56 = arith.constant 56 : index
    %56 = memref.load %arg1[%c56] : memref<64xf32, #tpu.memory_space<smem>>
    %c57 = arith.constant 57 : index
    %57 = memref.load %arg1[%c57] : memref<64xf32, #tpu.memory_space<smem>>
    %c58 = arith.constant 58 : index
    %58 = memref.load %arg1[%c58] : memref<64xf32, #tpu.memory_space<smem>>
    %c59 = arith.constant 59 : index
    %59 = memref.load %arg1[%c59] : memref<64xf32, #tpu.memory_space<smem>>
    %c60 = arith.constant 60 : index
    %60 = memref.load %arg1[%c60] : memref<64xf32, #tpu.memory_space<smem>>
    %c61 = arith.constant 61 : index
    %61 = memref.load %arg1[%c61] : memref<64xf32, #tpu.memory_space<smem>>
    %c62 = arith.constant 62 : index
    %62 = memref.load %arg1[%c62] : memref<64xf32, #tpu.memory_space<smem>>
    %c63 = arith.constant 63 : index
    %63 = memref.load %arg1[%c63] : memref<64xf32, #tpu.memory_space<smem>>
    %c0_0 = arith.constant 0 : index
    %64 = memref.load %arg2[%c0_0] : memref<64xf32, #tpu.memory_space<smem>>
    %c1_1 = arith.constant 1 : index
    %65 = memref.load %arg2[%c1_1] : memref<64xf32, #tpu.memory_space<smem>>
    %c2_2 = arith.constant 2 : index
    %66 = memref.load %arg2[%c2_2] : memref<64xf32, #tpu.memory_space<smem>>
    %c3_3 = arith.constant 3 : index
    %67 = memref.load %arg2[%c3_3] : memref<64xf32, #tpu.memory_space<smem>>
    %c4_4 = arith.constant 4 : index
    %68 = memref.load %arg2[%c4_4] : memref<64xf32, #tpu.memory_space<smem>>
    %c5_5 = arith.constant 5 : index
    %69 = memref.load %arg2[%c5_5] : memref<64xf32, #tpu.memory_space<smem>>
    %c6_6 = arith.constant 6 : index
    %70 = memref.load %arg2[%c6_6] : memref<64xf32, #tpu.memory_space<smem>>
    %c7_7 = arith.constant 7 : index
    %71 = memref.load %arg2[%c7_7] : memref<64xf32, #tpu.memory_space<smem>>
    %c8_8 = arith.constant 8 : index
    %72 = memref.load %arg2[%c8_8] : memref<64xf32, #tpu.memory_space<smem>>
    %c9_9 = arith.constant 9 : index
    %73 = memref.load %arg2[%c9_9] : memref<64xf32, #tpu.memory_space<smem>>
    %c10_10 = arith.constant 10 : index
    %74 = memref.load %arg2[%c10_10] : memref<64xf32, #tpu.memory_space<smem>>
    %c11_11 = arith.constant 11 : index
    %75 = memref.load %arg2[%c11_11] : memref<64xf32, #tpu.memory_space<smem>>
    %c12_12 = arith.constant 12 : index
    %76 = memref.load %arg2[%c12_12] : memref<64xf32, #tpu.memory_space<smem>>
    %c13_13 = arith.constant 13 : index
    %77 = memref.load %arg2[%c13_13] : memref<64xf32, #tpu.memory_space<smem>>
    %c14_14 = arith.constant 14 : index
    %78 = memref.load %arg2[%c14_14] : memref<64xf32, #tpu.memory_space<smem>>
    %c15_15 = arith.constant 15 : index
    %79 = memref.load %arg2[%c15_15] : memref<64xf32, #tpu.memory_space<smem>>
    %c16_16 = arith.constant 16 : index
    %80 = memref.load %arg2[%c16_16] : memref<64xf32, #tpu.memory_space<smem>>
    %c17_17 = arith.constant 17 : index
    %81 = memref.load %arg2[%c17_17] : memref<64xf32, #tpu.memory_space<smem>>
    %c18_18 = arith.constant 18 : index
    %82 = memref.load %arg2[%c18_18] : memref<64xf32, #tpu.memory_space<smem>>
    %c19_19 = arith.constant 19 : index
    %83 = memref.load %arg2[%c19_19] : memref<64xf32, #tpu.memory_space<smem>>
    %c20_20 = arith.constant 20 : index
    %84 = memref.load %arg2[%c20_20] : memref<64xf32, #tpu.memory_space<smem>>
    %c21_21 = arith.constant 21 : index
    %85 = memref.load %arg2[%c21_21] : memref<64xf32, #tpu.memory_space<smem>>
    %c22_22 = arith.constant 22 : index
    %86 = memref.load %arg2[%c22_22] : memref<64xf32, #tpu.memory_space<smem>>
    %c23_23 = arith.constant 23 : index
    %87 = memref.load %arg2[%c23_23] : memref<64xf32, #tpu.memory_space<smem>>
    %c24_24 = arith.constant 24 : index
    %88 = memref.load %arg2[%c24_24] : memref<64xf32, #tpu.memory_space<smem>>
    %c25_25 = arith.constant 25 : index
    %89 = memref.load %arg2[%c25_25] : memref<64xf32, #tpu.memory_space<smem>>
    %c26_26 = arith.constant 26 : index
    %90 = memref.load %arg2[%c26_26] : memref<64xf32, #tpu.memory_space<smem>>
    %c27_27 = arith.constant 27 : index
    %91 = memref.load %arg2[%c27_27] : memref<64xf32, #tpu.memory_space<smem>>
    %c28_28 = arith.constant 28 : index
    %92 = memref.load %arg2[%c28_28] : memref<64xf32, #tpu.memory_space<smem>>
    %c29_29 = arith.constant 29 : index
    %93 = memref.load %arg2[%c29_29] : memref<64xf32, #tpu.memory_space<smem>>
    %c30_30 = arith.constant 30 : index
    %94 = memref.load %arg2[%c30_30] : memref<64xf32, #tpu.memory_space<smem>>
    %c31_31 = arith.constant 31 : index
    %95 = memref.load %arg2[%c31_31] : memref<64xf32, #tpu.memory_space<smem>>
    %c32_32 = arith.constant 32 : index
    %96 = memref.load %arg2[%c32_32] : memref<64xf32, #tpu.memory_space<smem>>
    %c33_33 = arith.constant 33 : index
    %97 = memref.load %arg2[%c33_33] : memref<64xf32, #tpu.memory_space<smem>>
    %c34_34 = arith.constant 34 : index
    %98 = memref.load %arg2[%c34_34] : memref<64xf32, #tpu.memory_space<smem>>
    %c35_35 = arith.constant 35 : index
    %99 = memref.load %arg2[%c35_35] : memref<64xf32, #tpu.memory_space<smem>>
    %c36_36 = arith.constant 36 : index
    %100 = memref.load %arg2[%c36_36] : memref<64xf32, #tpu.memory_space<smem>>
    %c37_37 = arith.constant 37 : index
    %101 = memref.load %arg2[%c37_37] : memref<64xf32, #tpu.memory_space<smem>>
    %c38_38 = arith.constant 38 : index
    %102 = memref.load %arg2[%c38_38] : memref<64xf32, #tpu.memory_space<smem>>
    %c39_39 = arith.constant 39 : index
    %103 = memref.load %arg2[%c39_39] : memref<64xf32, #tpu.memory_space<smem>>
    %c40_40 = arith.constant 40 : index
    %104 = memref.load %arg2[%c40_40] : memref<64xf32, #tpu.memory_space<smem>>
    %c41_41 = arith.constant 41 : index
    %105 = memref.load %arg2[%c41_41] : memref<64xf32, #tpu.memory_space<smem>>
    %c42_42 = arith.constant 42 : index
    %106 = memref.load %arg2[%c42_42] : memref<64xf32, #tpu.memory_space<smem>>
    %c43_43 = arith.constant 43 : index
    %107 = memref.load %arg2[%c43_43] : memref<64xf32, #tpu.memory_space<smem>>
    %c44_44 = arith.constant 44 : index
    %108 = memref.load %arg2[%c44_44] : memref<64xf32, #tpu.memory_space<smem>>
    %c45_45 = arith.constant 45 : index
    %109 = memref.load %arg2[%c45_45] : memref<64xf32, #tpu.memory_space<smem>>
    %c46_46 = arith.constant 46 : index
    %110 = memref.load %arg2[%c46_46] : memref<64xf32, #tpu.memory_space<smem>>
    %c47_47 = arith.constant 47 : index
    %111 = memref.load %arg2[%c47_47] : memref<64xf32, #tpu.memory_space<smem>>
    %c48_48 = arith.constant 48 : index
    %112 = memref.load %arg2[%c48_48] : memref<64xf32, #tpu.memory_space<smem>>
    %c49_49 = arith.constant 49 : index
    %113 = memref.load %arg2[%c49_49] : memref<64xf32, #tpu.memory_space<smem>>
    %c50_50 = arith.constant 50 : index
    %114 = memref.load %arg2[%c50_50] : memref<64xf32, #tpu.memory_space<smem>>
    %c51_51 = arith.constant 51 : index
    %115 = memref.load %arg2[%c51_51] : memref<64xf32, #tpu.memory_space<smem>>
    %c52_52 = arith.constant 52 : index
    %116 = memref.load %arg2[%c52_52] : memref<64xf32, #tpu.memory_space<smem>>
    %c53_53 = arith.constant 53 : index
    %117 = memref.load %arg2[%c53_53] : memref<64xf32, #tpu.memory_space<smem>>
    %c54_54 = arith.constant 54 : index
    %118 = memref.load %arg2[%c54_54] : memref<64xf32, #tpu.memory_space<smem>>
    %c55_55 = arith.constant 55 : index
    %119 = memref.load %arg2[%c55_55] : memref<64xf32, #tpu.memory_space<smem>>
    %c56_56 = arith.constant 56 : index
    %120 = memref.load %arg2[%c56_56] : memref<64xf32, #tpu.memory_space<smem>>
    %c57_57 = arith.constant 57 : index
    %121 = memref.load %arg2[%c57_57] : memref<64xf32, #tpu.memory_space<smem>>
    %c58_58 = arith.constant 58 : index
    %122 = memref.load %arg2[%c58_58] : memref<64xf32, #tpu.memory_space<smem>>
    %c59_59 = arith.constant 59 : index
    %123 = memref.load %arg2[%c59_59] : memref<64xf32, #tpu.memory_space<smem>>
    %c60_60 = arith.constant 60 : index
    %124 = memref.load %arg2[%c60_60] : memref<64xf32, #tpu.memory_space<smem>>
    %c61_61 = arith.constant 61 : index
    %125 = memref.load %arg2[%c61_61] : memref<64xf32, #tpu.memory_space<smem>>
    %c62_62 = arith.constant 62 : index
    %126 = memref.load %arg2[%c62_62] : memref<64xf32, #tpu.memory_space<smem>>
    %c63_63 = arith.constant 63 : index
    %127 = memref.load %arg2[%c63_63] : memref<64xf32, #tpu.memory_space<smem>>
    %c0_64 = arith.constant 0 : index
    %c0_65 = arith.constant 0 : index
    %c0_66 = arith.constant 0 : index
    %128 = vector.load %arg3[%c0_64, %c0_65, %c0_66] : memref<4x8x128xi32, #tpu.memory_space<vmem>>, vector<1x8x128xi32>
    %129 = vector.shape_cast %128 : vector<1x8x128xi32> to vector<8x128xi32>
    %c0_i32 = arith.constant 0 : i32
    %130 = vector.broadcast %c0_i32 : i32 to vector<8x128xi32>
    %131 = arith.cmpi eq, %129, %130 : vector<8x128xi32>
    %cst = arith.constant 0.000000e+00 : f32
    %132 = vector.broadcast %0 : f32 to vector<8x128xf32>
    %133 = vector.broadcast %cst : f32 to vector<8x128xf32>
    %134 = arith.select %131, %132, %133 : vector<8x128xi1>, vector<8x128xf32>
    %cst_67 = arith.constant 0.000000e+00 : f32
    %135 = vector.broadcast %1 : f32 to vector<8x128xf32>
    %136 = vector.broadcast %cst_67 : f32 to vector<8x128xf32>
    %137 = arith.select %131, %135, %136 : vector<8x128xi1>, vector<8x128xf32>
    %cst_68 = arith.constant 0.000000e+00 : f32
    %138 = vector.broadcast %2 : f32 to vector<8x128xf32>
    %139 = vector.broadcast %cst_68 : f32 to vector<8x128xf32>
    %140 = arith.select %131, %138, %139 : vector<8x128xi1>, vector<8x128xf32>
    %cst_69 = arith.constant 0.000000e+00 : f32
    %141 = vector.broadcast %3 : f32 to vector<8x128xf32>
    %142 = vector.broadcast %cst_69 : f32 to vector<8x128xf32>
    %143 = arith.select %131, %141, %142 : vector<8x128xi1>, vector<8x128xf32>
    %c1_i32 = arith.constant 1 : i32
    %144 = vector.broadcast %c1_i32 : i32 to vector<8x128xi32>
    %145 = arith.cmpi eq, %129, %144 : vector<8x128xi32>
    %146 = vector.broadcast %4 : f32 to vector<8x128xf32>
    %147 = arith.select %145, %146, %134 : vector<8x128xi1>, vector<8x128xf32>
    %148 = vector.broadcast %5 : f32 to vector<8x128xf32>
    %149 = arith.select %145, %148, %137 : vector<8x128xi1>, vector<8x128xf32>
    %150 = vector.broadcast %6 : f32 to vector<8x128xf32>
    %151 = arith.select %145, %150, %140 : vector<8x128xi1>, vector<8x128xf32>
    %152 = vector.broadcast %7 : f32 to vector<8x128xf32>
    %153 = arith.select %145, %152, %143 : vector<8x128xi1>, vector<8x128xf32>
    %c2_i32 = arith.constant 2 : i32
    %154 = vector.broadcast %c2_i32 : i32 to vector<8x128xi32>
    %155 = arith.cmpi eq, %129, %154 : vector<8x128xi32>
    %156 = vector.broadcast %8 : f32 to vector<8x128xf32>
    %157 = arith.select %155, %156, %147 : vector<8x128xi1>, vector<8x128xf32>
    %158 = vector.broadcast %9 : f32 to vector<8x128xf32>
    %159 = arith.select %155, %158, %149 : vector<8x128xi1>, vector<8x128xf32>
    %160 = vector.broadcast %10 : f32 to vector<8x128xf32>
    %161 = arith.select %155, %160, %151 : vector<8x128xi1>, vector<8x128xf32>
    %162 = vector.broadcast %11 : f32 to vector<8x128xf32>
    %163 = arith.select %155, %162, %153 : vector<8x128xi1>, vector<8x128xf32>
    %c3_i32 = arith.constant 3 : i32
    %164 = vector.broadcast %c3_i32 : i32 to vector<8x128xi32>
    %165 = arith.cmpi eq, %129, %164 : vector<8x128xi32>
    %166 = vector.broadcast %12 : f32 to vector<8x128xf32>
    %167 = arith.select %165, %166, %157 : vector<8x128xi1>, vector<8x128xf32>
    %168 = vector.broadcast %13 : f32 to vector<8x128xf32>
    %169 = arith.select %165, %168, %159 : vector<8x128xi1>, vector<8x128xf32>
    %170 = vector.broadcast %14 : f32 to vector<8x128xf32>
    %171 = arith.select %165, %170, %161 : vector<8x128xi1>, vector<8x128xf32>
    %172 = vector.broadcast %15 : f32 to vector<8x128xf32>
    %173 = arith.select %165, %172, %163 : vector<8x128xi1>, vector<8x128xf32>
    %c4_i32 = arith.constant 4 : i32
    %174 = vector.broadcast %c4_i32 : i32 to vector<8x128xi32>
    %175 = arith.cmpi eq, %129, %174 : vector<8x128xi32>
    %176 = vector.broadcast %16 : f32 to vector<8x128xf32>
    %177 = arith.select %175, %176, %167 : vector<8x128xi1>, vector<8x128xf32>
    %178 = vector.broadcast %17 : f32 to vector<8x128xf32>
    %179 = arith.select %175, %178, %169 : vector<8x128xi1>, vector<8x128xf32>
    %180 = vector.broadcast %18 : f32 to vector<8x128xf32>
    %181 = arith.select %175, %180, %171 : vector<8x128xi1>, vector<8x128xf32>
    %182 = vector.broadcast %19 : f32 to vector<8x128xf32>
    %183 = arith.select %175, %182, %173 : vector<8x128xi1>, vector<8x128xf32>
    %c5_i32 = arith.constant 5 : i32
    %184 = vector.broadcast %c5_i32 : i32 to vector<8x128xi32>
    %185 = arith.cmpi eq, %129, %184 : vector<8x128xi32>
    %186 = vector.broadcast %20 : f32 to vector<8x128xf32>
    %187 = arith.select %185, %186, %177 : vector<8x128xi1>, vector<8x128xf32>
    %188 = vector.broadcast %21 : f32 to vector<8x128xf32>
    %189 = arith.select %185, %188, %179 : vector<8x128xi1>, vector<8x128xf32>
    %190 = vector.broadcast %22 : f32 to vector<8x128xf32>
    %191 = arith.select %185, %190, %181 : vector<8x128xi1>, vector<8x128xf32>
    %192 = vector.broadcast %23 : f32 to vector<8x128xf32>
    %193 = arith.select %185, %192, %183 : vector<8x128xi1>, vector<8x128xf32>
    %c6_i32 = arith.constant 6 : i32
    %194 = vector.broadcast %c6_i32 : i32 to vector<8x128xi32>
    %195 = arith.cmpi eq, %129, %194 : vector<8x128xi32>
    %196 = vector.broadcast %24 : f32 to vector<8x128xf32>
    %197 = arith.select %195, %196, %187 : vector<8x128xi1>, vector<8x128xf32>
    %198 = vector.broadcast %25 : f32 to vector<8x128xf32>
    %199 = arith.select %195, %198, %189 : vector<8x128xi1>, vector<8x128xf32>
    %200 = vector.broadcast %26 : f32 to vector<8x128xf32>
    %201 = arith.select %195, %200, %191 : vector<8x128xi1>, vector<8x128xf32>
    %202 = vector.broadcast %27 : f32 to vector<8x128xf32>
    %203 = arith.select %195, %202, %193 : vector<8x128xi1>, vector<8x128xf32>
    %c7_i32 = arith.constant 7 : i32
    %204 = vector.broadcast %c7_i32 : i32 to vector<8x128xi32>
    %205 = arith.cmpi eq, %129, %204 : vector<8x128xi32>
    %206 = vector.broadcast %28 : f32 to vector<8x128xf32>
    %207 = arith.select %205, %206, %197 : vector<8x128xi1>, vector<8x128xf32>
    %208 = vector.broadcast %29 : f32 to vector<8x128xf32>
    %209 = arith.select %205, %208, %199 : vector<8x128xi1>, vector<8x128xf32>
    %210 = vector.broadcast %30 : f32 to vector<8x128xf32>
    %211 = arith.select %205, %210, %201 : vector<8x128xi1>, vector<8x128xf32>
    %212 = vector.broadcast %31 : f32 to vector<8x128xf32>
    %213 = arith.select %205, %212, %203 : vector<8x128xi1>, vector<8x128xf32>
    %c8_i32 = arith.constant 8 : i32
    %214 = vector.broadcast %c8_i32 : i32 to vector<8x128xi32>
    %215 = arith.cmpi eq, %129, %214 : vector<8x128xi32>
    %216 = vector.broadcast %32 : f32 to vector<8x128xf32>
    %217 = arith.select %215, %216, %207 : vector<8x128xi1>, vector<8x128xf32>
    %218 = vector.broadcast %33 : f32 to vector<8x128xf32>
    %219 = arith.select %215, %218, %209 : vector<8x128xi1>, vector<8x128xf32>
    %220 = vector.broadcast %34 : f32 to vector<8x128xf32>
    %221 = arith.select %215, %220, %211 : vector<8x128xi1>, vector<8x128xf32>
    %222 = vector.broadcast %35 : f32 to vector<8x128xf32>
    %223 = arith.select %215, %222, %213 : vector<8x128xi1>, vector<8x128xf32>
    %c9_i32 = arith.constant 9 : i32
    %224 = vector.broadcast %c9_i32 : i32 to vector<8x128xi32>
    %225 = arith.cmpi eq, %129, %224 : vector<8x128xi32>
    %226 = vector.broadcast %36 : f32 to vector<8x128xf32>
    %227 = arith.select %225, %226, %217 : vector<8x128xi1>, vector<8x128xf32>
    %228 = vector.broadcast %37 : f32 to vector<8x128xf32>
    %229 = arith.select %225, %228, %219 : vector<8x128xi1>, vector<8x128xf32>
    %230 = vector.broadcast %38 : f32 to vector<8x128xf32>
    %231 = arith.select %225, %230, %221 : vector<8x128xi1>, vector<8x128xf32>
    %232 = vector.broadcast %39 : f32 to vector<8x128xf32>
    %233 = arith.select %225, %232, %223 : vector<8x128xi1>, vector<8x128xf32>
    %c10_i32 = arith.constant 10 : i32
    %234 = vector.broadcast %c10_i32 : i32 to vector<8x128xi32>
    %235 = arith.cmpi eq, %129, %234 : vector<8x128xi32>
    %236 = vector.broadcast %40 : f32 to vector<8x128xf32>
    %237 = arith.select %235, %236, %227 : vector<8x128xi1>, vector<8x128xf32>
    %238 = vector.broadcast %41 : f32 to vector<8x128xf32>
    %239 = arith.select %235, %238, %229 : vector<8x128xi1>, vector<8x128xf32>
    %240 = vector.broadcast %42 : f32 to vector<8x128xf32>
    %241 = arith.select %235, %240, %231 : vector<8x128xi1>, vector<8x128xf32>
    %242 = vector.broadcast %43 : f32 to vector<8x128xf32>
    %243 = arith.select %235, %242, %233 : vector<8x128xi1>, vector<8x128xf32>
    %c11_i32 = arith.constant 11 : i32
    %244 = vector.broadcast %c11_i32 : i32 to vector<8x128xi32>
    %245 = arith.cmpi eq, %129, %244 : vector<8x128xi32>
    %246 = vector.broadcast %44 : f32 to vector<8x128xf32>
    %247 = arith.select %245, %246, %237 : vector<8x128xi1>, vector<8x128xf32>
    %248 = vector.broadcast %45 : f32 to vector<8x128xf32>
    %249 = arith.select %245, %248, %239 : vector<8x128xi1>, vector<8x128xf32>
    %250 = vector.broadcast %46 : f32 to vector<8x128xf32>
    %251 = arith.select %245, %250, %241 : vector<8x128xi1>, vector<8x128xf32>
    %252 = vector.broadcast %47 : f32 to vector<8x128xf32>
    %253 = arith.select %245, %252, %243 : vector<8x128xi1>, vector<8x128xf32>
    %c12_i32 = arith.constant 12 : i32
    %254 = vector.broadcast %c12_i32 : i32 to vector<8x128xi32>
    %255 = arith.cmpi eq, %129, %254 : vector<8x128xi32>
    %256 = vector.broadcast %48 : f32 to vector<8x128xf32>
    %257 = arith.select %255, %256, %247 : vector<8x128xi1>, vector<8x128xf32>
    %258 = vector.broadcast %49 : f32 to vector<8x128xf32>
    %259 = arith.select %255, %258, %249 : vector<8x128xi1>, vector<8x128xf32>
    %260 = vector.broadcast %50 : f32 to vector<8x128xf32>
    %261 = arith.select %255, %260, %251 : vector<8x128xi1>, vector<8x128xf32>
    %262 = vector.broadcast %51 : f32 to vector<8x128xf32>
    %263 = arith.select %255, %262, %253 : vector<8x128xi1>, vector<8x128xf32>
    %c13_i32 = arith.constant 13 : i32
    %264 = vector.broadcast %c13_i32 : i32 to vector<8x128xi32>
    %265 = arith.cmpi eq, %129, %264 : vector<8x128xi32>
    %266 = vector.broadcast %52 : f32 to vector<8x128xf32>
    %267 = arith.select %265, %266, %257 : vector<8x128xi1>, vector<8x128xf32>
    %268 = vector.broadcast %53 : f32 to vector<8x128xf32>
    %269 = arith.select %265, %268, %259 : vector<8x128xi1>, vector<8x128xf32>
    %270 = vector.broadcast %54 : f32 to vector<8x128xf32>
    %271 = arith.select %265, %270, %261 : vector<8x128xi1>, vector<8x128xf32>
    %272 = vector.broadcast %55 : f32 to vector<8x128xf32>
    %273 = arith.select %265, %272, %263 : vector<8x128xi1>, vector<8x128xf32>
    %c14_i32 = arith.constant 14 : i32
    %274 = vector.broadcast %c14_i32 : i32 to vector<8x128xi32>
    %275 = arith.cmpi eq, %129, %274 : vector<8x128xi32>
    %276 = vector.broadcast %56 : f32 to vector<8x128xf32>
    %277 = arith.select %275, %276, %267 : vector<8x128xi1>, vector<8x128xf32>
    %278 = vector.broadcast %57 : f32 to vector<8x128xf32>
    %279 = arith.select %275, %278, %269 : vector<8x128xi1>, vector<8x128xf32>
    %280 = vector.broadcast %58 : f32 to vector<8x128xf32>
    %281 = arith.select %275, %280, %271 : vector<8x128xi1>, vector<8x128xf32>
    %282 = vector.broadcast %59 : f32 to vector<8x128xf32>
    %283 = arith.select %275, %282, %273 : vector<8x128xi1>, vector<8x128xf32>
    %c15_i32 = arith.constant 15 : i32
    %284 = vector.broadcast %c15_i32 : i32 to vector<8x128xi32>
    %285 = arith.cmpi eq, %129, %284 : vector<8x128xi32>
    %286 = vector.broadcast %60 : f32 to vector<8x128xf32>
    %287 = arith.select %285, %286, %277 : vector<8x128xi1>, vector<8x128xf32>
    %288 = vector.broadcast %61 : f32 to vector<8x128xf32>
    %289 = arith.select %285, %288, %279 : vector<8x128xi1>, vector<8x128xf32>
    %290 = vector.broadcast %62 : f32 to vector<8x128xf32>
    %291 = arith.select %285, %290, %281 : vector<8x128xi1>, vector<8x128xf32>
    %292 = vector.broadcast %63 : f32 to vector<8x128xf32>
    %293 = arith.select %285, %292, %283 : vector<8x128xi1>, vector<8x128xf32>
    %c1_70 = arith.constant 1 : index
    %c0_71 = arith.constant 0 : index
    %c0_72 = arith.constant 0 : index
    %294 = vector.load %arg3[%c1_70, %c0_71, %c0_72] : memref<4x8x128xi32, #tpu.memory_space<vmem>>, vector<1x8x128xi32>
    %295 = vector.shape_cast %294 : vector<1x8x128xi32> to vector<8x128xi32>
    %c0_i32_73 = arith.constant 0 : i32
    %296 = vector.broadcast %c0_i32_73 : i32 to vector<8x128xi32>
    %297 = arith.cmpi eq, %295, %296 : vector<8x128xi32>
    %cst_74 = arith.constant 0.000000e+00 : f32
    %298 = vector.broadcast %0 : f32 to vector<8x128xf32>
    %299 = vector.broadcast %cst_74 : f32 to vector<8x128xf32>
    %300 = arith.select %297, %298, %299 : vector<8x128xi1>, vector<8x128xf32>
    %cst_75 = arith.constant 0.000000e+00 : f32
    %301 = vector.broadcast %1 : f32 to vector<8x128xf32>
    %302 = vector.broadcast %cst_75 : f32 to vector<8x128xf32>
    %303 = arith.select %297, %301, %302 : vector<8x128xi1>, vector<8x128xf32>
    %cst_76 = arith.constant 0.000000e+00 : f32
    %304 = vector.broadcast %2 : f32 to vector<8x128xf32>
    %305 = vector.broadcast %cst_76 : f32 to vector<8x128xf32>
    %306 = arith.select %297, %304, %305 : vector<8x128xi1>, vector<8x128xf32>
    %cst_77 = arith.constant 0.000000e+00 : f32
    %307 = vector.broadcast %3 : f32 to vector<8x128xf32>
    %308 = vector.broadcast %cst_77 : f32 to vector<8x128xf32>
    %309 = arith.select %297, %307, %308 : vector<8x128xi1>, vector<8x128xf32>
    %c1_i32_78 = arith.constant 1 : i32
    %310 = vector.broadcast %c1_i32_78 : i32 to vector<8x128xi32>
    %311 = arith.cmpi eq, %295, %310 : vector<8x128xi32>
    %312 = vector.broadcast %4 : f32 to vector<8x128xf32>
    %313 = arith.select %311, %312, %300 : vector<8x128xi1>, vector<8x128xf32>
    %314 = vector.broadcast %5 : f32 to vector<8x128xf32>
    %315 = arith.select %311, %314, %303 : vector<8x128xi1>, vector<8x128xf32>
    %316 = vector.broadcast %6 : f32 to vector<8x128xf32>
    %317 = arith.select %311, %316, %306 : vector<8x128xi1>, vector<8x128xf32>
    %318 = vector.broadcast %7 : f32 to vector<8x128xf32>
    %319 = arith.select %311, %318, %309 : vector<8x128xi1>, vector<8x128xf32>
    %c2_i32_79 = arith.constant 2 : i32
    %320 = vector.broadcast %c2_i32_79 : i32 to vector<8x128xi32>
    %321 = arith.cmpi eq, %295, %320 : vector<8x128xi32>
    %322 = vector.broadcast %8 : f32 to vector<8x128xf32>
    %323 = arith.select %321, %322, %313 : vector<8x128xi1>, vector<8x128xf32>
    %324 = vector.broadcast %9 : f32 to vector<8x128xf32>
    %325 = arith.select %321, %324, %315 : vector<8x128xi1>, vector<8x128xf32>
    %326 = vector.broadcast %10 : f32 to vector<8x128xf32>
    %327 = arith.select %321, %326, %317 : vector<8x128xi1>, vector<8x128xf32>
    %328 = vector.broadcast %11 : f32 to vector<8x128xf32>
    %329 = arith.select %321, %328, %319 : vector<8x128xi1>, vector<8x128xf32>
    %c3_i32_80 = arith.constant 3 : i32
    %330 = vector.broadcast %c3_i32_80 : i32 to vector<8x128xi32>
    %331 = arith.cmpi eq, %295, %330 : vector<8x128xi32>
    %332 = vector.broadcast %12 : f32 to vector<8x128xf32>
    %333 = arith.select %331, %332, %323 : vector<8x128xi1>, vector<8x128xf32>
    %334 = vector.broadcast %13 : f32 to vector<8x128xf32>
    %335 = arith.select %331, %334, %325 : vector<8x128xi1>, vector<8x128xf32>
    %336 = vector.broadcast %14 : f32 to vector<8x128xf32>
    %337 = arith.select %331, %336, %327 : vector<8x128xi1>, vector<8x128xf32>
    %338 = vector.broadcast %15 : f32 to vector<8x128xf32>
    %339 = arith.select %331, %338, %329 : vector<8x128xi1>, vector<8x128xf32>
    %c4_i32_81 = arith.constant 4 : i32
    %340 = vector.broadcast %c4_i32_81 : i32 to vector<8x128xi32>
    %341 = arith.cmpi eq, %295, %340 : vector<8x128xi32>
    %342 = vector.broadcast %16 : f32 to vector<8x128xf32>
    %343 = arith.select %341, %342, %333 : vector<8x128xi1>, vector<8x128xf32>
    %344 = vector.broadcast %17 : f32 to vector<8x128xf32>
    %345 = arith.select %341, %344, %335 : vector<8x128xi1>, vector<8x128xf32>
    %346 = vector.broadcast %18 : f32 to vector<8x128xf32>
    %347 = arith.select %341, %346, %337 : vector<8x128xi1>, vector<8x128xf32>
    %348 = vector.broadcast %19 : f32 to vector<8x128xf32>
    %349 = arith.select %341, %348, %339 : vector<8x128xi1>, vector<8x128xf32>
    %c5_i32_82 = arith.constant 5 : i32
    %350 = vector.broadcast %c5_i32_82 : i32 to vector<8x128xi32>
    %351 = arith.cmpi eq, %295, %350 : vector<8x128xi32>
    %352 = vector.broadcast %20 : f32 to vector<8x128xf32>
    %353 = arith.select %351, %352, %343 : vector<8x128xi1>, vector<8x128xf32>
    %354 = vector.broadcast %21 : f32 to vector<8x128xf32>
    %355 = arith.select %351, %354, %345 : vector<8x128xi1>, vector<8x128xf32>
    %356 = vector.broadcast %22 : f32 to vector<8x128xf32>
    %357 = arith.select %351, %356, %347 : vector<8x128xi1>, vector<8x128xf32>
    %358 = vector.broadcast %23 : f32 to vector<8x128xf32>
    %359 = arith.select %351, %358, %349 : vector<8x128xi1>, vector<8x128xf32>
    %c6_i32_83 = arith.constant 6 : i32
    %360 = vector.broadcast %c6_i32_83 : i32 to vector<8x128xi32>
    %361 = arith.cmpi eq, %295, %360 : vector<8x128xi32>
    %362 = vector.broadcast %24 : f32 to vector<8x128xf32>
    %363 = arith.select %361, %362, %353 : vector<8x128xi1>, vector<8x128xf32>
    %364 = vector.broadcast %25 : f32 to vector<8x128xf32>
    %365 = arith.select %361, %364, %355 : vector<8x128xi1>, vector<8x128xf32>
    %366 = vector.broadcast %26 : f32 to vector<8x128xf32>
    %367 = arith.select %361, %366, %357 : vector<8x128xi1>, vector<8x128xf32>
    %368 = vector.broadcast %27 : f32 to vector<8x128xf32>
    %369 = arith.select %361, %368, %359 : vector<8x128xi1>, vector<8x128xf32>
    %c7_i32_84 = arith.constant 7 : i32
    %370 = vector.broadcast %c7_i32_84 : i32 to vector<8x128xi32>
    %371 = arith.cmpi eq, %295, %370 : vector<8x128xi32>
    %372 = vector.broadcast %28 : f32 to vector<8x128xf32>
    %373 = arith.select %371, %372, %363 : vector<8x128xi1>, vector<8x128xf32>
    %374 = vector.broadcast %29 : f32 to vector<8x128xf32>
    %375 = arith.select %371, %374, %365 : vector<8x128xi1>, vector<8x128xf32>
    %376 = vector.broadcast %30 : f32 to vector<8x128xf32>
    %377 = arith.select %371, %376, %367 : vector<8x128xi1>, vector<8x128xf32>
    %378 = vector.broadcast %31 : f32 to vector<8x128xf32>
    %379 = arith.select %371, %378, %369 : vector<8x128xi1>, vector<8x128xf32>
    %c8_i32_85 = arith.constant 8 : i32
    %380 = vector.broadcast %c8_i32_85 : i32 to vector<8x128xi32>
    %381 = arith.cmpi eq, %295, %380 : vector<8x128xi32>
    %382 = vector.broadcast %32 : f32 to vector<8x128xf32>
    %383 = arith.select %381, %382, %373 : vector<8x128xi1>, vector<8x128xf32>
    %384 = vector.broadcast %33 : f32 to vector<8x128xf32>
    %385 = arith.select %381, %384, %375 : vector<8x128xi1>, vector<8x128xf32>
    %386 = vector.broadcast %34 : f32 to vector<8x128xf32>
    %387 = arith.select %381, %386, %377 : vector<8x128xi1>, vector<8x128xf32>
    %388 = vector.broadcast %35 : f32 to vector<8x128xf32>
    %389 = arith.select %381, %388, %379 : vector<8x128xi1>, vector<8x128xf32>
    %c9_i32_86 = arith.constant 9 : i32
    %390 = vector.broadcast %c9_i32_86 : i32 to vector<8x128xi32>
    %391 = arith.cmpi eq, %295, %390 : vector<8x128xi32>
    %392 = vector.broadcast %36 : f32 to vector<8x128xf32>
    %393 = arith.select %391, %392, %383 : vector<8x128xi1>, vector<8x128xf32>
    %394 = vector.broadcast %37 : f32 to vector<8x128xf32>
    %395 = arith.select %391, %394, %385 : vector<8x128xi1>, vector<8x128xf32>
    %396 = vector.broadcast %38 : f32 to vector<8x128xf32>
    %397 = arith.select %391, %396, %387 : vector<8x128xi1>, vector<8x128xf32>
    %398 = vector.broadcast %39 : f32 to vector<8x128xf32>
    %399 = arith.select %391, %398, %389 : vector<8x128xi1>, vector<8x128xf32>
    %c10_i32_87 = arith.constant 10 : i32
    %400 = vector.broadcast %c10_i32_87 : i32 to vector<8x128xi32>
    %401 = arith.cmpi eq, %295, %400 : vector<8x128xi32>
    %402 = vector.broadcast %40 : f32 to vector<8x128xf32>
    %403 = arith.select %401, %402, %393 : vector<8x128xi1>, vector<8x128xf32>
    %404 = vector.broadcast %41 : f32 to vector<8x128xf32>
    %405 = arith.select %401, %404, %395 : vector<8x128xi1>, vector<8x128xf32>
    %406 = vector.broadcast %42 : f32 to vector<8x128xf32>
    %407 = arith.select %401, %406, %397 : vector<8x128xi1>, vector<8x128xf32>
    %408 = vector.broadcast %43 : f32 to vector<8x128xf32>
    %409 = arith.select %401, %408, %399 : vector<8x128xi1>, vector<8x128xf32>
    %c11_i32_88 = arith.constant 11 : i32
    %410 = vector.broadcast %c11_i32_88 : i32 to vector<8x128xi32>
    %411 = arith.cmpi eq, %295, %410 : vector<8x128xi32>
    %412 = vector.broadcast %44 : f32 to vector<8x128xf32>
    %413 = arith.select %411, %412, %403 : vector<8x128xi1>, vector<8x128xf32>
    %414 = vector.broadcast %45 : f32 to vector<8x128xf32>
    %415 = arith.select %411, %414, %405 : vector<8x128xi1>, vector<8x128xf32>
    %416 = vector.broadcast %46 : f32 to vector<8x128xf32>
    %417 = arith.select %411, %416, %407 : vector<8x128xi1>, vector<8x128xf32>
    %418 = vector.broadcast %47 : f32 to vector<8x128xf32>
    %419 = arith.select %411, %418, %409 : vector<8x128xi1>, vector<8x128xf32>
    %c12_i32_89 = arith.constant 12 : i32
    %420 = vector.broadcast %c12_i32_89 : i32 to vector<8x128xi32>
    %421 = arith.cmpi eq, %295, %420 : vector<8x128xi32>
    %422 = vector.broadcast %48 : f32 to vector<8x128xf32>
    %423 = arith.select %421, %422, %413 : vector<8x128xi1>, vector<8x128xf32>
    %424 = vector.broadcast %49 : f32 to vector<8x128xf32>
    %425 = arith.select %421, %424, %415 : vector<8x128xi1>, vector<8x128xf32>
    %426 = vector.broadcast %50 : f32 to vector<8x128xf32>
    %427 = arith.select %421, %426, %417 : vector<8x128xi1>, vector<8x128xf32>
    %428 = vector.broadcast %51 : f32 to vector<8x128xf32>
    %429 = arith.select %421, %428, %419 : vector<8x128xi1>, vector<8x128xf32>
    %c13_i32_90 = arith.constant 13 : i32
    %430 = vector.broadcast %c13_i32_90 : i32 to vector<8x128xi32>
    %431 = arith.cmpi eq, %295, %430 : vector<8x128xi32>
    %432 = vector.broadcast %52 : f32 to vector<8x128xf32>
    %433 = arith.select %431, %432, %423 : vector<8x128xi1>, vector<8x128xf32>
    %434 = vector.broadcast %53 : f32 to vector<8x128xf32>
    %435 = arith.select %431, %434, %425 : vector<8x128xi1>, vector<8x128xf32>
    %436 = vector.broadcast %54 : f32 to vector<8x128xf32>
    %437 = arith.select %431, %436, %427 : vector<8x128xi1>, vector<8x128xf32>
    %438 = vector.broadcast %55 : f32 to vector<8x128xf32>
    %439 = arith.select %431, %438, %429 : vector<8x128xi1>, vector<8x128xf32>
    %c14_i32_91 = arith.constant 14 : i32
    %440 = vector.broadcast %c14_i32_91 : i32 to vector<8x128xi32>
    %441 = arith.cmpi eq, %295, %440 : vector<8x128xi32>
    %442 = vector.broadcast %56 : f32 to vector<8x128xf32>
    %443 = arith.select %441, %442, %433 : vector<8x128xi1>, vector<8x128xf32>
    %444 = vector.broadcast %57 : f32 to vector<8x128xf32>
    %445 = arith.select %441, %444, %435 : vector<8x128xi1>, vector<8x128xf32>
    %446 = vector.broadcast %58 : f32 to vector<8x128xf32>
    %447 = arith.select %441, %446, %437 : vector<8x128xi1>, vector<8x128xf32>
    %448 = vector.broadcast %59 : f32 to vector<8x128xf32>
    %449 = arith.select %441, %448, %439 : vector<8x128xi1>, vector<8x128xf32>
    %c15_i32_92 = arith.constant 15 : i32
    %450 = vector.broadcast %c15_i32_92 : i32 to vector<8x128xi32>
    %451 = arith.cmpi eq, %295, %450 : vector<8x128xi32>
    %452 = vector.broadcast %60 : f32 to vector<8x128xf32>
    %453 = arith.select %451, %452, %443 : vector<8x128xi1>, vector<8x128xf32>
    %454 = vector.broadcast %61 : f32 to vector<8x128xf32>
    %455 = arith.select %451, %454, %445 : vector<8x128xi1>, vector<8x128xf32>
    %456 = vector.broadcast %62 : f32 to vector<8x128xf32>
    %457 = arith.select %451, %456, %447 : vector<8x128xi1>, vector<8x128xf32>
    %458 = vector.broadcast %63 : f32 to vector<8x128xf32>
    %459 = arith.select %451, %458, %449 : vector<8x128xi1>, vector<8x128xf32>
    %c2_93 = arith.constant 2 : index
    %c0_94 = arith.constant 0 : index
    %c0_95 = arith.constant 0 : index
    %460 = vector.load %arg3[%c2_93, %c0_94, %c0_95] : memref<4x8x128xi32, #tpu.memory_space<vmem>>, vector<1x8x128xi32>
    %461 = vector.shape_cast %460 : vector<1x8x128xi32> to vector<8x128xi32>
    %c0_i32_96 = arith.constant 0 : i32
    %462 = vector.broadcast %c0_i32_96 : i32 to vector<8x128xi32>
    %463 = arith.cmpi eq, %461, %462 : vector<8x128xi32>
    %cst_97 = arith.constant 0.000000e+00 : f32
    %464 = vector.broadcast %0 : f32 to vector<8x128xf32>
    %465 = vector.broadcast %cst_97 : f32 to vector<8x128xf32>
    %466 = arith.select %463, %464, %465 : vector<8x128xi1>, vector<8x128xf32>
    %cst_98 = arith.constant 0.000000e+00 : f32
    %467 = vector.broadcast %1 : f32 to vector<8x128xf32>
    %468 = vector.broadcast %cst_98 : f32 to vector<8x128xf32>
    %469 = arith.select %463, %467, %468 : vector<8x128xi1>, vector<8x128xf32>
    %cst_99 = arith.constant 0.000000e+00 : f32
    %470 = vector.broadcast %2 : f32 to vector<8x128xf32>
    %471 = vector.broadcast %cst_99 : f32 to vector<8x128xf32>
    %472 = arith.select %463, %470, %471 : vector<8x128xi1>, vector<8x128xf32>
    %cst_100 = arith.constant 0.000000e+00 : f32
    %473 = vector.broadcast %3 : f32 to vector<8x128xf32>
    %474 = vector.broadcast %cst_100 : f32 to vector<8x128xf32>
    %475 = arith.select %463, %473, %474 : vector<8x128xi1>, vector<8x128xf32>
    %c1_i32_101 = arith.constant 1 : i32
    %476 = vector.broadcast %c1_i32_101 : i32 to vector<8x128xi32>
    %477 = arith.cmpi eq, %461, %476 : vector<8x128xi32>
    %478 = vector.broadcast %4 : f32 to vector<8x128xf32>
    %479 = arith.select %477, %478, %466 : vector<8x128xi1>, vector<8x128xf32>
    %480 = vector.broadcast %5 : f32 to vector<8x128xf32>
    %481 = arith.select %477, %480, %469 : vector<8x128xi1>, vector<8x128xf32>
    %482 = vector.broadcast %6 : f32 to vector<8x128xf32>
    %483 = arith.select %477, %482, %472 : vector<8x128xi1>, vector<8x128xf32>
    %484 = vector.broadcast %7 : f32 to vector<8x128xf32>
    %485 = arith.select %477, %484, %475 : vector<8x128xi1>, vector<8x128xf32>
    %c2_i32_102 = arith.constant 2 : i32
    %486 = vector.broadcast %c2_i32_102 : i32 to vector<8x128xi32>
    %487 = arith.cmpi eq, %461, %486 : vector<8x128xi32>
    %488 = vector.broadcast %8 : f32 to vector<8x128xf32>
    %489 = arith.select %487, %488, %479 : vector<8x128xi1>, vector<8x128xf32>
    %490 = vector.broadcast %9 : f32 to vector<8x128xf32>
    %491 = arith.select %487, %490, %481 : vector<8x128xi1>, vector<8x128xf32>
    %492 = vector.broadcast %10 : f32 to vector<8x128xf32>
    %493 = arith.select %487, %492, %483 : vector<8x128xi1>, vector<8x128xf32>
    %494 = vector.broadcast %11 : f32 to vector<8x128xf32>
    %495 = arith.select %487, %494, %485 : vector<8x128xi1>, vector<8x128xf32>
    %c3_i32_103 = arith.constant 3 : i32
    %496 = vector.broadcast %c3_i32_103 : i32 to vector<8x128xi32>
    %497 = arith.cmpi eq, %461, %496 : vector<8x128xi32>
    %498 = vector.broadcast %12 : f32 to vector<8x128xf32>
    %499 = arith.select %497, %498, %489 : vector<8x128xi1>, vector<8x128xf32>
    %500 = vector.broadcast %13 : f32 to vector<8x128xf32>
    %501 = arith.select %497, %500, %491 : vector<8x128xi1>, vector<8x128xf32>
    %502 = vector.broadcast %14 : f32 to vector<8x128xf32>
    %503 = arith.select %497, %502, %493 : vector<8x128xi1>, vector<8x128xf32>
    %504 = vector.broadcast %15 : f32 to vector<8x128xf32>
    %505 = arith.select %497, %504, %495 : vector<8x128xi1>, vector<8x128xf32>
    %c4_i32_104 = arith.constant 4 : i32
    %506 = vector.broadcast %c4_i32_104 : i32 to vector<8x128xi32>
    %507 = arith.cmpi eq, %461, %506 : vector<8x128xi32>
    %508 = vector.broadcast %16 : f32 to vector<8x128xf32>
    %509 = arith.select %507, %508, %499 : vector<8x128xi1>, vector<8x128xf32>
    %510 = vector.broadcast %17 : f32 to vector<8x128xf32>
    %511 = arith.select %507, %510, %501 : vector<8x128xi1>, vector<8x128xf32>
    %512 = vector.broadcast %18 : f32 to vector<8x128xf32>
    %513 = arith.select %507, %512, %503 : vector<8x128xi1>, vector<8x128xf32>
    %514 = vector.broadcast %19 : f32 to vector<8x128xf32>
    %515 = arith.select %507, %514, %505 : vector<8x128xi1>, vector<8x128xf32>
    %c5_i32_105 = arith.constant 5 : i32
    %516 = vector.broadcast %c5_i32_105 : i32 to vector<8x128xi32>
    %517 = arith.cmpi eq, %461, %516 : vector<8x128xi32>
    %518 = vector.broadcast %20 : f32 to vector<8x128xf32>
    %519 = arith.select %517, %518, %509 : vector<8x128xi1>, vector<8x128xf32>
    %520 = vector.broadcast %21 : f32 to vector<8x128xf32>
    %521 = arith.select %517, %520, %511 : vector<8x128xi1>, vector<8x128xf32>
    %522 = vector.broadcast %22 : f32 to vector<8x128xf32>
    %523 = arith.select %517, %522, %513 : vector<8x128xi1>, vector<8x128xf32>
    %524 = vector.broadcast %23 : f32 to vector<8x128xf32>
    %525 = arith.select %517, %524, %515 : vector<8x128xi1>, vector<8x128xf32>
    %c6_i32_106 = arith.constant 6 : i32
    %526 = vector.broadcast %c6_i32_106 : i32 to vector<8x128xi32>
    %527 = arith.cmpi eq, %461, %526 : vector<8x128xi32>
    %528 = vector.broadcast %24 : f32 to vector<8x128xf32>
    %529 = arith.select %527, %528, %519 : vector<8x128xi1>, vector<8x128xf32>
    %530 = vector.broadcast %25 : f32 to vector<8x128xf32>
    %531 = arith.select %527, %530, %521 : vector<8x128xi1>, vector<8x128xf32>
    %532 = vector.broadcast %26 : f32 to vector<8x128xf32>
    %533 = arith.select %527, %532, %523 : vector<8x128xi1>, vector<8x128xf32>
    %534 = vector.broadcast %27 : f32 to vector<8x128xf32>
    %535 = arith.select %527, %534, %525 : vector<8x128xi1>, vector<8x128xf32>
    %c7_i32_107 = arith.constant 7 : i32
    %536 = vector.broadcast %c7_i32_107 : i32 to vector<8x128xi32>
    %537 = arith.cmpi eq, %461, %536 : vector<8x128xi32>
    %538 = vector.broadcast %28 : f32 to vector<8x128xf32>
    %539 = arith.select %537, %538, %529 : vector<8x128xi1>, vector<8x128xf32>
    %540 = vector.broadcast %29 : f32 to vector<8x128xf32>
    %541 = arith.select %537, %540, %531 : vector<8x128xi1>, vector<8x128xf32>
    %542 = vector.broadcast %30 : f32 to vector<8x128xf32>
    %543 = arith.select %537, %542, %533 : vector<8x128xi1>, vector<8x128xf32>
    %544 = vector.broadcast %31 : f32 to vector<8x128xf32>
    %545 = arith.select %537, %544, %535 : vector<8x128xi1>, vector<8x128xf32>
    %c8_i32_108 = arith.constant 8 : i32
    %546 = vector.broadcast %c8_i32_108 : i32 to vector<8x128xi32>
    %547 = arith.cmpi eq, %461, %546 : vector<8x128xi32>
    %548 = vector.broadcast %32 : f32 to vector<8x128xf32>
    %549 = arith.select %547, %548, %539 : vector<8x128xi1>, vector<8x128xf32>
    %550 = vector.broadcast %33 : f32 to vector<8x128xf32>
    %551 = arith.select %547, %550, %541 : vector<8x128xi1>, vector<8x128xf32>
    %552 = vector.broadcast %34 : f32 to vector<8x128xf32>
    %553 = arith.select %547, %552, %543 : vector<8x128xi1>, vector<8x128xf32>
    %554 = vector.broadcast %35 : f32 to vector<8x128xf32>
    %555 = arith.select %547, %554, %545 : vector<8x128xi1>, vector<8x128xf32>
    %c9_i32_109 = arith.constant 9 : i32
    %556 = vector.broadcast %c9_i32_109 : i32 to vector<8x128xi32>
    %557 = arith.cmpi eq, %461, %556 : vector<8x128xi32>
    %558 = vector.broadcast %36 : f32 to vector<8x128xf32>
    %559 = arith.select %557, %558, %549 : vector<8x128xi1>, vector<8x128xf32>
    %560 = vector.broadcast %37 : f32 to vector<8x128xf32>
    %561 = arith.select %557, %560, %551 : vector<8x128xi1>, vector<8x128xf32>
    %562 = vector.broadcast %38 : f32 to vector<8x128xf32>
    %563 = arith.select %557, %562, %553 : vector<8x128xi1>, vector<8x128xf32>
    %564 = vector.broadcast %39 : f32 to vector<8x128xf32>
    %565 = arith.select %557, %564, %555 : vector<8x128xi1>, vector<8x128xf32>
    %c10_i32_110 = arith.constant 10 : i32
    %566 = vector.broadcast %c10_i32_110 : i32 to vector<8x128xi32>
    %567 = arith.cmpi eq, %461, %566 : vector<8x128xi32>
    %568 = vector.broadcast %40 : f32 to vector<8x128xf32>
    %569 = arith.select %567, %568, %559 : vector<8x128xi1>, vector<8x128xf32>
    %570 = vector.broadcast %41 : f32 to vector<8x128xf32>
    %571 = arith.select %567, %570, %561 : vector<8x128xi1>, vector<8x128xf32>
    %572 = vector.broadcast %42 : f32 to vector<8x128xf32>
    %573 = arith.select %567, %572, %563 : vector<8x128xi1>, vector<8x128xf32>
    %574 = vector.broadcast %43 : f32 to vector<8x128xf32>
    %575 = arith.select %567, %574, %565 : vector<8x128xi1>, vector<8x128xf32>
    %c11_i32_111 = arith.constant 11 : i32
    %576 = vector.broadcast %c11_i32_111 : i32 to vector<8x128xi32>
    %577 = arith.cmpi eq, %461, %576 : vector<8x128xi32>
    %578 = vector.broadcast %44 : f32 to vector<8x128xf32>
    %579 = arith.select %577, %578, %569 : vector<8x128xi1>, vector<8x128xf32>
    %580 = vector.broadcast %45 : f32 to vector<8x128xf32>
    %581 = arith.select %577, %580, %571 : vector<8x128xi1>, vector<8x128xf32>
    %582 = vector.broadcast %46 : f32 to vector<8x128xf32>
    %583 = arith.select %577, %582, %573 : vector<8x128xi1>, vector<8x128xf32>
    %584 = vector.broadcast %47 : f32 to vector<8x128xf32>
    %585 = arith.select %577, %584, %575 : vector<8x128xi1>, vector<8x128xf32>
    %c12_i32_112 = arith.constant 12 : i32
    %586 = vector.broadcast %c12_i32_112 : i32 to vector<8x128xi32>
    %587 = arith.cmpi eq, %461, %586 : vector<8x128xi32>
    %588 = vector.broadcast %48 : f32 to vector<8x128xf32>
    %589 = arith.select %587, %588, %579 : vector<8x128xi1>, vector<8x128xf32>
    %590 = vector.broadcast %49 : f32 to vector<8x128xf32>
    %591 = arith.select %587, %590, %581 : vector<8x128xi1>, vector<8x128xf32>
    %592 = vector.broadcast %50 : f32 to vector<8x128xf32>
    %593 = arith.select %587, %592, %583 : vector<8x128xi1>, vector<8x128xf32>
    %594 = vector.broadcast %51 : f32 to vector<8x128xf32>
    %595 = arith.select %587, %594, %585 : vector<8x128xi1>, vector<8x128xf32>
    %c13_i32_113 = arith.constant 13 : i32
    %596 = vector.broadcast %c13_i32_113 : i32 to vector<8x128xi32>
    %597 = arith.cmpi eq, %461, %596 : vector<8x128xi32>
    %598 = vector.broadcast %52 : f32 to vector<8x128xf32>
    %599 = arith.select %597, %598, %589 : vector<8x128xi1>, vector<8x128xf32>
    %600 = vector.broadcast %53 : f32 to vector<8x128xf32>
    %601 = arith.select %597, %600, %591 : vector<8x128xi1>, vector<8x128xf32>
    %602 = vector.broadcast %54 : f32 to vector<8x128xf32>
    %603 = arith.select %597, %602, %593 : vector<8x128xi1>, vector<8x128xf32>
    %604 = vector.broadcast %55 : f32 to vector<8x128xf32>
    %605 = arith.select %597, %604, %595 : vector<8x128xi1>, vector<8x128xf32>
    %c14_i32_114 = arith.constant 14 : i32
    %606 = vector.broadcast %c14_i32_114 : i32 to vector<8x128xi32>
    %607 = arith.cmpi eq, %461, %606 : vector<8x128xi32>
    %608 = vector.broadcast %56 : f32 to vector<8x128xf32>
    %609 = arith.select %607, %608, %599 : vector<8x128xi1>, vector<8x128xf32>
    %610 = vector.broadcast %57 : f32 to vector<8x128xf32>
    %611 = arith.select %607, %610, %601 : vector<8x128xi1>, vector<8x128xf32>
    %612 = vector.broadcast %58 : f32 to vector<8x128xf32>
    %613 = arith.select %607, %612, %603 : vector<8x128xi1>, vector<8x128xf32>
    %614 = vector.broadcast %59 : f32 to vector<8x128xf32>
    %615 = arith.select %607, %614, %605 : vector<8x128xi1>, vector<8x128xf32>
    %c15_i32_115 = arith.constant 15 : i32
    %616 = vector.broadcast %c15_i32_115 : i32 to vector<8x128xi32>
    %617 = arith.cmpi eq, %461, %616 : vector<8x128xi32>
    %618 = vector.broadcast %60 : f32 to vector<8x128xf32>
    %619 = arith.select %617, %618, %609 : vector<8x128xi1>, vector<8x128xf32>
    %620 = vector.broadcast %61 : f32 to vector<8x128xf32>
    %621 = arith.select %617, %620, %611 : vector<8x128xi1>, vector<8x128xf32>
    %622 = vector.broadcast %62 : f32 to vector<8x128xf32>
    %623 = arith.select %617, %622, %613 : vector<8x128xi1>, vector<8x128xf32>
    %624 = vector.broadcast %63 : f32 to vector<8x128xf32>
    %625 = arith.select %617, %624, %615 : vector<8x128xi1>, vector<8x128xf32>
    %c3_116 = arith.constant 3 : index
    %c0_117 = arith.constant 0 : index
    %c0_118 = arith.constant 0 : index
    %626 = vector.load %arg3[%c3_116, %c0_117, %c0_118] : memref<4x8x128xi32, #tpu.memory_space<vmem>>, vector<1x8x128xi32>
    %627 = vector.shape_cast %626 : vector<1x8x128xi32> to vector<8x128xi32>
    %c0_i32_119 = arith.constant 0 : i32
    %628 = vector.broadcast %c0_i32_119 : i32 to vector<8x128xi32>
    %629 = arith.cmpi eq, %627, %628 : vector<8x128xi32>
    %cst_120 = arith.constant 0.000000e+00 : f32
    %630 = vector.broadcast %0 : f32 to vector<8x128xf32>
    %631 = vector.broadcast %cst_120 : f32 to vector<8x128xf32>
    %632 = arith.select %629, %630, %631 : vector<8x128xi1>, vector<8x128xf32>
    %cst_121 = arith.constant 0.000000e+00 : f32
    %633 = vector.broadcast %1 : f32 to vector<8x128xf32>
    %634 = vector.broadcast %cst_121 : f32 to vector<8x128xf32>
    %635 = arith.select %629, %633, %634 : vector<8x128xi1>, vector<8x128xf32>
    %cst_122 = arith.constant 0.000000e+00 : f32
    %636 = vector.broadcast %2 : f32 to vector<8x128xf32>
    %637 = vector.broadcast %cst_122 : f32 to vector<8x128xf32>
    %638 = arith.select %629, %636, %637 : vector<8x128xi1>, vector<8x128xf32>
    %cst_123 = arith.constant 0.000000e+00 : f32
    %639 = vector.broadcast %3 : f32 to vector<8x128xf32>
    %640 = vector.broadcast %cst_123 : f32 to vector<8x128xf32>
    %641 = arith.select %629, %639, %640 : vector<8x128xi1>, vector<8x128xf32>
    %c1_i32_124 = arith.constant 1 : i32
    %642 = vector.broadcast %c1_i32_124 : i32 to vector<8x128xi32>
    %643 = arith.cmpi eq, %627, %642 : vector<8x128xi32>
    %644 = vector.broadcast %4 : f32 to vector<8x128xf32>
    %645 = arith.select %643, %644, %632 : vector<8x128xi1>, vector<8x128xf32>
    %646 = vector.broadcast %5 : f32 to vector<8x128xf32>
    %647 = arith.select %643, %646, %635 : vector<8x128xi1>, vector<8x128xf32>
    %648 = vector.broadcast %6 : f32 to vector<8x128xf32>
    %649 = arith.select %643, %648, %638 : vector<8x128xi1>, vector<8x128xf32>
    %650 = vector.broadcast %7 : f32 to vector<8x128xf32>
    %651 = arith.select %643, %650, %641 : vector<8x128xi1>, vector<8x128xf32>
    %c2_i32_125 = arith.constant 2 : i32
    %652 = vector.broadcast %c2_i32_125 : i32 to vector<8x128xi32>
    %653 = arith.cmpi eq, %627, %652 : vector<8x128xi32>
    %654 = vector.broadcast %8 : f32 to vector<8x128xf32>
    %655 = arith.select %653, %654, %645 : vector<8x128xi1>, vector<8x128xf32>
    %656 = vector.broadcast %9 : f32 to vector<8x128xf32>
    %657 = arith.select %653, %656, %647 : vector<8x128xi1>, vector<8x128xf32>
    %658 = vector.broadcast %10 : f32 to vector<8x128xf32>
    %659 = arith.select %653, %658, %649 : vector<8x128xi1>, vector<8x128xf32>
    %660 = vector.broadcast %11 : f32 to vector<8x128xf32>
    %661 = arith.select %653, %660, %651 : vector<8x128xi1>, vector<8x128xf32>
    %c3_i32_126 = arith.constant 3 : i32
    %662 = vector.broadcast %c3_i32_126 : i32 to vector<8x128xi32>
    %663 = arith.cmpi eq, %627, %662 : vector<8x128xi32>
    %664 = vector.broadcast %12 : f32 to vector<8x128xf32>
    %665 = arith.select %663, %664, %655 : vector<8x128xi1>, vector<8x128xf32>
    %666 = vector.broadcast %13 : f32 to vector<8x128xf32>
    %667 = arith.select %663, %666, %657 : vector<8x128xi1>, vector<8x128xf32>
    %668 = vector.broadcast %14 : f32 to vector<8x128xf32>
    %669 = arith.select %663, %668, %659 : vector<8x128xi1>, vector<8x128xf32>
    %670 = vector.broadcast %15 : f32 to vector<8x128xf32>
    %671 = arith.select %663, %670, %661 : vector<8x128xi1>, vector<8x128xf32>
    %c4_i32_127 = arith.constant 4 : i32
    %672 = vector.broadcast %c4_i32_127 : i32 to vector<8x128xi32>
    %673 = arith.cmpi eq, %627, %672 : vector<8x128xi32>
    %674 = vector.broadcast %16 : f32 to vector<8x128xf32>
    %675 = arith.select %673, %674, %665 : vector<8x128xi1>, vector<8x128xf32>
    %676 = vector.broadcast %17 : f32 to vector<8x128xf32>
    %677 = arith.select %673, %676, %667 : vector<8x128xi1>, vector<8x128xf32>
    %678 = vector.broadcast %18 : f32 to vector<8x128xf32>
    %679 = arith.select %673, %678, %669 : vector<8x128xi1>, vector<8x128xf32>
    %680 = vector.broadcast %19 : f32 to vector<8x128xf32>
    %681 = arith.select %673, %680, %671 : vector<8x128xi1>, vector<8x128xf32>
    %c5_i32_128 = arith.constant 5 : i32
    %682 = vector.broadcast %c5_i32_128 : i32 to vector<8x128xi32>
    %683 = arith.cmpi eq, %627, %682 : vector<8x128xi32>
    %684 = vector.broadcast %20 : f32 to vector<8x128xf32>
    %685 = arith.select %683, %684, %675 : vector<8x128xi1>, vector<8x128xf32>
    %686 = vector.broadcast %21 : f32 to vector<8x128xf32>
    %687 = arith.select %683, %686, %677 : vector<8x128xi1>, vector<8x128xf32>
    %688 = vector.broadcast %22 : f32 to vector<8x128xf32>
    %689 = arith.select %683, %688, %679 : vector<8x128xi1>, vector<8x128xf32>
    %690 = vector.broadcast %23 : f32 to vector<8x128xf32>
    %691 = arith.select %683, %690, %681 : vector<8x128xi1>, vector<8x128xf32>
    %c6_i32_129 = arith.constant 6 : i32
    %692 = vector.broadcast %c6_i32_129 : i32 to vector<8x128xi32>
    %693 = arith.cmpi eq, %627, %692 : vector<8x128xi32>
    %694 = vector.broadcast %24 : f32 to vector<8x128xf32>
    %695 = arith.select %693, %694, %685 : vector<8x128xi1>, vector<8x128xf32>
    %696 = vector.broadcast %25 : f32 to vector<8x128xf32>
    %697 = arith.select %693, %696, %687 : vector<8x128xi1>, vector<8x128xf32>
    %698 = vector.broadcast %26 : f32 to vector<8x128xf32>
    %699 = arith.select %693, %698, %689 : vector<8x128xi1>, vector<8x128xf32>
    %700 = vector.broadcast %27 : f32 to vector<8x128xf32>
    %701 = arith.select %693, %700, %691 : vector<8x128xi1>, vector<8x128xf32>
    %c7_i32_130 = arith.constant 7 : i32
    %702 = vector.broadcast %c7_i32_130 : i32 to vector<8x128xi32>
    %703 = arith.cmpi eq, %627, %702 : vector<8x128xi32>
    %704 = vector.broadcast %28 : f32 to vector<8x128xf32>
    %705 = arith.select %703, %704, %695 : vector<8x128xi1>, vector<8x128xf32>
    %706 = vector.broadcast %29 : f32 to vector<8x128xf32>
    %707 = arith.select %703, %706, %697 : vector<8x128xi1>, vector<8x128xf32>
    %708 = vector.broadcast %30 : f32 to vector<8x128xf32>
    %709 = arith.select %703, %708, %699 : vector<8x128xi1>, vector<8x128xf32>
    %710 = vector.broadcast %31 : f32 to vector<8x128xf32>
    %711 = arith.select %703, %710, %701 : vector<8x128xi1>, vector<8x128xf32>
    %c8_i32_131 = arith.constant 8 : i32
    %712 = vector.broadcast %c8_i32_131 : i32 to vector<8x128xi32>
    %713 = arith.cmpi eq, %627, %712 : vector<8x128xi32>
    %714 = vector.broadcast %32 : f32 to vector<8x128xf32>
    %715 = arith.select %713, %714, %705 : vector<8x128xi1>, vector<8x128xf32>
    %716 = vector.broadcast %33 : f32 to vector<8x128xf32>
    %717 = arith.select %713, %716, %707 : vector<8x128xi1>, vector<8x128xf32>
    %718 = vector.broadcast %34 : f32 to vector<8x128xf32>
    %719 = arith.select %713, %718, %709 : vector<8x128xi1>, vector<8x128xf32>
    %720 = vector.broadcast %35 : f32 to vector<8x128xf32>
    %721 = arith.select %713, %720, %711 : vector<8x128xi1>, vector<8x128xf32>
    %c9_i32_132 = arith.constant 9 : i32
    %722 = vector.broadcast %c9_i32_132 : i32 to vector<8x128xi32>
    %723 = arith.cmpi eq, %627, %722 : vector<8x128xi32>
    %724 = vector.broadcast %36 : f32 to vector<8x128xf32>
    %725 = arith.select %723, %724, %715 : vector<8x128xi1>, vector<8x128xf32>
    %726 = vector.broadcast %37 : f32 to vector<8x128xf32>
    %727 = arith.select %723, %726, %717 : vector<8x128xi1>, vector<8x128xf32>
    %728 = vector.broadcast %38 : f32 to vector<8x128xf32>
    %729 = arith.select %723, %728, %719 : vector<8x128xi1>, vector<8x128xf32>
    %730 = vector.broadcast %39 : f32 to vector<8x128xf32>
    %731 = arith.select %723, %730, %721 : vector<8x128xi1>, vector<8x128xf32>
    %c10_i32_133 = arith.constant 10 : i32
    %732 = vector.broadcast %c10_i32_133 : i32 to vector<8x128xi32>
    %733 = arith.cmpi eq, %627, %732 : vector<8x128xi32>
    %734 = vector.broadcast %40 : f32 to vector<8x128xf32>
    %735 = arith.select %733, %734, %725 : vector<8x128xi1>, vector<8x128xf32>
    %736 = vector.broadcast %41 : f32 to vector<8x128xf32>
    %737 = arith.select %733, %736, %727 : vector<8x128xi1>, vector<8x128xf32>
    %738 = vector.broadcast %42 : f32 to vector<8x128xf32>
    %739 = arith.select %733, %738, %729 : vector<8x128xi1>, vector<8x128xf32>
    %740 = vector.broadcast %43 : f32 to vector<8x128xf32>
    %741 = arith.select %733, %740, %731 : vector<8x128xi1>, vector<8x128xf32>
    %c11_i32_134 = arith.constant 11 : i32
    %742 = vector.broadcast %c11_i32_134 : i32 to vector<8x128xi32>
    %743 = arith.cmpi eq, %627, %742 : vector<8x128xi32>
    %744 = vector.broadcast %44 : f32 to vector<8x128xf32>
    %745 = arith.select %743, %744, %735 : vector<8x128xi1>, vector<8x128xf32>
    %746 = vector.broadcast %45 : f32 to vector<8x128xf32>
    %747 = arith.select %743, %746, %737 : vector<8x128xi1>, vector<8x128xf32>
    %748 = vector.broadcast %46 : f32 to vector<8x128xf32>
    %749 = arith.select %743, %748, %739 : vector<8x128xi1>, vector<8x128xf32>
    %750 = vector.broadcast %47 : f32 to vector<8x128xf32>
    %751 = arith.select %743, %750, %741 : vector<8x128xi1>, vector<8x128xf32>
    %c12_i32_135 = arith.constant 12 : i32
    %752 = vector.broadcast %c12_i32_135 : i32 to vector<8x128xi32>
    %753 = arith.cmpi eq, %627, %752 : vector<8x128xi32>
    %754 = vector.broadcast %48 : f32 to vector<8x128xf32>
    %755 = arith.select %753, %754, %745 : vector<8x128xi1>, vector<8x128xf32>
    %756 = vector.broadcast %49 : f32 to vector<8x128xf32>
    %757 = arith.select %753, %756, %747 : vector<8x128xi1>, vector<8x128xf32>
    %758 = vector.broadcast %50 : f32 to vector<8x128xf32>
    %759 = arith.select %753, %758, %749 : vector<8x128xi1>, vector<8x128xf32>
    %760 = vector.broadcast %51 : f32 to vector<8x128xf32>
    %761 = arith.select %753, %760, %751 : vector<8x128xi1>, vector<8x128xf32>
    %c13_i32_136 = arith.constant 13 : i32
    %762 = vector.broadcast %c13_i32_136 : i32 to vector<8x128xi32>
    %763 = arith.cmpi eq, %627, %762 : vector<8x128xi32>
    %764 = vector.broadcast %52 : f32 to vector<8x128xf32>
    %765 = arith.select %763, %764, %755 : vector<8x128xi1>, vector<8x128xf32>
    %766 = vector.broadcast %53 : f32 to vector<8x128xf32>
    %767 = arith.select %763, %766, %757 : vector<8x128xi1>, vector<8x128xf32>
    %768 = vector.broadcast %54 : f32 to vector<8x128xf32>
    %769 = arith.select %763, %768, %759 : vector<8x128xi1>, vector<8x128xf32>
    %770 = vector.broadcast %55 : f32 to vector<8x128xf32>
    %771 = arith.select %763, %770, %761 : vector<8x128xi1>, vector<8x128xf32>
    %c14_i32_137 = arith.constant 14 : i32
    %772 = vector.broadcast %c14_i32_137 : i32 to vector<8x128xi32>
    %773 = arith.cmpi eq, %627, %772 : vector<8x128xi32>
    %774 = vector.broadcast %56 : f32 to vector<8x128xf32>
    %775 = arith.select %773, %774, %765 : vector<8x128xi1>, vector<8x128xf32>
    %776 = vector.broadcast %57 : f32 to vector<8x128xf32>
    %777 = arith.select %773, %776, %767 : vector<8x128xi1>, vector<8x128xf32>
    %778 = vector.broadcast %58 : f32 to vector<8x128xf32>
    %779 = arith.select %773, %778, %769 : vector<8x128xi1>, vector<8x128xf32>
    %780 = vector.broadcast %59 : f32 to vector<8x128xf32>
    %781 = arith.select %773, %780, %771 : vector<8x128xi1>, vector<8x128xf32>
    %c15_i32_138 = arith.constant 15 : i32
    %782 = vector.broadcast %c15_i32_138 : i32 to vector<8x128xi32>
    %783 = arith.cmpi eq, %627, %782 : vector<8x128xi32>
    %784 = vector.broadcast %60 : f32 to vector<8x128xf32>
    %785 = arith.select %783, %784, %775 : vector<8x128xi1>, vector<8x128xf32>
    %786 = vector.broadcast %61 : f32 to vector<8x128xf32>
    %787 = arith.select %783, %786, %777 : vector<8x128xi1>, vector<8x128xf32>
    %788 = vector.broadcast %62 : f32 to vector<8x128xf32>
    %789 = arith.select %783, %788, %779 : vector<8x128xi1>, vector<8x128xf32>
    %790 = vector.broadcast %63 : f32 to vector<8x128xf32>
    %791 = arith.select %783, %790, %781 : vector<8x128xi1>, vector<8x128xf32>
    %792 = arith.mulf %287, %455 : vector<8x128xf32>
    %793 = arith.mulf %289, %453 : vector<8x128xf32>
    %794 = arith.subf %792, %793 : vector<8x128xf32>
    %795 = arith.mulf %287, %457 : vector<8x128xf32>
    %796 = arith.mulf %291, %453 : vector<8x128xf32>
    %797 = arith.subf %795, %796 : vector<8x128xf32>
    %798 = arith.mulf %287, %459 : vector<8x128xf32>
    %799 = arith.mulf %293, %453 : vector<8x128xf32>
    %800 = arith.subf %798, %799 : vector<8x128xf32>
    %801 = arith.mulf %289, %457 : vector<8x128xf32>
    %802 = arith.mulf %291, %455 : vector<8x128xf32>
    %803 = arith.subf %801, %802 : vector<8x128xf32>
    %804 = arith.mulf %289, %459 : vector<8x128xf32>
    %805 = arith.mulf %293, %455 : vector<8x128xf32>
    %806 = arith.subf %804, %805 : vector<8x128xf32>
    %807 = arith.mulf %291, %459 : vector<8x128xf32>
    %808 = arith.mulf %293, %457 : vector<8x128xf32>
    %809 = arith.subf %807, %808 : vector<8x128xf32>
    %810 = arith.mulf %619, %787 : vector<8x128xf32>
    %811 = arith.mulf %621, %785 : vector<8x128xf32>
    %812 = arith.subf %810, %811 : vector<8x128xf32>
    %813 = arith.mulf %619, %789 : vector<8x128xf32>
    %814 = arith.mulf %623, %785 : vector<8x128xf32>
    %815 = arith.subf %813, %814 : vector<8x128xf32>
    %816 = arith.mulf %619, %791 : vector<8x128xf32>
    %817 = arith.mulf %625, %785 : vector<8x128xf32>
    %818 = arith.subf %816, %817 : vector<8x128xf32>
    %819 = arith.mulf %621, %789 : vector<8x128xf32>
    %820 = arith.mulf %623, %787 : vector<8x128xf32>
    %821 = arith.subf %819, %820 : vector<8x128xf32>
    %822 = arith.mulf %621, %791 : vector<8x128xf32>
    %823 = arith.mulf %625, %787 : vector<8x128xf32>
    %824 = arith.subf %822, %823 : vector<8x128xf32>
    %825 = arith.mulf %623, %791 : vector<8x128xf32>
    %826 = arith.mulf %625, %789 : vector<8x128xf32>
    %827 = arith.subf %825, %826 : vector<8x128xf32>
    %828 = arith.mulf %794, %827 : vector<8x128xf32>
    %829 = arith.mulf %797, %824 : vector<8x128xf32>
    %830 = arith.subf %828, %829 : vector<8x128xf32>
    %831 = arith.mulf %800, %821 : vector<8x128xf32>
    %832 = arith.addf %830, %831 : vector<8x128xf32>
    %833 = arith.mulf %803, %818 : vector<8x128xf32>
    %834 = arith.addf %832, %833 : vector<8x128xf32>
    %835 = arith.mulf %806, %815 : vector<8x128xf32>
    %836 = arith.subf %834, %835 : vector<8x128xf32>
    %837 = arith.mulf %809, %812 : vector<8x128xf32>
    %838 = arith.addf %836, %837 : vector<8x128xf32>
    %c0_139 = arith.constant 0 : index
    %c0_140 = arith.constant 0 : index
    %c0_141 = arith.constant 0 : index
    %839 = vector.load %arg4[%c0_139, %c0_140, %c0_141] : memref<4x8x128xi32, #tpu.memory_space<vmem>>, vector<1x8x128xi32>
    %840 = vector.shape_cast %839 : vector<1x8x128xi32> to vector<8x128xi32>
    %c0_i32_142 = arith.constant 0 : i32
    %841 = vector.broadcast %c0_i32_142 : i32 to vector<8x128xi32>
    %842 = arith.cmpi eq, %840, %841 : vector<8x128xi32>
    %cst_143 = arith.constant 0.000000e+00 : f32
    %843 = vector.broadcast %64 : f32 to vector<8x128xf32>
    %844 = vector.broadcast %cst_143 : f32 to vector<8x128xf32>
    %845 = arith.select %842, %843, %844 : vector<8x128xi1>, vector<8x128xf32>
    %cst_144 = arith.constant 0.000000e+00 : f32
    %846 = vector.broadcast %65 : f32 to vector<8x128xf32>
    %847 = vector.broadcast %cst_144 : f32 to vector<8x128xf32>
    %848 = arith.select %842, %846, %847 : vector<8x128xi1>, vector<8x128xf32>
    %cst_145 = arith.constant 0.000000e+00 : f32
    %849 = vector.broadcast %66 : f32 to vector<8x128xf32>
    %850 = vector.broadcast %cst_145 : f32 to vector<8x128xf32>
    %851 = arith.select %842, %849, %850 : vector<8x128xi1>, vector<8x128xf32>
    %cst_146 = arith.constant 0.000000e+00 : f32
    %852 = vector.broadcast %67 : f32 to vector<8x128xf32>
    %853 = vector.broadcast %cst_146 : f32 to vector<8x128xf32>
    %854 = arith.select %842, %852, %853 : vector<8x128xi1>, vector<8x128xf32>
    %c1_i32_147 = arith.constant 1 : i32
    %855 = vector.broadcast %c1_i32_147 : i32 to vector<8x128xi32>
    %856 = arith.cmpi eq, %840, %855 : vector<8x128xi32>
    %857 = vector.broadcast %68 : f32 to vector<8x128xf32>
    %858 = arith.select %856, %857, %845 : vector<8x128xi1>, vector<8x128xf32>
    %859 = vector.broadcast %69 : f32 to vector<8x128xf32>
    %860 = arith.select %856, %859, %848 : vector<8x128xi1>, vector<8x128xf32>
    %861 = vector.broadcast %70 : f32 to vector<8x128xf32>
    %862 = arith.select %856, %861, %851 : vector<8x128xi1>, vector<8x128xf32>
    %863 = vector.broadcast %71 : f32 to vector<8x128xf32>
    %864 = arith.select %856, %863, %854 : vector<8x128xi1>, vector<8x128xf32>
    %c2_i32_148 = arith.constant 2 : i32
    %865 = vector.broadcast %c2_i32_148 : i32 to vector<8x128xi32>
    %866 = arith.cmpi eq, %840, %865 : vector<8x128xi32>
    %867 = vector.broadcast %72 : f32 to vector<8x128xf32>
    %868 = arith.select %866, %867, %858 : vector<8x128xi1>, vector<8x128xf32>
    %869 = vector.broadcast %73 : f32 to vector<8x128xf32>
    %870 = arith.select %866, %869, %860 : vector<8x128xi1>, vector<8x128xf32>
    %871 = vector.broadcast %74 : f32 to vector<8x128xf32>
    %872 = arith.select %866, %871, %862 : vector<8x128xi1>, vector<8x128xf32>
    %873 = vector.broadcast %75 : f32 to vector<8x128xf32>
    %874 = arith.select %866, %873, %864 : vector<8x128xi1>, vector<8x128xf32>
    %c3_i32_149 = arith.constant 3 : i32
    %875 = vector.broadcast %c3_i32_149 : i32 to vector<8x128xi32>
    %876 = arith.cmpi eq, %840, %875 : vector<8x128xi32>
    %877 = vector.broadcast %76 : f32 to vector<8x128xf32>
    %878 = arith.select %876, %877, %868 : vector<8x128xi1>, vector<8x128xf32>
    %879 = vector.broadcast %77 : f32 to vector<8x128xf32>
    %880 = arith.select %876, %879, %870 : vector<8x128xi1>, vector<8x128xf32>
    %881 = vector.broadcast %78 : f32 to vector<8x128xf32>
    %882 = arith.select %876, %881, %872 : vector<8x128xi1>, vector<8x128xf32>
    %883 = vector.broadcast %79 : f32 to vector<8x128xf32>
    %884 = arith.select %876, %883, %874 : vector<8x128xi1>, vector<8x128xf32>
    %c4_i32_150 = arith.constant 4 : i32
    %885 = vector.broadcast %c4_i32_150 : i32 to vector<8x128xi32>
    %886 = arith.cmpi eq, %840, %885 : vector<8x128xi32>
    %887 = vector.broadcast %80 : f32 to vector<8x128xf32>
    %888 = arith.select %886, %887, %878 : vector<8x128xi1>, vector<8x128xf32>
    %889 = vector.broadcast %81 : f32 to vector<8x128xf32>
    %890 = arith.select %886, %889, %880 : vector<8x128xi1>, vector<8x128xf32>
    %891 = vector.broadcast %82 : f32 to vector<8x128xf32>
    %892 = arith.select %886, %891, %882 : vector<8x128xi1>, vector<8x128xf32>
    %893 = vector.broadcast %83 : f32 to vector<8x128xf32>
    %894 = arith.select %886, %893, %884 : vector<8x128xi1>, vector<8x128xf32>
    %c5_i32_151 = arith.constant 5 : i32
    %895 = vector.broadcast %c5_i32_151 : i32 to vector<8x128xi32>
    %896 = arith.cmpi eq, %840, %895 : vector<8x128xi32>
    %897 = vector.broadcast %84 : f32 to vector<8x128xf32>
    %898 = arith.select %896, %897, %888 : vector<8x128xi1>, vector<8x128xf32>
    %899 = vector.broadcast %85 : f32 to vector<8x128xf32>
    %900 = arith.select %896, %899, %890 : vector<8x128xi1>, vector<8x128xf32>
    %901 = vector.broadcast %86 : f32 to vector<8x128xf32>
    %902 = arith.select %896, %901, %892 : vector<8x128xi1>, vector<8x128xf32>
    %903 = vector.broadcast %87 : f32 to vector<8x128xf32>
    %904 = arith.select %896, %903, %894 : vector<8x128xi1>, vector<8x128xf32>
    %c6_i32_152 = arith.constant 6 : i32
    %905 = vector.broadcast %c6_i32_152 : i32 to vector<8x128xi32>
    %906 = arith.cmpi eq, %840, %905 : vector<8x128xi32>
    %907 = vector.broadcast %88 : f32 to vector<8x128xf32>
    %908 = arith.select %906, %907, %898 : vector<8x128xi1>, vector<8x128xf32>
    %909 = vector.broadcast %89 : f32 to vector<8x128xf32>
    %910 = arith.select %906, %909, %900 : vector<8x128xi1>, vector<8x128xf32>
    %911 = vector.broadcast %90 : f32 to vector<8x128xf32>
    %912 = arith.select %906, %911, %902 : vector<8x128xi1>, vector<8x128xf32>
    %913 = vector.broadcast %91 : f32 to vector<8x128xf32>
    %914 = arith.select %906, %913, %904 : vector<8x128xi1>, vector<8x128xf32>
    %c7_i32_153 = arith.constant 7 : i32
    %915 = vector.broadcast %c7_i32_153 : i32 to vector<8x128xi32>
    %916 = arith.cmpi eq, %840, %915 : vector<8x128xi32>
    %917 = vector.broadcast %92 : f32 to vector<8x128xf32>
    %918 = arith.select %916, %917, %908 : vector<8x128xi1>, vector<8x128xf32>
    %919 = vector.broadcast %93 : f32 to vector<8x128xf32>
    %920 = arith.select %916, %919, %910 : vector<8x128xi1>, vector<8x128xf32>
    %921 = vector.broadcast %94 : f32 to vector<8x128xf32>
    %922 = arith.select %916, %921, %912 : vector<8x128xi1>, vector<8x128xf32>
    %923 = vector.broadcast %95 : f32 to vector<8x128xf32>
    %924 = arith.select %916, %923, %914 : vector<8x128xi1>, vector<8x128xf32>
    %c8_i32_154 = arith.constant 8 : i32
    %925 = vector.broadcast %c8_i32_154 : i32 to vector<8x128xi32>
    %926 = arith.cmpi eq, %840, %925 : vector<8x128xi32>
    %927 = vector.broadcast %96 : f32 to vector<8x128xf32>
    %928 = arith.select %926, %927, %918 : vector<8x128xi1>, vector<8x128xf32>
    %929 = vector.broadcast %97 : f32 to vector<8x128xf32>
    %930 = arith.select %926, %929, %920 : vector<8x128xi1>, vector<8x128xf32>
    %931 = vector.broadcast %98 : f32 to vector<8x128xf32>
    %932 = arith.select %926, %931, %922 : vector<8x128xi1>, vector<8x128xf32>
    %933 = vector.broadcast %99 : f32 to vector<8x128xf32>
    %934 = arith.select %926, %933, %924 : vector<8x128xi1>, vector<8x128xf32>
    %c9_i32_155 = arith.constant 9 : i32
    %935 = vector.broadcast %c9_i32_155 : i32 to vector<8x128xi32>
    %936 = arith.cmpi eq, %840, %935 : vector<8x128xi32>
    %937 = vector.broadcast %100 : f32 to vector<8x128xf32>
    %938 = arith.select %936, %937, %928 : vector<8x128xi1>, vector<8x128xf32>
    %939 = vector.broadcast %101 : f32 to vector<8x128xf32>
    %940 = arith.select %936, %939, %930 : vector<8x128xi1>, vector<8x128xf32>
    %941 = vector.broadcast %102 : f32 to vector<8x128xf32>
    %942 = arith.select %936, %941, %932 : vector<8x128xi1>, vector<8x128xf32>
    %943 = vector.broadcast %103 : f32 to vector<8x128xf32>
    %944 = arith.select %936, %943, %934 : vector<8x128xi1>, vector<8x128xf32>
    %c10_i32_156 = arith.constant 10 : i32
    %945 = vector.broadcast %c10_i32_156 : i32 to vector<8x128xi32>
    %946 = arith.cmpi eq, %840, %945 : vector<8x128xi32>
    %947 = vector.broadcast %104 : f32 to vector<8x128xf32>
    %948 = arith.select %946, %947, %938 : vector<8x128xi1>, vector<8x128xf32>
    %949 = vector.broadcast %105 : f32 to vector<8x128xf32>
    %950 = arith.select %946, %949, %940 : vector<8x128xi1>, vector<8x128xf32>
    %951 = vector.broadcast %106 : f32 to vector<8x128xf32>
    %952 = arith.select %946, %951, %942 : vector<8x128xi1>, vector<8x128xf32>
    %953 = vector.broadcast %107 : f32 to vector<8x128xf32>
    %954 = arith.select %946, %953, %944 : vector<8x128xi1>, vector<8x128xf32>
    %c11_i32_157 = arith.constant 11 : i32
    %955 = vector.broadcast %c11_i32_157 : i32 to vector<8x128xi32>
    %956 = arith.cmpi eq, %840, %955 : vector<8x128xi32>
    %957 = vector.broadcast %108 : f32 to vector<8x128xf32>
    %958 = arith.select %956, %957, %948 : vector<8x128xi1>, vector<8x128xf32>
    %959 = vector.broadcast %109 : f32 to vector<8x128xf32>
    %960 = arith.select %956, %959, %950 : vector<8x128xi1>, vector<8x128xf32>
    %961 = vector.broadcast %110 : f32 to vector<8x128xf32>
    %962 = arith.select %956, %961, %952 : vector<8x128xi1>, vector<8x128xf32>
    %963 = vector.broadcast %111 : f32 to vector<8x128xf32>
    %964 = arith.select %956, %963, %954 : vector<8x128xi1>, vector<8x128xf32>
    %c12_i32_158 = arith.constant 12 : i32
    %965 = vector.broadcast %c12_i32_158 : i32 to vector<8x128xi32>
    %966 = arith.cmpi eq, %840, %965 : vector<8x128xi32>
    %967 = vector.broadcast %112 : f32 to vector<8x128xf32>
    %968 = arith.select %966, %967, %958 : vector<8x128xi1>, vector<8x128xf32>
    %969 = vector.broadcast %113 : f32 to vector<8x128xf32>
    %970 = arith.select %966, %969, %960 : vector<8x128xi1>, vector<8x128xf32>
    %971 = vector.broadcast %114 : f32 to vector<8x128xf32>
    %972 = arith.select %966, %971, %962 : vector<8x128xi1>, vector<8x128xf32>
    %973 = vector.broadcast %115 : f32 to vector<8x128xf32>
    %974 = arith.select %966, %973, %964 : vector<8x128xi1>, vector<8x128xf32>
    %c13_i32_159 = arith.constant 13 : i32
    %975 = vector.broadcast %c13_i32_159 : i32 to vector<8x128xi32>
    %976 = arith.cmpi eq, %840, %975 : vector<8x128xi32>
    %977 = vector.broadcast %116 : f32 to vector<8x128xf32>
    %978 = arith.select %976, %977, %968 : vector<8x128xi1>, vector<8x128xf32>
    %979 = vector.broadcast %117 : f32 to vector<8x128xf32>
    %980 = arith.select %976, %979, %970 : vector<8x128xi1>, vector<8x128xf32>
    %981 = vector.broadcast %118 : f32 to vector<8x128xf32>
    %982 = arith.select %976, %981, %972 : vector<8x128xi1>, vector<8x128xf32>
    %983 = vector.broadcast %119 : f32 to vector<8x128xf32>
    %984 = arith.select %976, %983, %974 : vector<8x128xi1>, vector<8x128xf32>
    %c14_i32_160 = arith.constant 14 : i32
    %985 = vector.broadcast %c14_i32_160 : i32 to vector<8x128xi32>
    %986 = arith.cmpi eq, %840, %985 : vector<8x128xi32>
    %987 = vector.broadcast %120 : f32 to vector<8x128xf32>
    %988 = arith.select %986, %987, %978 : vector<8x128xi1>, vector<8x128xf32>
    %989 = vector.broadcast %121 : f32 to vector<8x128xf32>
    %990 = arith.select %986, %989, %980 : vector<8x128xi1>, vector<8x128xf32>
    %991 = vector.broadcast %122 : f32 to vector<8x128xf32>
    %992 = arith.select %986, %991, %982 : vector<8x128xi1>, vector<8x128xf32>
    %993 = vector.broadcast %123 : f32 to vector<8x128xf32>
    %994 = arith.select %986, %993, %984 : vector<8x128xi1>, vector<8x128xf32>
    %c15_i32_161 = arith.constant 15 : i32
    %995 = vector.broadcast %c15_i32_161 : i32 to vector<8x128xi32>
    %996 = arith.cmpi eq, %840, %995 : vector<8x128xi32>
    %997 = vector.broadcast %124 : f32 to vector<8x128xf32>
    %998 = arith.select %996, %997, %988 : vector<8x128xi1>, vector<8x128xf32>
    %999 = vector.broadcast %125 : f32 to vector<8x128xf32>
    %1000 = arith.select %996, %999, %990 : vector<8x128xi1>, vector<8x128xf32>
    %1001 = vector.broadcast %126 : f32 to vector<8x128xf32>
    %1002 = arith.select %996, %1001, %992 : vector<8x128xi1>, vector<8x128xf32>
    %1003 = vector.broadcast %127 : f32 to vector<8x128xf32>
    %1004 = arith.select %996, %1003, %994 : vector<8x128xi1>, vector<8x128xf32>
    %c1_162 = arith.constant 1 : index
    %c0_163 = arith.constant 0 : index
    %c0_164 = arith.constant 0 : index
    %1005 = vector.load %arg4[%c1_162, %c0_163, %c0_164] : memref<4x8x128xi32, #tpu.memory_space<vmem>>, vector<1x8x128xi32>
    %1006 = vector.shape_cast %1005 : vector<1x8x128xi32> to vector<8x128xi32>
    %c0_i32_165 = arith.constant 0 : i32
    %1007 = vector.broadcast %c0_i32_165 : i32 to vector<8x128xi32>
    %1008 = arith.cmpi eq, %1006, %1007 : vector<8x128xi32>
    %cst_166 = arith.constant 0.000000e+00 : f32
    %1009 = vector.broadcast %64 : f32 to vector<8x128xf32>
    %1010 = vector.broadcast %cst_166 : f32 to vector<8x128xf32>
    %1011 = arith.select %1008, %1009, %1010 : vector<8x128xi1>, vector<8x128xf32>
    %cst_167 = arith.constant 0.000000e+00 : f32
    %1012 = vector.broadcast %65 : f32 to vector<8x128xf32>
    %1013 = vector.broadcast %cst_167 : f32 to vector<8x128xf32>
    %1014 = arith.select %1008, %1012, %1013 : vector<8x128xi1>, vector<8x128xf32>
    %cst_168 = arith.constant 0.000000e+00 : f32
    %1015 = vector.broadcast %66 : f32 to vector<8x128xf32>
    %1016 = vector.broadcast %cst_168 : f32 to vector<8x128xf32>
    %1017 = arith.select %1008, %1015, %1016 : vector<8x128xi1>, vector<8x128xf32>
    %cst_169 = arith.constant 0.000000e+00 : f32
    %1018 = vector.broadcast %67 : f32 to vector<8x128xf32>
    %1019 = vector.broadcast %cst_169 : f32 to vector<8x128xf32>
    %1020 = arith.select %1008, %1018, %1019 : vector<8x128xi1>, vector<8x128xf32>
    %c1_i32_170 = arith.constant 1 : i32
    %1021 = vector.broadcast %c1_i32_170 : i32 to vector<8x128xi32>
    %1022 = arith.cmpi eq, %1006, %1021 : vector<8x128xi32>
    %1023 = vector.broadcast %68 : f32 to vector<8x128xf32>
    %1024 = arith.select %1022, %1023, %1011 : vector<8x128xi1>, vector<8x128xf32>
    %1025 = vector.broadcast %69 : f32 to vector<8x128xf32>
    %1026 = arith.select %1022, %1025, %1014 : vector<8x128xi1>, vector<8x128xf32>
    %1027 = vector.broadcast %70 : f32 to vector<8x128xf32>
    %1028 = arith.select %1022, %1027, %1017 : vector<8x128xi1>, vector<8x128xf32>
    %1029 = vector.broadcast %71 : f32 to vector<8x128xf32>
    %1030 = arith.select %1022, %1029, %1020 : vector<8x128xi1>, vector<8x128xf32>
    %c2_i32_171 = arith.constant 2 : i32
    %1031 = vector.broadcast %c2_i32_171 : i32 to vector<8x128xi32>
    %1032 = arith.cmpi eq, %1006, %1031 : vector<8x128xi32>
    %1033 = vector.broadcast %72 : f32 to vector<8x128xf32>
    %1034 = arith.select %1032, %1033, %1024 : vector<8x128xi1>, vector<8x128xf32>
    %1035 = vector.broadcast %73 : f32 to vector<8x128xf32>
    %1036 = arith.select %1032, %1035, %1026 : vector<8x128xi1>, vector<8x128xf32>
    %1037 = vector.broadcast %74 : f32 to vector<8x128xf32>
    %1038 = arith.select %1032, %1037, %1028 : vector<8x128xi1>, vector<8x128xf32>
    %1039 = vector.broadcast %75 : f32 to vector<8x128xf32>
    %1040 = arith.select %1032, %1039, %1030 : vector<8x128xi1>, vector<8x128xf32>
    %c3_i32_172 = arith.constant 3 : i32
    %1041 = vector.broadcast %c3_i32_172 : i32 to vector<8x128xi32>
    %1042 = arith.cmpi eq, %1006, %1041 : vector<8x128xi32>
    %1043 = vector.broadcast %76 : f32 to vector<8x128xf32>
    %1044 = arith.select %1042, %1043, %1034 : vector<8x128xi1>, vector<8x128xf32>
    %1045 = vector.broadcast %77 : f32 to vector<8x128xf32>
    %1046 = arith.select %1042, %1045, %1036 : vector<8x128xi1>, vector<8x128xf32>
    %1047 = vector.broadcast %78 : f32 to vector<8x128xf32>
    %1048 = arith.select %1042, %1047, %1038 : vector<8x128xi1>, vector<8x128xf32>
    %1049 = vector.broadcast %79 : f32 to vector<8x128xf32>
    %1050 = arith.select %1042, %1049, %1040 : vector<8x128xi1>, vector<8x128xf32>
    %c4_i32_173 = arith.constant 4 : i32
    %1051 = vector.broadcast %c4_i32_173 : i32 to vector<8x128xi32>
    %1052 = arith.cmpi eq, %1006, %1051 : vector<8x128xi32>
    %1053 = vector.broadcast %80 : f32 to vector<8x128xf32>
    %1054 = arith.select %1052, %1053, %1044 : vector<8x128xi1>, vector<8x128xf32>
    %1055 = vector.broadcast %81 : f32 to vector<8x128xf32>
    %1056 = arith.select %1052, %1055, %1046 : vector<8x128xi1>, vector<8x128xf32>
    %1057 = vector.broadcast %82 : f32 to vector<8x128xf32>
    %1058 = arith.select %1052, %1057, %1048 : vector<8x128xi1>, vector<8x128xf32>
    %1059 = vector.broadcast %83 : f32 to vector<8x128xf32>
    %1060 = arith.select %1052, %1059, %1050 : vector<8x128xi1>, vector<8x128xf32>
    %c5_i32_174 = arith.constant 5 : i32
    %1061 = vector.broadcast %c5_i32_174 : i32 to vector<8x128xi32>
    %1062 = arith.cmpi eq, %1006, %1061 : vector<8x128xi32>
    %1063 = vector.broadcast %84 : f32 to vector<8x128xf32>
    %1064 = arith.select %1062, %1063, %1054 : vector<8x128xi1>, vector<8x128xf32>
    %1065 = vector.broadcast %85 : f32 to vector<8x128xf32>
    %1066 = arith.select %1062, %1065, %1056 : vector<8x128xi1>, vector<8x128xf32>
    %1067 = vector.broadcast %86 : f32 to vector<8x128xf32>
    %1068 = arith.select %1062, %1067, %1058 : vector<8x128xi1>, vector<8x128xf32>
    %1069 = vector.broadcast %87 : f32 to vector<8x128xf32>
    %1070 = arith.select %1062, %1069, %1060 : vector<8x128xi1>, vector<8x128xf32>
    %c6_i32_175 = arith.constant 6 : i32
    %1071 = vector.broadcast %c6_i32_175 : i32 to vector<8x128xi32>
    %1072 = arith.cmpi eq, %1006, %1071 : vector<8x128xi32>
    %1073 = vector.broadcast %88 : f32 to vector<8x128xf32>
    %1074 = arith.select %1072, %1073, %1064 : vector<8x128xi1>, vector<8x128xf32>
    %1075 = vector.broadcast %89 : f32 to vector<8x128xf32>
    %1076 = arith.select %1072, %1075, %1066 : vector<8x128xi1>, vector<8x128xf32>
    %1077 = vector.broadcast %90 : f32 to vector<8x128xf32>
    %1078 = arith.select %1072, %1077, %1068 : vector<8x128xi1>, vector<8x128xf32>
    %1079 = vector.broadcast %91 : f32 to vector<8x128xf32>
    %1080 = arith.select %1072, %1079, %1070 : vector<8x128xi1>, vector<8x128xf32>
    %c7_i32_176 = arith.constant 7 : i32
    %1081 = vector.broadcast %c7_i32_176 : i32 to vector<8x128xi32>
    %1082 = arith.cmpi eq, %1006, %1081 : vector<8x128xi32>
    %1083 = vector.broadcast %92 : f32 to vector<8x128xf32>
    %1084 = arith.select %1082, %1083, %1074 : vector<8x128xi1>, vector<8x128xf32>
    %1085 = vector.broadcast %93 : f32 to vector<8x128xf32>
    %1086 = arith.select %1082, %1085, %1076 : vector<8x128xi1>, vector<8x128xf32>
    %1087 = vector.broadcast %94 : f32 to vector<8x128xf32>
    %1088 = arith.select %1082, %1087, %1078 : vector<8x128xi1>, vector<8x128xf32>
    %1089 = vector.broadcast %95 : f32 to vector<8x128xf32>
    %1090 = arith.select %1082, %1089, %1080 : vector<8x128xi1>, vector<8x128xf32>
    %c8_i32_177 = arith.constant 8 : i32
    %1091 = vector.broadcast %c8_i32_177 : i32 to vector<8x128xi32>
    %1092 = arith.cmpi eq, %1006, %1091 : vector<8x128xi32>
    %1093 = vector.broadcast %96 : f32 to vector<8x128xf32>
    %1094 = arith.select %1092, %1093, %1084 : vector<8x128xi1>, vector<8x128xf32>
    %1095 = vector.broadcast %97 : f32 to vector<8x128xf32>
    %1096 = arith.select %1092, %1095, %1086 : vector<8x128xi1>, vector<8x128xf32>
    %1097 = vector.broadcast %98 : f32 to vector<8x128xf32>
    %1098 = arith.select %1092, %1097, %1088 : vector<8x128xi1>, vector<8x128xf32>
    %1099 = vector.broadcast %99 : f32 to vector<8x128xf32>
    %1100 = arith.select %1092, %1099, %1090 : vector<8x128xi1>, vector<8x128xf32>
    %c9_i32_178 = arith.constant 9 : i32
    %1101 = vector.broadcast %c9_i32_178 : i32 to vector<8x128xi32>
    %1102 = arith.cmpi eq, %1006, %1101 : vector<8x128xi32>
    %1103 = vector.broadcast %100 : f32 to vector<8x128xf32>
    %1104 = arith.select %1102, %1103, %1094 : vector<8x128xi1>, vector<8x128xf32>
    %1105 = vector.broadcast %101 : f32 to vector<8x128xf32>
    %1106 = arith.select %1102, %1105, %1096 : vector<8x128xi1>, vector<8x128xf32>
    %1107 = vector.broadcast %102 : f32 to vector<8x128xf32>
    %1108 = arith.select %1102, %1107, %1098 : vector<8x128xi1>, vector<8x128xf32>
    %1109 = vector.broadcast %103 : f32 to vector<8x128xf32>
    %1110 = arith.select %1102, %1109, %1100 : vector<8x128xi1>, vector<8x128xf32>
    %c10_i32_179 = arith.constant 10 : i32
    %1111 = vector.broadcast %c10_i32_179 : i32 to vector<8x128xi32>
    %1112 = arith.cmpi eq, %1006, %1111 : vector<8x128xi32>
    %1113 = vector.broadcast %104 : f32 to vector<8x128xf32>
    %1114 = arith.select %1112, %1113, %1104 : vector<8x128xi1>, vector<8x128xf32>
    %1115 = vector.broadcast %105 : f32 to vector<8x128xf32>
    %1116 = arith.select %1112, %1115, %1106 : vector<8x128xi1>, vector<8x128xf32>
    %1117 = vector.broadcast %106 : f32 to vector<8x128xf32>
    %1118 = arith.select %1112, %1117, %1108 : vector<8x128xi1>, vector<8x128xf32>
    %1119 = vector.broadcast %107 : f32 to vector<8x128xf32>
    %1120 = arith.select %1112, %1119, %1110 : vector<8x128xi1>, vector<8x128xf32>
    %c11_i32_180 = arith.constant 11 : i32
    %1121 = vector.broadcast %c11_i32_180 : i32 to vector<8x128xi32>
    %1122 = arith.cmpi eq, %1006, %1121 : vector<8x128xi32>
    %1123 = vector.broadcast %108 : f32 to vector<8x128xf32>
    %1124 = arith.select %1122, %1123, %1114 : vector<8x128xi1>, vector<8x128xf32>
    %1125 = vector.broadcast %109 : f32 to vector<8x128xf32>
    %1126 = arith.select %1122, %1125, %1116 : vector<8x128xi1>, vector<8x128xf32>
    %1127 = vector.broadcast %110 : f32 to vector<8x128xf32>
    %1128 = arith.select %1122, %1127, %1118 : vector<8x128xi1>, vector<8x128xf32>
    %1129 = vector.broadcast %111 : f32 to vector<8x128xf32>
    %1130 = arith.select %1122, %1129, %1120 : vector<8x128xi1>, vector<8x128xf32>
    %c12_i32_181 = arith.constant 12 : i32
    %1131 = vector.broadcast %c12_i32_181 : i32 to vector<8x128xi32>
    %1132 = arith.cmpi eq, %1006, %1131 : vector<8x128xi32>
    %1133 = vector.broadcast %112 : f32 to vector<8x128xf32>
    %1134 = arith.select %1132, %1133, %1124 : vector<8x128xi1>, vector<8x128xf32>
    %1135 = vector.broadcast %113 : f32 to vector<8x128xf32>
    %1136 = arith.select %1132, %1135, %1126 : vector<8x128xi1>, vector<8x128xf32>
    %1137 = vector.broadcast %114 : f32 to vector<8x128xf32>
    %1138 = arith.select %1132, %1137, %1128 : vector<8x128xi1>, vector<8x128xf32>
    %1139 = vector.broadcast %115 : f32 to vector<8x128xf32>
    %1140 = arith.select %1132, %1139, %1130 : vector<8x128xi1>, vector<8x128xf32>
    %c13_i32_182 = arith.constant 13 : i32
    %1141 = vector.broadcast %c13_i32_182 : i32 to vector<8x128xi32>
    %1142 = arith.cmpi eq, %1006, %1141 : vector<8x128xi32>
    %1143 = vector.broadcast %116 : f32 to vector<8x128xf32>
    %1144 = arith.select %1142, %1143, %1134 : vector<8x128xi1>, vector<8x128xf32>
    %1145 = vector.broadcast %117 : f32 to vector<8x128xf32>
    %1146 = arith.select %1142, %1145, %1136 : vector<8x128xi1>, vector<8x128xf32>
    %1147 = vector.broadcast %118 : f32 to vector<8x128xf32>
    %1148 = arith.select %1142, %1147, %1138 : vector<8x128xi1>, vector<8x128xf32>
    %1149 = vector.broadcast %119 : f32 to vector<8x128xf32>
    %1150 = arith.select %1142, %1149, %1140 : vector<8x128xi1>, vector<8x128xf32>
    %c14_i32_183 = arith.constant 14 : i32
    %1151 = vector.broadcast %c14_i32_183 : i32 to vector<8x128xi32>
    %1152 = arith.cmpi eq, %1006, %1151 : vector<8x128xi32>
    %1153 = vector.broadcast %120 : f32 to vector<8x128xf32>
    %1154 = arith.select %1152, %1153, %1144 : vector<8x128xi1>, vector<8x128xf32>
    %1155 = vector.broadcast %121 : f32 to vector<8x128xf32>
    %1156 = arith.select %1152, %1155, %1146 : vector<8x128xi1>, vector<8x128xf32>
    %1157 = vector.broadcast %122 : f32 to vector<8x128xf32>
    %1158 = arith.select %1152, %1157, %1148 : vector<8x128xi1>, vector<8x128xf32>
    %1159 = vector.broadcast %123 : f32 to vector<8x128xf32>
    %1160 = arith.select %1152, %1159, %1150 : vector<8x128xi1>, vector<8x128xf32>
    %c15_i32_184 = arith.constant 15 : i32
    %1161 = vector.broadcast %c15_i32_184 : i32 to vector<8x128xi32>
    %1162 = arith.cmpi eq, %1006, %1161 : vector<8x128xi32>
    %1163 = vector.broadcast %124 : f32 to vector<8x128xf32>
    %1164 = arith.select %1162, %1163, %1154 : vector<8x128xi1>, vector<8x128xf32>
    %1165 = vector.broadcast %125 : f32 to vector<8x128xf32>
    %1166 = arith.select %1162, %1165, %1156 : vector<8x128xi1>, vector<8x128xf32>
    %1167 = vector.broadcast %126 : f32 to vector<8x128xf32>
    %1168 = arith.select %1162, %1167, %1158 : vector<8x128xi1>, vector<8x128xf32>
    %1169 = vector.broadcast %127 : f32 to vector<8x128xf32>
    %1170 = arith.select %1162, %1169, %1160 : vector<8x128xi1>, vector<8x128xf32>
    %c2_185 = arith.constant 2 : index
    %c0_186 = arith.constant 0 : index
    %c0_187 = arith.constant 0 : index
    %1171 = vector.load %arg4[%c2_185, %c0_186, %c0_187] : memref<4x8x128xi32, #tpu.memory_space<vmem>>, vector<1x8x128xi32>
    %1172 = vector.shape_cast %1171 : vector<1x8x128xi32> to vector<8x128xi32>
    %c0_i32_188 = arith.constant 0 : i32
    %1173 = vector.broadcast %c0_i32_188 : i32 to vector<8x128xi32>
    %1174 = arith.cmpi eq, %1172, %1173 : vector<8x128xi32>
    %cst_189 = arith.constant 0.000000e+00 : f32
    %1175 = vector.broadcast %64 : f32 to vector<8x128xf32>
    %1176 = vector.broadcast %cst_189 : f32 to vector<8x128xf32>
    %1177 = arith.select %1174, %1175, %1176 : vector<8x128xi1>, vector<8x128xf32>
    %cst_190 = arith.constant 0.000000e+00 : f32
    %1178 = vector.broadcast %65 : f32 to vector<8x128xf32>
    %1179 = vector.broadcast %cst_190 : f32 to vector<8x128xf32>
    %1180 = arith.select %1174, %1178, %1179 : vector<8x128xi1>, vector<8x128xf32>
    %cst_191 = arith.constant 0.000000e+00 : f32
    %1181 = vector.broadcast %66 : f32 to vector<8x128xf32>
    %1182 = vector.broadcast %cst_191 : f32 to vector<8x128xf32>
    %1183 = arith.select %1174, %1181, %1182 : vector<8x128xi1>, vector<8x128xf32>
    %cst_192 = arith.constant 0.000000e+00 : f32
    %1184 = vector.broadcast %67 : f32 to vector<8x128xf32>
    %1185 = vector.broadcast %cst_192 : f32 to vector<8x128xf32>
    %1186 = arith.select %1174, %1184, %1185 : vector<8x128xi1>, vector<8x128xf32>
    %c1_i32_193 = arith.constant 1 : i32
    %1187 = vector.broadcast %c1_i32_193 : i32 to vector<8x128xi32>
    %1188 = arith.cmpi eq, %1172, %1187 : vector<8x128xi32>
    %1189 = vector.broadcast %68 : f32 to vector<8x128xf32>
    %1190 = arith.select %1188, %1189, %1177 : vector<8x128xi1>, vector<8x128xf32>
    %1191 = vector.broadcast %69 : f32 to vector<8x128xf32>
    %1192 = arith.select %1188, %1191, %1180 : vector<8x128xi1>, vector<8x128xf32>
    %1193 = vector.broadcast %70 : f32 to vector<8x128xf32>
    %1194 = arith.select %1188, %1193, %1183 : vector<8x128xi1>, vector<8x128xf32>
    %1195 = vector.broadcast %71 : f32 to vector<8x128xf32>
    %1196 = arith.select %1188, %1195, %1186 : vector<8x128xi1>, vector<8x128xf32>
    %c2_i32_194 = arith.constant 2 : i32
    %1197 = vector.broadcast %c2_i32_194 : i32 to vector<8x128xi32>
    %1198 = arith.cmpi eq, %1172, %1197 : vector<8x128xi32>
    %1199 = vector.broadcast %72 : f32 to vector<8x128xf32>
    %1200 = arith.select %1198, %1199, %1190 : vector<8x128xi1>, vector<8x128xf32>
    %1201 = vector.broadcast %73 : f32 to vector<8x128xf32>
    %1202 = arith.select %1198, %1201, %1192 : vector<8x128xi1>, vector<8x128xf32>
    %1203 = vector.broadcast %74 : f32 to vector<8x128xf32>
    %1204 = arith.select %1198, %1203, %1194 : vector<8x128xi1>, vector<8x128xf32>
    %1205 = vector.broadcast %75 : f32 to vector<8x128xf32>
    %1206 = arith.select %1198, %1205, %1196 : vector<8x128xi1>, vector<8x128xf32>
    %c3_i32_195 = arith.constant 3 : i32
    %1207 = vector.broadcast %c3_i32_195 : i32 to vector<8x128xi32>
    %1208 = arith.cmpi eq, %1172, %1207 : vector<8x128xi32>
    %1209 = vector.broadcast %76 : f32 to vector<8x128xf32>
    %1210 = arith.select %1208, %1209, %1200 : vector<8x128xi1>, vector<8x128xf32>
    %1211 = vector.broadcast %77 : f32 to vector<8x128xf32>
    %1212 = arith.select %1208, %1211, %1202 : vector<8x128xi1>, vector<8x128xf32>
    %1213 = vector.broadcast %78 : f32 to vector<8x128xf32>
    %1214 = arith.select %1208, %1213, %1204 : vector<8x128xi1>, vector<8x128xf32>
    %1215 = vector.broadcast %79 : f32 to vector<8x128xf32>
    %1216 = arith.select %1208, %1215, %1206 : vector<8x128xi1>, vector<8x128xf32>
    %c4_i32_196 = arith.constant 4 : i32
    %1217 = vector.broadcast %c4_i32_196 : i32 to vector<8x128xi32>
    %1218 = arith.cmpi eq, %1172, %1217 : vector<8x128xi32>
    %1219 = vector.broadcast %80 : f32 to vector<8x128xf32>
    %1220 = arith.select %1218, %1219, %1210 : vector<8x128xi1>, vector<8x128xf32>
    %1221 = vector.broadcast %81 : f32 to vector<8x128xf32>
    %1222 = arith.select %1218, %1221, %1212 : vector<8x128xi1>, vector<8x128xf32>
    %1223 = vector.broadcast %82 : f32 to vector<8x128xf32>
    %1224 = arith.select %1218, %1223, %1214 : vector<8x128xi1>, vector<8x128xf32>
    %1225 = vector.broadcast %83 : f32 to vector<8x128xf32>
    %1226 = arith.select %1218, %1225, %1216 : vector<8x128xi1>, vector<8x128xf32>
    %c5_i32_197 = arith.constant 5 : i32
    %1227 = vector.broadcast %c5_i32_197 : i32 to vector<8x128xi32>
    %1228 = arith.cmpi eq, %1172, %1227 : vector<8x128xi32>
    %1229 = vector.broadcast %84 : f32 to vector<8x128xf32>
    %1230 = arith.select %1228, %1229, %1220 : vector<8x128xi1>, vector<8x128xf32>
    %1231 = vector.broadcast %85 : f32 to vector<8x128xf32>
    %1232 = arith.select %1228, %1231, %1222 : vector<8x128xi1>, vector<8x128xf32>
    %1233 = vector.broadcast %86 : f32 to vector<8x128xf32>
    %1234 = arith.select %1228, %1233, %1224 : vector<8x128xi1>, vector<8x128xf32>
    %1235 = vector.broadcast %87 : f32 to vector<8x128xf32>
    %1236 = arith.select %1228, %1235, %1226 : vector<8x128xi1>, vector<8x128xf32>
    %c6_i32_198 = arith.constant 6 : i32
    %1237 = vector.broadcast %c6_i32_198 : i32 to vector<8x128xi32>
    %1238 = arith.cmpi eq, %1172, %1237 : vector<8x128xi32>
    %1239 = vector.broadcast %88 : f32 to vector<8x128xf32>
    %1240 = arith.select %1238, %1239, %1230 : vector<8x128xi1>, vector<8x128xf32>
    %1241 = vector.broadcast %89 : f32 to vector<8x128xf32>
    %1242 = arith.select %1238, %1241, %1232 : vector<8x128xi1>, vector<8x128xf32>
    %1243 = vector.broadcast %90 : f32 to vector<8x128xf32>
    %1244 = arith.select %1238, %1243, %1234 : vector<8x128xi1>, vector<8x128xf32>
    %1245 = vector.broadcast %91 : f32 to vector<8x128xf32>
    %1246 = arith.select %1238, %1245, %1236 : vector<8x128xi1>, vector<8x128xf32>
    %c7_i32_199 = arith.constant 7 : i32
    %1247 = vector.broadcast %c7_i32_199 : i32 to vector<8x128xi32>
    %1248 = arith.cmpi eq, %1172, %1247 : vector<8x128xi32>
    %1249 = vector.broadcast %92 : f32 to vector<8x128xf32>
    %1250 = arith.select %1248, %1249, %1240 : vector<8x128xi1>, vector<8x128xf32>
    %1251 = vector.broadcast %93 : f32 to vector<8x128xf32>
    %1252 = arith.select %1248, %1251, %1242 : vector<8x128xi1>, vector<8x128xf32>
    %1253 = vector.broadcast %94 : f32 to vector<8x128xf32>
    %1254 = arith.select %1248, %1253, %1244 : vector<8x128xi1>, vector<8x128xf32>
    %1255 = vector.broadcast %95 : f32 to vector<8x128xf32>
    %1256 = arith.select %1248, %1255, %1246 : vector<8x128xi1>, vector<8x128xf32>
    %c8_i32_200 = arith.constant 8 : i32
    %1257 = vector.broadcast %c8_i32_200 : i32 to vector<8x128xi32>
    %1258 = arith.cmpi eq, %1172, %1257 : vector<8x128xi32>
    %1259 = vector.broadcast %96 : f32 to vector<8x128xf32>
    %1260 = arith.select %1258, %1259, %1250 : vector<8x128xi1>, vector<8x128xf32>
    %1261 = vector.broadcast %97 : f32 to vector<8x128xf32>
    %1262 = arith.select %1258, %1261, %1252 : vector<8x128xi1>, vector<8x128xf32>
    %1263 = vector.broadcast %98 : f32 to vector<8x128xf32>
    %1264 = arith.select %1258, %1263, %1254 : vector<8x128xi1>, vector<8x128xf32>
    %1265 = vector.broadcast %99 : f32 to vector<8x128xf32>
    %1266 = arith.select %1258, %1265, %1256 : vector<8x128xi1>, vector<8x128xf32>
    %c9_i32_201 = arith.constant 9 : i32
    %1267 = vector.broadcast %c9_i32_201 : i32 to vector<8x128xi32>
    %1268 = arith.cmpi eq, %1172, %1267 : vector<8x128xi32>
    %1269 = vector.broadcast %100 : f32 to vector<8x128xf32>
    %1270 = arith.select %1268, %1269, %1260 : vector<8x128xi1>, vector<8x128xf32>
    %1271 = vector.broadcast %101 : f32 to vector<8x128xf32>
    %1272 = arith.select %1268, %1271, %1262 : vector<8x128xi1>, vector<8x128xf32>
    %1273 = vector.broadcast %102 : f32 to vector<8x128xf32>
    %1274 = arith.select %1268, %1273, %1264 : vector<8x128xi1>, vector<8x128xf32>
    %1275 = vector.broadcast %103 : f32 to vector<8x128xf32>
    %1276 = arith.select %1268, %1275, %1266 : vector<8x128xi1>, vector<8x128xf32>
    %c10_i32_202 = arith.constant 10 : i32
    %1277 = vector.broadcast %c10_i32_202 : i32 to vector<8x128xi32>
    %1278 = arith.cmpi eq, %1172, %1277 : vector<8x128xi32>
    %1279 = vector.broadcast %104 : f32 to vector<8x128xf32>
    %1280 = arith.select %1278, %1279, %1270 : vector<8x128xi1>, vector<8x128xf32>
    %1281 = vector.broadcast %105 : f32 to vector<8x128xf32>
    %1282 = arith.select %1278, %1281, %1272 : vector<8x128xi1>, vector<8x128xf32>
    %1283 = vector.broadcast %106 : f32 to vector<8x128xf32>
    %1284 = arith.select %1278, %1283, %1274 : vector<8x128xi1>, vector<8x128xf32>
    %1285 = vector.broadcast %107 : f32 to vector<8x128xf32>
    %1286 = arith.select %1278, %1285, %1276 : vector<8x128xi1>, vector<8x128xf32>
    %c11_i32_203 = arith.constant 11 : i32
    %1287 = vector.broadcast %c11_i32_203 : i32 to vector<8x128xi32>
    %1288 = arith.cmpi eq, %1172, %1287 : vector<8x128xi32>
    %1289 = vector.broadcast %108 : f32 to vector<8x128xf32>
    %1290 = arith.select %1288, %1289, %1280 : vector<8x128xi1>, vector<8x128xf32>
    %1291 = vector.broadcast %109 : f32 to vector<8x128xf32>
    %1292 = arith.select %1288, %1291, %1282 : vector<8x128xi1>, vector<8x128xf32>
    %1293 = vector.broadcast %110 : f32 to vector<8x128xf32>
    %1294 = arith.select %1288, %1293, %1284 : vector<8x128xi1>, vector<8x128xf32>
    %1295 = vector.broadcast %111 : f32 to vector<8x128xf32>
    %1296 = arith.select %1288, %1295, %1286 : vector<8x128xi1>, vector<8x128xf32>
    %c12_i32_204 = arith.constant 12 : i32
    %1297 = vector.broadcast %c12_i32_204 : i32 to vector<8x128xi32>
    %1298 = arith.cmpi eq, %1172, %1297 : vector<8x128xi32>
    %1299 = vector.broadcast %112 : f32 to vector<8x128xf32>
    %1300 = arith.select %1298, %1299, %1290 : vector<8x128xi1>, vector<8x128xf32>
    %1301 = vector.broadcast %113 : f32 to vector<8x128xf32>
    %1302 = arith.select %1298, %1301, %1292 : vector<8x128xi1>, vector<8x128xf32>
    %1303 = vector.broadcast %114 : f32 to vector<8x128xf32>
    %1304 = arith.select %1298, %1303, %1294 : vector<8x128xi1>, vector<8x128xf32>
    %1305 = vector.broadcast %115 : f32 to vector<8x128xf32>
    %1306 = arith.select %1298, %1305, %1296 : vector<8x128xi1>, vector<8x128xf32>
    %c13_i32_205 = arith.constant 13 : i32
    %1307 = vector.broadcast %c13_i32_205 : i32 to vector<8x128xi32>
    %1308 = arith.cmpi eq, %1172, %1307 : vector<8x128xi32>
    %1309 = vector.broadcast %116 : f32 to vector<8x128xf32>
    %1310 = arith.select %1308, %1309, %1300 : vector<8x128xi1>, vector<8x128xf32>
    %1311 = vector.broadcast %117 : f32 to vector<8x128xf32>
    %1312 = arith.select %1308, %1311, %1302 : vector<8x128xi1>, vector<8x128xf32>
    %1313 = vector.broadcast %118 : f32 to vector<8x128xf32>
    %1314 = arith.select %1308, %1313, %1304 : vector<8x128xi1>, vector<8x128xf32>
    %1315 = vector.broadcast %119 : f32 to vector<8x128xf32>
    %1316 = arith.select %1308, %1315, %1306 : vector<8x128xi1>, vector<8x128xf32>
    %c14_i32_206 = arith.constant 14 : i32
    %1317 = vector.broadcast %c14_i32_206 : i32 to vector<8x128xi32>
    %1318 = arith.cmpi eq, %1172, %1317 : vector<8x128xi32>
    %1319 = vector.broadcast %120 : f32 to vector<8x128xf32>
    %1320 = arith.select %1318, %1319, %1310 : vector<8x128xi1>, vector<8x128xf32>
    %1321 = vector.broadcast %121 : f32 to vector<8x128xf32>
    %1322 = arith.select %1318, %1321, %1312 : vector<8x128xi1>, vector<8x128xf32>
    %1323 = vector.broadcast %122 : f32 to vector<8x128xf32>
    %1324 = arith.select %1318, %1323, %1314 : vector<8x128xi1>, vector<8x128xf32>
    %1325 = vector.broadcast %123 : f32 to vector<8x128xf32>
    %1326 = arith.select %1318, %1325, %1316 : vector<8x128xi1>, vector<8x128xf32>
    %c15_i32_207 = arith.constant 15 : i32
    %1327 = vector.broadcast %c15_i32_207 : i32 to vector<8x128xi32>
    %1328 = arith.cmpi eq, %1172, %1327 : vector<8x128xi32>
    %1329 = vector.broadcast %124 : f32 to vector<8x128xf32>
    %1330 = arith.select %1328, %1329, %1320 : vector<8x128xi1>, vector<8x128xf32>
    %1331 = vector.broadcast %125 : f32 to vector<8x128xf32>
    %1332 = arith.select %1328, %1331, %1322 : vector<8x128xi1>, vector<8x128xf32>
    %1333 = vector.broadcast %126 : f32 to vector<8x128xf32>
    %1334 = arith.select %1328, %1333, %1324 : vector<8x128xi1>, vector<8x128xf32>
    %1335 = vector.broadcast %127 : f32 to vector<8x128xf32>
    %1336 = arith.select %1328, %1335, %1326 : vector<8x128xi1>, vector<8x128xf32>
    %c3_208 = arith.constant 3 : index
    %c0_209 = arith.constant 0 : index
    %c0_210 = arith.constant 0 : index
    %1337 = vector.load %arg4[%c3_208, %c0_209, %c0_210] : memref<4x8x128xi32, #tpu.memory_space<vmem>>, vector<1x8x128xi32>
    %1338 = vector.shape_cast %1337 : vector<1x8x128xi32> to vector<8x128xi32>
    %c0_i32_211 = arith.constant 0 : i32
    %1339 = vector.broadcast %c0_i32_211 : i32 to vector<8x128xi32>
    %1340 = arith.cmpi eq, %1338, %1339 : vector<8x128xi32>
    %cst_212 = arith.constant 0.000000e+00 : f32
    %1341 = vector.broadcast %64 : f32 to vector<8x128xf32>
    %1342 = vector.broadcast %cst_212 : f32 to vector<8x128xf32>
    %1343 = arith.select %1340, %1341, %1342 : vector<8x128xi1>, vector<8x128xf32>
    %cst_213 = arith.constant 0.000000e+00 : f32
    %1344 = vector.broadcast %65 : f32 to vector<8x128xf32>
    %1345 = vector.broadcast %cst_213 : f32 to vector<8x128xf32>
    %1346 = arith.select %1340, %1344, %1345 : vector<8x128xi1>, vector<8x128xf32>
    %cst_214 = arith.constant 0.000000e+00 : f32
    %1347 = vector.broadcast %66 : f32 to vector<8x128xf32>
    %1348 = vector.broadcast %cst_214 : f32 to vector<8x128xf32>
    %1349 = arith.select %1340, %1347, %1348 : vector<8x128xi1>, vector<8x128xf32>
    %cst_215 = arith.constant 0.000000e+00 : f32
    %1350 = vector.broadcast %67 : f32 to vector<8x128xf32>
    %1351 = vector.broadcast %cst_215 : f32 to vector<8x128xf32>
    %1352 = arith.select %1340, %1350, %1351 : vector<8x128xi1>, vector<8x128xf32>
    %c1_i32_216 = arith.constant 1 : i32
    %1353 = vector.broadcast %c1_i32_216 : i32 to vector<8x128xi32>
    %1354 = arith.cmpi eq, %1338, %1353 : vector<8x128xi32>
    %1355 = vector.broadcast %68 : f32 to vector<8x128xf32>
    %1356 = arith.select %1354, %1355, %1343 : vector<8x128xi1>, vector<8x128xf32>
    %1357 = vector.broadcast %69 : f32 to vector<8x128xf32>
    %1358 = arith.select %1354, %1357, %1346 : vector<8x128xi1>, vector<8x128xf32>
    %1359 = vector.broadcast %70 : f32 to vector<8x128xf32>
    %1360 = arith.select %1354, %1359, %1349 : vector<8x128xi1>, vector<8x128xf32>
    %1361 = vector.broadcast %71 : f32 to vector<8x128xf32>
    %1362 = arith.select %1354, %1361, %1352 : vector<8x128xi1>, vector<8x128xf32>
    %c2_i32_217 = arith.constant 2 : i32
    %1363 = vector.broadcast %c2_i32_217 : i32 to vector<8x128xi32>
    %1364 = arith.cmpi eq, %1338, %1363 : vector<8x128xi32>
    %1365 = vector.broadcast %72 : f32 to vector<8x128xf32>
    %1366 = arith.select %1364, %1365, %1356 : vector<8x128xi1>, vector<8x128xf32>
    %1367 = vector.broadcast %73 : f32 to vector<8x128xf32>
    %1368 = arith.select %1364, %1367, %1358 : vector<8x128xi1>, vector<8x128xf32>
    %1369 = vector.broadcast %74 : f32 to vector<8x128xf32>
    %1370 = arith.select %1364, %1369, %1360 : vector<8x128xi1>, vector<8x128xf32>
    %1371 = vector.broadcast %75 : f32 to vector<8x128xf32>
    %1372 = arith.select %1364, %1371, %1362 : vector<8x128xi1>, vector<8x128xf32>
    %c3_i32_218 = arith.constant 3 : i32
    %1373 = vector.broadcast %c3_i32_218 : i32 to vector<8x128xi32>
    %1374 = arith.cmpi eq, %1338, %1373 : vector<8x128xi32>
    %1375 = vector.broadcast %76 : f32 to vector<8x128xf32>
    %1376 = arith.select %1374, %1375, %1366 : vector<8x128xi1>, vector<8x128xf32>
    %1377 = vector.broadcast %77 : f32 to vector<8x128xf32>
    %1378 = arith.select %1374, %1377, %1368 : vector<8x128xi1>, vector<8x128xf32>
    %1379 = vector.broadcast %78 : f32 to vector<8x128xf32>
    %1380 = arith.select %1374, %1379, %1370 : vector<8x128xi1>, vector<8x128xf32>
    %1381 = vector.broadcast %79 : f32 to vector<8x128xf32>
    %1382 = arith.select %1374, %1381, %1372 : vector<8x128xi1>, vector<8x128xf32>
    %c4_i32_219 = arith.constant 4 : i32
    %1383 = vector.broadcast %c4_i32_219 : i32 to vector<8x128xi32>
    %1384 = arith.cmpi eq, %1338, %1383 : vector<8x128xi32>
    %1385 = vector.broadcast %80 : f32 to vector<8x128xf32>
    %1386 = arith.select %1384, %1385, %1376 : vector<8x128xi1>, vector<8x128xf32>
    %1387 = vector.broadcast %81 : f32 to vector<8x128xf32>
    %1388 = arith.select %1384, %1387, %1378 : vector<8x128xi1>, vector<8x128xf32>
    %1389 = vector.broadcast %82 : f32 to vector<8x128xf32>
    %1390 = arith.select %1384, %1389, %1380 : vector<8x128xi1>, vector<8x128xf32>
    %1391 = vector.broadcast %83 : f32 to vector<8x128xf32>
    %1392 = arith.select %1384, %1391, %1382 : vector<8x128xi1>, vector<8x128xf32>
    %c5_i32_220 = arith.constant 5 : i32
    %1393 = vector.broadcast %c5_i32_220 : i32 to vector<8x128xi32>
    %1394 = arith.cmpi eq, %1338, %1393 : vector<8x128xi32>
    %1395 = vector.broadcast %84 : f32 to vector<8x128xf32>
    %1396 = arith.select %1394, %1395, %1386 : vector<8x128xi1>, vector<8x128xf32>
    %1397 = vector.broadcast %85 : f32 to vector<8x128xf32>
    %1398 = arith.select %1394, %1397, %1388 : vector<8x128xi1>, vector<8x128xf32>
    %1399 = vector.broadcast %86 : f32 to vector<8x128xf32>
    %1400 = arith.select %1394, %1399, %1390 : vector<8x128xi1>, vector<8x128xf32>
    %1401 = vector.broadcast %87 : f32 to vector<8x128xf32>
    %1402 = arith.select %1394, %1401, %1392 : vector<8x128xi1>, vector<8x128xf32>
    %c6_i32_221 = arith.constant 6 : i32
    %1403 = vector.broadcast %c6_i32_221 : i32 to vector<8x128xi32>
    %1404 = arith.cmpi eq, %1338, %1403 : vector<8x128xi32>
    %1405 = vector.broadcast %88 : f32 to vector<8x128xf32>
    %1406 = arith.select %1404, %1405, %1396 : vector<8x128xi1>, vector<8x128xf32>
    %1407 = vector.broadcast %89 : f32 to vector<8x128xf32>
    %1408 = arith.select %1404, %1407, %1398 : vector<8x128xi1>, vector<8x128xf32>
    %1409 = vector.broadcast %90 : f32 to vector<8x128xf32>
    %1410 = arith.select %1404, %1409, %1400 : vector<8x128xi1>, vector<8x128xf32>
    %1411 = vector.broadcast %91 : f32 to vector<8x128xf32>
    %1412 = arith.select %1404, %1411, %1402 : vector<8x128xi1>, vector<8x128xf32>
    %c7_i32_222 = arith.constant 7 : i32
    %1413 = vector.broadcast %c7_i32_222 : i32 to vector<8x128xi32>
    %1414 = arith.cmpi eq, %1338, %1413 : vector<8x128xi32>
    %1415 = vector.broadcast %92 : f32 to vector<8x128xf32>
    %1416 = arith.select %1414, %1415, %1406 : vector<8x128xi1>, vector<8x128xf32>
    %1417 = vector.broadcast %93 : f32 to vector<8x128xf32>
    %1418 = arith.select %1414, %1417, %1408 : vector<8x128xi1>, vector<8x128xf32>
    %1419 = vector.broadcast %94 : f32 to vector<8x128xf32>
    %1420 = arith.select %1414, %1419, %1410 : vector<8x128xi1>, vector<8x128xf32>
    %1421 = vector.broadcast %95 : f32 to vector<8x128xf32>
    %1422 = arith.select %1414, %1421, %1412 : vector<8x128xi1>, vector<8x128xf32>
    %c8_i32_223 = arith.constant 8 : i32
    %1423 = vector.broadcast %c8_i32_223 : i32 to vector<8x128xi32>
    %1424 = arith.cmpi eq, %1338, %1423 : vector<8x128xi32>
    %1425 = vector.broadcast %96 : f32 to vector<8x128xf32>
    %1426 = arith.select %1424, %1425, %1416 : vector<8x128xi1>, vector<8x128xf32>
    %1427 = vector.broadcast %97 : f32 to vector<8x128xf32>
    %1428 = arith.select %1424, %1427, %1418 : vector<8x128xi1>, vector<8x128xf32>
    %1429 = vector.broadcast %98 : f32 to vector<8x128xf32>
    %1430 = arith.select %1424, %1429, %1420 : vector<8x128xi1>, vector<8x128xf32>
    %1431 = vector.broadcast %99 : f32 to vector<8x128xf32>
    %1432 = arith.select %1424, %1431, %1422 : vector<8x128xi1>, vector<8x128xf32>
    %c9_i32_224 = arith.constant 9 : i32
    %1433 = vector.broadcast %c9_i32_224 : i32 to vector<8x128xi32>
    %1434 = arith.cmpi eq, %1338, %1433 : vector<8x128xi32>
    %1435 = vector.broadcast %100 : f32 to vector<8x128xf32>
    %1436 = arith.select %1434, %1435, %1426 : vector<8x128xi1>, vector<8x128xf32>
    %1437 = vector.broadcast %101 : f32 to vector<8x128xf32>
    %1438 = arith.select %1434, %1437, %1428 : vector<8x128xi1>, vector<8x128xf32>
    %1439 = vector.broadcast %102 : f32 to vector<8x128xf32>
    %1440 = arith.select %1434, %1439, %1430 : vector<8x128xi1>, vector<8x128xf32>
    %1441 = vector.broadcast %103 : f32 to vector<8x128xf32>
    %1442 = arith.select %1434, %1441, %1432 : vector<8x128xi1>, vector<8x128xf32>
    %c10_i32_225 = arith.constant 10 : i32
    %1443 = vector.broadcast %c10_i32_225 : i32 to vector<8x128xi32>
    %1444 = arith.cmpi eq, %1338, %1443 : vector<8x128xi32>
    %1445 = vector.broadcast %104 : f32 to vector<8x128xf32>
    %1446 = arith.select %1444, %1445, %1436 : vector<8x128xi1>, vector<8x128xf32>
    %1447 = vector.broadcast %105 : f32 to vector<8x128xf32>
    %1448 = arith.select %1444, %1447, %1438 : vector<8x128xi1>, vector<8x128xf32>
    %1449 = vector.broadcast %106 : f32 to vector<8x128xf32>
    %1450 = arith.select %1444, %1449, %1440 : vector<8x128xi1>, vector<8x128xf32>
    %1451 = vector.broadcast %107 : f32 to vector<8x128xf32>
    %1452 = arith.select %1444, %1451, %1442 : vector<8x128xi1>, vector<8x128xf32>
    %c11_i32_226 = arith.constant 11 : i32
    %1453 = vector.broadcast %c11_i32_226 : i32 to vector<8x128xi32>
    %1454 = arith.cmpi eq, %1338, %1453 : vector<8x128xi32>
    %1455 = vector.broadcast %108 : f32 to vector<8x128xf32>
    %1456 = arith.select %1454, %1455, %1446 : vector<8x128xi1>, vector<8x128xf32>
    %1457 = vector.broadcast %109 : f32 to vector<8x128xf32>
    %1458 = arith.select %1454, %1457, %1448 : vector<8x128xi1>, vector<8x128xf32>
    %1459 = vector.broadcast %110 : f32 to vector<8x128xf32>
    %1460 = arith.select %1454, %1459, %1450 : vector<8x128xi1>, vector<8x128xf32>
    %1461 = vector.broadcast %111 : f32 to vector<8x128xf32>
    %1462 = arith.select %1454, %1461, %1452 : vector<8x128xi1>, vector<8x128xf32>
    %c12_i32_227 = arith.constant 12 : i32
    %1463 = vector.broadcast %c12_i32_227 : i32 to vector<8x128xi32>
    %1464 = arith.cmpi eq, %1338, %1463 : vector<8x128xi32>
    %1465 = vector.broadcast %112 : f32 to vector<8x128xf32>
    %1466 = arith.select %1464, %1465, %1456 : vector<8x128xi1>, vector<8x128xf32>
    %1467 = vector.broadcast %113 : f32 to vector<8x128xf32>
    %1468 = arith.select %1464, %1467, %1458 : vector<8x128xi1>, vector<8x128xf32>
    %1469 = vector.broadcast %114 : f32 to vector<8x128xf32>
    %1470 = arith.select %1464, %1469, %1460 : vector<8x128xi1>, vector<8x128xf32>
    %1471 = vector.broadcast %115 : f32 to vector<8x128xf32>
    %1472 = arith.select %1464, %1471, %1462 : vector<8x128xi1>, vector<8x128xf32>
    %c13_i32_228 = arith.constant 13 : i32
    %1473 = vector.broadcast %c13_i32_228 : i32 to vector<8x128xi32>
    %1474 = arith.cmpi eq, %1338, %1473 : vector<8x128xi32>
    %1475 = vector.broadcast %116 : f32 to vector<8x128xf32>
    %1476 = arith.select %1474, %1475, %1466 : vector<8x128xi1>, vector<8x128xf32>
    %1477 = vector.broadcast %117 : f32 to vector<8x128xf32>
    %1478 = arith.select %1474, %1477, %1468 : vector<8x128xi1>, vector<8x128xf32>
    %1479 = vector.broadcast %118 : f32 to vector<8x128xf32>
    %1480 = arith.select %1474, %1479, %1470 : vector<8x128xi1>, vector<8x128xf32>
    %1481 = vector.broadcast %119 : f32 to vector<8x128xf32>
    %1482 = arith.select %1474, %1481, %1472 : vector<8x128xi1>, vector<8x128xf32>
    %c14_i32_229 = arith.constant 14 : i32
    %1483 = vector.broadcast %c14_i32_229 : i32 to vector<8x128xi32>
    %1484 = arith.cmpi eq, %1338, %1483 : vector<8x128xi32>
    %1485 = vector.broadcast %120 : f32 to vector<8x128xf32>
    %1486 = arith.select %1484, %1485, %1476 : vector<8x128xi1>, vector<8x128xf32>
    %1487 = vector.broadcast %121 : f32 to vector<8x128xf32>
    %1488 = arith.select %1484, %1487, %1478 : vector<8x128xi1>, vector<8x128xf32>
    %1489 = vector.broadcast %122 : f32 to vector<8x128xf32>
    %1490 = arith.select %1484, %1489, %1480 : vector<8x128xi1>, vector<8x128xf32>
    %1491 = vector.broadcast %123 : f32 to vector<8x128xf32>
    %1492 = arith.select %1484, %1491, %1482 : vector<8x128xi1>, vector<8x128xf32>
    %c15_i32_230 = arith.constant 15 : i32
    %1493 = vector.broadcast %c15_i32_230 : i32 to vector<8x128xi32>
    %1494 = arith.cmpi eq, %1338, %1493 : vector<8x128xi32>
    %1495 = vector.broadcast %124 : f32 to vector<8x128xf32>
    %1496 = arith.select %1494, %1495, %1486 : vector<8x128xi1>, vector<8x128xf32>
    %1497 = vector.broadcast %125 : f32 to vector<8x128xf32>
    %1498 = arith.select %1494, %1497, %1488 : vector<8x128xi1>, vector<8x128xf32>
    %1499 = vector.broadcast %126 : f32 to vector<8x128xf32>
    %1500 = arith.select %1494, %1499, %1490 : vector<8x128xi1>, vector<8x128xf32>
    %1501 = vector.broadcast %127 : f32 to vector<8x128xf32>
    %1502 = arith.select %1494, %1501, %1492 : vector<8x128xi1>, vector<8x128xf32>
    %1503 = arith.mulf %998, %1166 : vector<8x128xf32>
    %1504 = arith.mulf %1000, %1164 : vector<8x128xf32>
    %1505 = arith.subf %1503, %1504 : vector<8x128xf32>
    %1506 = arith.mulf %998, %1168 : vector<8x128xf32>
    %1507 = arith.mulf %1002, %1164 : vector<8x128xf32>
    %1508 = arith.subf %1506, %1507 : vector<8x128xf32>
    %1509 = arith.mulf %998, %1170 : vector<8x128xf32>
    %1510 = arith.mulf %1004, %1164 : vector<8x128xf32>
    %1511 = arith.subf %1509, %1510 : vector<8x128xf32>
    %1512 = arith.mulf %1000, %1168 : vector<8x128xf32>
    %1513 = arith.mulf %1002, %1166 : vector<8x128xf32>
    %1514 = arith.subf %1512, %1513 : vector<8x128xf32>
    %1515 = arith.mulf %1000, %1170 : vector<8x128xf32>
    %1516 = arith.mulf %1004, %1166 : vector<8x128xf32>
    %1517 = arith.subf %1515, %1516 : vector<8x128xf32>
    %1518 = arith.mulf %1002, %1170 : vector<8x128xf32>
    %1519 = arith.mulf %1004, %1168 : vector<8x128xf32>
    %1520 = arith.subf %1518, %1519 : vector<8x128xf32>
    %1521 = arith.mulf %1330, %1498 : vector<8x128xf32>
    %1522 = arith.mulf %1332, %1496 : vector<8x128xf32>
    %1523 = arith.subf %1521, %1522 : vector<8x128xf32>
    %1524 = arith.mulf %1330, %1500 : vector<8x128xf32>
    %1525 = arith.mulf %1334, %1496 : vector<8x128xf32>
    %1526 = arith.subf %1524, %1525 : vector<8x128xf32>
    %1527 = arith.mulf %1330, %1502 : vector<8x128xf32>
    %1528 = arith.mulf %1336, %1496 : vector<8x128xf32>
    %1529 = arith.subf %1527, %1528 : vector<8x128xf32>
    %1530 = arith.mulf %1332, %1500 : vector<8x128xf32>
    %1531 = arith.mulf %1334, %1498 : vector<8x128xf32>
    %1532 = arith.subf %1530, %1531 : vector<8x128xf32>
    %1533 = arith.mulf %1332, %1502 : vector<8x128xf32>
    %1534 = arith.mulf %1336, %1498 : vector<8x128xf32>
    %1535 = arith.subf %1533, %1534 : vector<8x128xf32>
    %1536 = arith.mulf %1334, %1502 : vector<8x128xf32>
    %1537 = arith.mulf %1336, %1500 : vector<8x128xf32>
    %1538 = arith.subf %1536, %1537 : vector<8x128xf32>
    %1539 = arith.mulf %1505, %1538 : vector<8x128xf32>
    %1540 = arith.mulf %1508, %1535 : vector<8x128xf32>
    %1541 = arith.subf %1539, %1540 : vector<8x128xf32>
    %1542 = arith.mulf %1511, %1532 : vector<8x128xf32>
    %1543 = arith.addf %1541, %1542 : vector<8x128xf32>
    %1544 = arith.mulf %1514, %1529 : vector<8x128xf32>
    %1545 = arith.addf %1543, %1544 : vector<8x128xf32>
    %1546 = arith.mulf %1517, %1526 : vector<8x128xf32>
    %1547 = arith.subf %1545, %1546 : vector<8x128xf32>
    %1548 = arith.mulf %1520, %1523 : vector<8x128xf32>
    %1549 = arith.addf %1547, %1548 : vector<8x128xf32>
    %1550 = arith.mulf %838, %1549 : vector<8x128xf32>
    %c0_231 = arith.constant 0 : index
    %c0_232 = arith.constant 0 : index
    %1551 = vector.load %arg5[%c0_231, %c0_232] : memref<8x128xf32, #tpu.memory_space<vmem>>, vector<8x128xf32>
    tpu.vector_store %arg5[%c0_231, %c0_232], %1550 {strides = array<i32>} : memref<8x128xf32, #tpu.memory_space<vmem>>, vector<8x128xf32>,
    return
  }
  func.func @transform_0(%arg0: i32) -> i32 {
    %c0_i32 = arith.constant 0 : i32
    %c0_i32_0 = arith.constant 0 : i32
    return %c0_i32 : i32
  }
  func.func @transform_1(%arg0: i32) -> i32 {
    %c0_i32 = arith.constant 0 : i32
    %c0_i32_0 = arith.constant 0 : i32
    return %c0_i32 : i32
  }
  func.func @transform_2(%arg0: i32) -> (i32, i32, i32) {
    %c0_i32 = arith.constant 0 : i32
    %c0_i32_0 = arith.constant 0 : i32
    %c0_i32_1 = arith.constant 0 : i32
    return %c0_i32, %arg0, %c0_i32_0 : i32, i32, i32
  }
  func.func @transform_3(%arg0: i32) -> (i32, i32, i32) {
    %c0_i32 = arith.constant 0 : i32
    %c0_i32_0 = arith.constant 0 : i32
    %c0_i32_1 = arith.constant 0 : i32
    return %c0_i32, %arg0, %c0_i32_0 : i32, i32, i32
  }
  func.func @transform_4(%arg0: i32) -> (i32, i32) {
    %c0_i32 = arith.constant 0 : i32
    %c0_i32_0 = arith.constant 0 : i32
    return %arg0, %c0_i32 : i32, i32
  }
}

</mosaic_0001>

<llo_original>
// kernel: tpu_custom_call.1
$region0: #{tpu_custom_call.1}
  #allocation0 [shape = 'u32[]', space=smem, size = 0x4, offset = 0x4, fixed_abs, tag = 'smem constant byte address 0x4 - core index']
  #allocation1 [shape = 'u32[144,128]{1,0:T(1,128)}', space=vmem, size = 0x12000, scoped, tag = 'internal scratch']
  %s0 = inlined_call_operand.hbm [shape: f32[64], index: 0, kind: input, shape index: {}]
  %s1 = inlined_call_operand.vmem [shape: f32[64], index: 1, kind: input, shape index: {}]
  %s2 = inlined_call_operand.hbm [shape: s32[4,8,128], index: 2, kind: input, shape index: {}]
  %s3 = inlined_call_operand.hbm [shape: s32[4,8,128], index: 3, kind: input, shape index: {}]
  %s4 = inlined_call_operand.hbm [shape: f32[8,128], index: 4, kind: output, shape index: {}]
  %s5 = sld [smem:[#allocation0]]
  $region42: #{tpu_custom_call.1} parent=0
    _
  %s7 = ssub.s32 1, %s5
  %s8 = scalar_select 0, %s7, %s5
  $region1: #{tpu_custom_call.1} parent=0
    #allocation2 [shape = 'u8[512]{0}', space=smem, size = 0x200, scoped, tag = 'input window, operand 0, single buffered']
    #allocation3 [shape = 's32[1]{0}', space=sflag, size = 0x4, scoped, tag = 'scoped memory for tpu_custom_call.1']
    #allocation4 [shape = 's32[1]{0}', space=sflag, size = 0x4, scoped, tag = 'scoped memory for tpu_custom_call.1']
    #allocation5 [shape = 's32[1]{0}', space=sflag, size = 0x4, scoped, tag = 'scoped memory for tpu_custom_call.1']
    #allocation6 [shape = 's32[1]{0}', space=sflag, size = 0x4, scoped, tag = 'scoped memory for tpu_custom_call.1']
    #allocation7 [shape = 'u8[512]{0}', space=smem, size = 0x200, scoped, tag = 'input window, operand 1, single buffered']
    #allocation8 [shape = 'u8[16384]{0}', space=vmem, size = 0x4000, scoped, tag = 'input window, operand 2, single buffered']
    #allocation9 [shape = 'u8[16384]{0}', space=vmem, size = 0x4000, scoped, tag = 'input window, operand 3, single buffered']
    #allocation10 [shape = 's32[1]{0}', space=sflag, size = 0x4, scoped, tag = 'scoped memory for tpu_custom_call.1']
    #allocation11 [shape = 'u8[4096]{0}', space=vmem, size = 0x1000, scoped, tag = 'output window, operand 0, single buffered']
    %9 = vsyncpa [#allocation5], 0
    %10 = vsyncpa [#allocation6], 0
    %11 = vsyncpa [#allocation3], 0
    %12 = vsyncpa [#allocation10], 0
    %13 = vsyncpa [#allocation4], 0
    // Predicated region
    $region2: #{tpu_custom_call.1} parent=1 // pred_check
      _
    $region3: #{tpu_custom_call.1} parent=1 // pred_check_branch
      %15 = sbr.rel (0) target = $region5
    $region4: #{tpu_custom_call.1} parent=1 // pred_region
      %s17 = ssub.s32 16, 16
      %18 = vsyncadd [#allocation5], %s17
      %21 = dma.hbm_to_smem %s0, 16, [#allocation2], [#allocation5]
    $region5: #{tpu_custom_call.1} parent=1 // pred_fallthru
      _
    // Predicated region
    $region6: #{tpu_custom_call.1} parent=1 // pred_check
      _
    $region7: #{tpu_custom_call.1} parent=1 // pred_check_branch
      %23 = sbr.rel (0) target = $region9
    $region8: #{tpu_custom_call.1} parent=1 // pred_region
      %s25 = ssub.s32 16, 16
      %26 = vsyncadd [#allocation6], %s25
      %s28 = sshll.u32 %s1, 4
      %s29 = int_to_ptr.vmem [resolvable:$true] %s28
      %31 = dma.vmem_to_smem %s29, 16, [#allocation7], [#allocation6]
    $region9: #{tpu_custom_call.1} parent=1 // pred_fallthru
      _
    // Predicated region
    $region10: #{tpu_custom_call.1} parent=1 // pred_check
      _
    $region11: #{tpu_custom_call.1} parent=1 // pred_check_branch
      %33 = sbr.rel (0) target = $region13
    $region12: #{tpu_custom_call.1} parent=1 // pred_region
      %s35 = ssub.s32 512, 512
      %36 = vsyncadd [#allocation3], %s35
      %s37 = sshll.u32 [#allocation8], 4
      %s38 = int_to_ptr.vmem [resolvable:$true] %s37
      %43 = dma.hbm_to_vmem [thread:$0]  %s2, 512, %s38, [#allocation3], 128, 128, 8
    $region13: #{tpu_custom_call.1} parent=1 // pred_fallthru
      _
    // Predicated region
    $region14: #{tpu_custom_call.1} parent=1 // pred_check
      _
    $region15: #{tpu_custom_call.1} parent=1 // pred_check_branch
      %45 = sbr.rel (0) target = $region17
    $region16: #{tpu_custom_call.1} parent=1 // pred_region
      %s47 = ssub.s32 512, 512
      %48 = vsyncadd [#allocation10], %s47
      %s49 = sshll.u32 [#allocation9], 4
      %s50 = int_to_ptr.vmem [resolvable:$true] %s49
      %55 = dma.hbm_to_vmem [thread:$0]  %s3, 512, %s50, [#allocation10], 128, 128, 8
    $region17: #{tpu_custom_call.1} parent=1 // pred_fallthru
      _
    // Predicated region
    $region18: #{tpu_custom_call.1} parent=1 // pred_check
      _
    $region19: #{tpu_custom_call.1} parent=1 // pred_check_branch
      %57 = sbr.rel (0) target = $region21
    $region20: #{tpu_custom_call.1} parent=1 // pred_region
      %58 = dma.done [#allocation5], 16
    $region21: #{tpu_custom_call.1} parent=1 // pred_fallthru
      _
    // Predicated region
    $region22: #{tpu_custom_call.1} parent=1 // pred_check
      _
    $region23: #{tpu_custom_call.1} parent=1 // pred_check_branch
      %60 = sbr.rel (0) target = $region25
    $region24: #{tpu_custom_call.1} parent=1 // pred_region
      %61 = dma.done [#allocation6], 16
    $region25: #{tpu_custom_call.1} parent=1 // pred_fallthru
      _
    // Predicated region
    $region26: #{tpu_custom_call.1} parent=1 // pred_check
      _
    $region27: #{tpu_custom_call.1} parent=1 // pred_check_branch
      %63 = sbr.rel (0) target = $region29
    $region28: #{tpu_custom_call.1} parent=1 // pred_region
      %64 = dma.done [#allocation3], 512
    $region29: #{tpu_custom_call.1} parent=1 // pred_fallthru
      _
    // Predicated region
    $region30: #{tpu_custom_call.1} parent=1 // pred_check
      _
    $region31: #{tpu_custom_call.1} parent=1 // pred_check_branch
      %66 = sbr.rel (0) target = $region33
    $region32: #{tpu_custom_call.1} parent=1 // pred_region
      %67 = dma.done [#allocation10], 512
    $region33: #{tpu_custom_call.1} parent=1 // pred_fallthru
      _
    %68 = sfence
    %s69 = sld [smem:[#allocation2]]
    %s70 = sld [smem:[#allocation2 + $0x1]]
    %s71 = sld [smem:[#allocation2 + $0x2]]
    %s72 = sld [smem:[#allocation2 + $0x3]]
    %s73 = sld [smem:[#allocation2 + $0x4]]
    %s74 = sld [smem:[#allocation2 + $0x5]]
    %s75 = sld [smem:[#allocation2 + $0x6]]
    %s76 = sld [smem:[#allocation2 + $0x7]]
    %s77 = sld [smem:[#allocation2 + $0x8]]
    %s78 = sld [smem:[#allocation2 + $0x9]]
    %s79 = sld [smem:[#allocation2 + $0xa]]
    %s80 = sld [smem:[#allocation2 + $0xb]]
    %s81 = sld [smem:[#allocation2 + $0xc]]
    %s82 = sld [smem:[#allocation2 + $0xd]]
    %s83 = sld [smem:[#allocation2 + $0xe]]
    %s84 = sld [smem:[#allocation2 + $0xf]]
    %s85 = sld [smem:[#allocation2 + $0x10]]
    %s86 = sld [smem:[#allocation2 + $0x11]]
    %s87 = sld [smem:[#allocation2 + $0x12]]
    %s88 = sld [smem:[#allocation2 + $0x13]]
    %s89 = sld [smem:[#allocation2 + $0x14]]
    %s90 = sld [smem:[#allocation2 + $0x15]]
    %s91 = sld [smem:[#allocation2 + $0x16]]
    %s92 = sld [smem:[#allocation2 + $0x17]]
    %s93 = sld [smem:[#allocation2 + $0x18]]
    %s94 = sld [smem:[#allocation2 + $0x19]]
    %s95 = sld [smem:[#allocation2 + $0x1a]]
    %s96 = sld [smem:[#allocation2 + $0x1b]]
    %s97 = sld [smem:[#allocation2 + $0x1c]]
    %s98 = sld [smem:[#allocation2 + $0x1d]]
    %s99 = sld [smem:[#allocation2 + $0x1e]]
    %s100 = sld [smem:[#allocation2 + $0x1f]]
    %s101 = sld [smem:[#allocation2 + $0x20]]
    %s102 = sld [smem:[#allocation2 + $0x21]]
    %s103 = sld [smem:[#allocation2 + $0x22]]
    %s104 = sld [smem:[#allocation2 + $0x23]]
    %s105 = sld [smem:[#allocation2 + $0x24]]
    %s106 = sld [smem:[#allocation2 + $0x25]]
    %s107 = sld [smem:[#allocation2 + $0x26]]
    %s108 = sld [smem:[#allocation2 + $0x27]]
    %s109 = sld [smem:[#allocation2 + $0x28]]
    %s110 = sld [smem:[#allocation2 + $0x29]]
    %s111 = sld [smem:[#allocation2 + $0x2a]]
    %s112 = sld [smem:[#allocation2 + $0x2b]]
    %s113 = sld [smem:[#allocation2 + $0x2c]]
    %s114 = sld [smem:[#allocation2 + $0x2d]]
    %s115 = sld [smem:[#allocation2 + $0x2e]]
    %s116 = sld [smem:[#allocation2 + $0x2f]]
    %s117 = sld [smem:[#allocation2 + $0x30]]
    %s118 = sld [smem:[#allocation2 + $0x31]]
    %s119 = sld [smem:[#allocation2 + $0x32]]
    %s120 = sld [smem:[#allocation2 + $0x33]]
    %s121 = sld [smem:[#allocation2 + $0x34]]
    %s122 = sld [smem:[#allocation2 + $0x35]]
    %s123 = sld [smem:[#allocation2 + $0x36]]
    %s124 = sld [smem:[#allocation2 + $0x37]]
    %s125 = sld [smem:[#allocation2 + $0x38]]
    %s126 = sld [smem:[#allocation2 + $0x39]]
    %s127 = sld [smem:[#allocation2 + $0x3a]]
    %s128 = sld [smem:[#allocation2 + $0x3b]]
    %s129 = sld [smem:[#allocation2 + $0x3c]]
    %s130 = sld [smem:[#allocation2 + $0x3d]]
    %s131 = sld [smem:[#allocation2 + $0x3e]]
    %s132 = sld [smem:[#allocation2 + $0x3f]]
    %s133 = sld [smem:[#allocation7]]
    %s134 = sld [smem:[#allocation7 + $0x1]]
    %s135 = sld [smem:[#allocation7 + $0x2]]
    %s136 = sld [smem:[#allocation7 + $0x3]]
    %s137 = sld [smem:[#allocation7 + $0x4]]
    %s138 = sld [smem:[#allocation7 + $0x5]]
    %s139 = sld [smem:[#allocation7 + $0x6]]
    %s140 = sld [smem:[#allocation7 + $0x7]]
    %s141 = sld [smem:[#allocation7 + $0x8]]
    %s142 = sld [smem:[#allocation7 + $0x9]]
    %s143 = sld [smem:[#allocation7 + $0xa]]
    %s144 = sld [smem:[#allocation7 + $0xb]]
    %s145 = sld [smem:[#allocation7 + $0xc]]
    %s146 = sld [smem:[#allocation7 + $0xd]]
    %s147 = sld [smem:[#allocation7 + $0xe]]
    %s148 = sld [smem:[#allocation7 + $0xf]]
    %s149 = sld [smem:[#allocation7 + $0x10]]
    %s150 = sld [smem:[#allocation7 + $0x11]]
    %s151 = sld [smem:[#allocation7 + $0x12]]
    %s152 = sld [smem:[#allocation7 + $0x13]]
    %s153 = sld [smem:[#allocation7 + $0x14]]
    %s154 = sld [smem:[#allocation7 + $0x15]]
    %s155 = sld [smem:[#allocation7 + $0x16]]
    %s156 = sld [smem:[#allocation7 + $0x17]]
    %s157 = sld [smem:[#allocation7 + $0x18]]
    %s158 = sld [smem:[#allocation7 + $0x19]]
    %s159 = sld [smem:[#allocation7 + $0x1a]]
    %s160 = sld [smem:[#allocation7 + $0x1b]]
    %s161 = sld [smem:[#allocation7 + $0x1c]]
    %s162 = sld [smem:[#allocation7 + $0x1d]]
    %s163 = sld [smem:[#allocation7 + $0x1e]]
    %s164 = sld [smem:[#allocation7 + $0x1f]]
    %s165 = sld [smem:[#allocation7 + $0x20]]
    %s166 = sld [smem:[#allocation7 + $0x21]]
    %s167 = sld [smem:[#allocation7 + $0x22]]
    %s168 = sld [smem:[#allocation7 + $0x23]]
    %s169 = sld [smem:[#allocation7 + $0x24]]
    %s170 = sld [smem:[#allocation7 + $0x25]]
    %s171 = sld [smem:[#allocation7 + $0x26]]
    %s172 = sld [smem:[#allocation7 + $0x27]]
    %s173 = sld [smem:[#allocation7 + $0x28]]
    %s174 = sld [smem:[#allocation7 + $0x29]]
    %s175 = sld [smem:[#allocation7 + $0x2a]]
    %s176 = sld [smem:[#allocation7 + $0x2b]]
    %s177 = sld [smem:[#allocation7 + $0x2c]]
    %s178 = sld [smem:[#allocation7 + $0x2d]]
    %s179 = sld [smem:[#allocation7 + $0x2e]]
    %s180 = sld [smem:[#allocation7 + $0x2f]]
    %s181 = sld [smem:[#allocation7 + $0x30]]
    %s182 = sld [smem:[#allocation7 + $0x31]]
    %s183 = sld [smem:[#allocation7 + $0x32]]
    %s184 = sld [smem:[#allocation7 + $0x33]]
    %s185 = sld [smem:[#allocation7 + $0x34]]
    %s186 = sld [smem:[#allocation7 + $0x35]]
    %s187 = sld [smem:[#allocation7 + $0x36]]
    %s188 = sld [smem:[#allocation7 + $0x37]]
    %s189 = sld [smem:[#allocation7 + $0x38]]
    %s190 = sld [smem:[#allocation7 + $0x39]]
    %s191 = sld [smem:[#allocation7 + $0x3a]]
    %s192 = sld [smem:[#allocation7 + $0x3b]]
    %s193 = sld [smem:[#allocation7 + $0x3c]]
    %s194 = sld [smem:[#allocation7 + $0x3d]]
    %s195 = sld [smem:[#allocation7 + $0x3e]]
    %s196 = sld [smem:[#allocation7 + $0x3f]]
    %v197 = vld [vmem:[#allocation8] sm:$0xff]
    %vm198 = vcmp.eq.s32.totalorder %v197, 0
    %v199 = vstv %s69
    %v200 = vsel %vm198, %v199, 0.0
    %v201 = vstv %s70
    %v202 = vsel %vm198, %v201, 0.0
    %v203 = vstv %s71
    %v204 = vsel %vm198, %v203, 0.0
    %v205 = vstv %s72
    %v206 = vsel %vm198, %v205, 0.0
    %vm207 = vcmp.eq.s32.totalorder %v197, 1
    %v208 = vstv %s73
    %v209 = vsel %vm207, %v208, %v200
    %v210 = vstv %s74
    %v211 = vsel %vm207, %v210, %v202
    %v212 = vstv %s75
    %v213 = vsel %vm207, %v212, %v204
    %v214 = vstv %s76
    %v215 = vsel %vm207, %v214, %v206
    %vm216 = vcmp.eq.s32.totalorder %v197, 2
    %v217 = vstv %s77
    %v218 = vsel %vm216, %v217, %v209
    %v219 = vstv %s78
    %v220 = vsel %vm216, %v219, %v211
    %v221 = vstv %s79
    %v222 = vsel %vm216, %v221, %v213
    %v223 = vstv %s80
    %v224 = vsel %vm216, %v223, %v215
    %vm225 = vcmp.eq.s32.totalorder %v197, 3
    %v226 = vstv %s81
    %v227 = vsel %vm225, %v226, %v218
    %v228 = vstv %s82
    %v229 = vsel %vm225, %v228, %v220
    %v230 = vstv %s83
    %v231 = vsel %vm225, %v230, %v222
    %v232 = vstv %s84
    %v233 = vsel %vm225, %v232, %v224
    %vm234 = vcmp.eq.s32.totalorder %v197, 4
    %v235 = vstv %s85
    %v236 = vsel %vm234, %v235, %v227
    %v237 = vstv %s86
    %v238 = vsel %vm234, %v237, %v229
    %v239 = vstv %s87
    %v240 = vsel %vm234, %v239, %v231
    %v241 = vstv %s88
    %v242 = vsel %vm234, %v241, %v233
    %vm243 = vcmp.eq.s32.totalorder %v197, 5
    %v244 = vstv %s89
    %v245 = vsel %vm243, %v244, %v236
    %v246 = vstv %s90
    %v247 = vsel %vm243, %v246, %v238
    %v248 = vstv %s91
    %v249 = vsel %vm243, %v248, %v240
    %v250 = vstv %s92
    %v251 = vsel %vm243, %v250, %v242
    %vm252 = vcmp.eq.s32.totalorder %v197, 6
    %v253 = vstv %s93
    %v254 = vsel %vm252, %v253, %v245
    %v255 = vstv %s94
    %v256 = vsel %vm252, %v255, %v247
    %v257 = vstv %s95
    %v258 = vsel %vm252, %v257, %v249
    %v259 = vstv %s96
    %v260 = vsel %vm252, %v259, %v251
    %vm261 = vcmp.eq.s32.totalorder %v197, 7
    %v262 = vstv %s97
    %v263 = vsel %vm261, %v262, %v254
    %v264 = vstv %s98
    %v265 = vsel %vm261, %v264, %v256
    %v266 = vstv %s99
    %v267 = vsel %vm261, %v266, %v258
    %v268 = vstv %s100
    %v269 = vsel %vm261, %v268, %v260
    %vm270 = vcmp.eq.s32.totalorder %v197, 8
    %v271 = vstv %s101
    %v272 = vsel %vm270, %v271, %v263
    %v273 = vstv %s102
    %v274 = vsel %vm270, %v273, %v265
    %v275 = vstv %s103
    %v276 = vsel %vm270, %v275, %v267
    %v277 = vstv %s104
    %v278 = vsel %vm270, %v277, %v269
    %vm279 = vcmp.eq.s32.totalorder %v197, 9
    %v280 = vstv %s105
    %v281 = vsel %vm279, %v280, %v272
    %v282 = vstv %s106
    %v283 = vsel %vm279, %v282, %v274
    %v284 = vstv %s107
    %v285 = vsel %vm279, %v284, %v276
    %v286 = vstv %s108
    %v287 = vsel %vm279, %v286, %v278
    %vm288 = vcmp.eq.s32.totalorder %v197, 10
    %v289 = vstv %s109
    %v290 = vsel %vm288, %v289, %v281
    %v291 = vstv %s110
    %v292 = vsel %vm288, %v291, %v283
    %v293 = vstv %s111
    %v294 = vsel %vm288, %v293, %v285
    %v295 = vstv %s112
    %v296 = vsel %vm288, %v295, %v287
    %vm297 = vcmp.eq.s32.totalorder %v197, 11
    %v298 = vstv %s113
    %v299 = vsel %vm297, %v298, %v290
    %v300 = vstv %s114
    %v301 = vsel %vm297, %v300, %v292
    %v302 = vstv %s115
    %v303 = vsel %vm297, %v302, %v294
    %v304 = vstv %s116
    %v305 = vsel %vm297, %v304, %v296
    %vm306 = vcmp.eq.s32.totalorder %v197, 12
    %v307 = vstv %s117
    %v308 = vsel %vm306, %v307, %v299
    %v309 = vstv %s118
    %v310 = vsel %vm306, %v309, %v301
    %v311 = vstv %s119
    %v312 = vsel %vm306, %v311, %v303
    %v313 = vstv %s120
    %v314 = vsel %vm306, %v313, %v305
    %vm315 = vcmp.eq.s32.totalorder %v197, 13
    %v316 = vstv %s121
    %v317 = vsel %vm315, %v316, %v308
    %v318 = vstv %s122
    %v319 = vsel %vm315, %v318, %v310
    %v320 = vstv %s123
    %v321 = vsel %vm315, %v320, %v312
    %v322 = vstv %s124
    %v323 = vsel %vm315, %v322, %v314
    %vm324 = vcmp.eq.s32.totalorder %v197, 14
    %v325 = vstv %s125
    %v326 = vsel %vm324, %v325, %v317
    %v327 = vstv %s126
    %v328 = vsel %vm324, %v327, %v319
    %v329 = vstv %s127
    %v330 = vsel %vm324, %v329, %v321
    %v331 = vstv %s128
    %v332 = vsel %vm324, %v331, %v323
    %vm333 = vcmp.eq.s32.totalorder %v197, 15
    %v334 = vstv %s129
    %v335 = vsel %vm333, %v334, %v326
    %v336 = vstv %s130
    %v337 = vsel %vm333, %v336, %v328
    %v338 = vstv %s131
    %v339 = vsel %vm333, %v338, %v330
    %v340 = vstv %s132
    %v341 = vsel %vm333, %v340, %v332
    %s342 = scalar_lea.vmem [#allocation8], 8
    %v343 = vld [vmem:[%s342] sm:$0xff]
    %vm344 = vcmp.eq.s32.totalorder %v343, 0
    %v345 = vsel %vm344, %v199, 0.0
    %v346 = vsel %vm344, %v201, 0.0
    %v347 = vsel %vm344, %v203, 0.0
    %v348 = vsel %vm344, %v205, 0.0
    %vm349 = vcmp.eq.s32.totalorder %v343, 1
    %v350 = vsel %vm349, %v208, %v345
    %v351 = vsel %vm349, %v210, %v346
    %v352 = vsel %vm349, %v212, %v347
    %v353 = vsel %vm349, %v214, %v348
    %vm354 = vcmp.eq.s32.totalorder %v343, 2
    %v355 = vsel %vm354, %v217, %v350
    %v356 = vsel %vm354, %v219, %v351
    %v357 = vsel %vm354, %v221, %v352
    %v358 = vsel %vm354, %v223, %v353
    %vm359 = vcmp.eq.s32.totalorder %v343, 3
    %v360 = vsel %vm359, %v226, %v355
    %v361 = vsel %vm359, %v228, %v356
    %v362 = vsel %vm359, %v230, %v357
    %v363 = vsel %vm359, %v232, %v358
    %vm364 = vcmp.eq.s32.totalorder %v343, 4
    %v365 = vsel %vm364, %v235, %v360
    %v366 = vsel %vm364, %v237, %v361
    %v367 = vsel %vm364, %v239, %v362
    %v368 = vsel %vm364, %v241, %v363
    %vm369 = vcmp.eq.s32.totalorder %v343, 5
    %v370 = vsel %vm369, %v244, %v365
    %v371 = vsel %vm369, %v246, %v366
    %v372 = vsel %vm369, %v248, %v367
    %v373 = vsel %vm369, %v250, %v368
    %vm374 = vcmp.eq.s32.totalorder %v343, 6
    %v375 = vsel %vm374, %v253, %v370
    %v376 = vsel %vm374, %v255, %v371
    %v377 = vsel %vm374, %v257, %v372
    %v378 = vsel %vm374, %v259, %v373
    %vm379 = vcmp.eq.s32.totalorder %v343, 7
    %v380 = vsel %vm379, %v262, %v375
    %v381 = vsel %vm379, %v264, %v376
    %v382 = vsel %vm379, %v266, %v377
    %v383 = vsel %vm379, %v268, %v378
    %vm384 = vcmp.eq.s32.totalorder %v343, 8
    %v385 = vsel %vm384, %v271, %v380
    %v386 = vsel %vm384, %v273, %v381
    %v387 = vsel %vm384, %v275, %v382
    %v388 = vsel %vm384, %v277, %v383
    %vm389 = vcmp.eq.s32.totalorder %v343, 9
    %v390 = vsel %vm389, %v280, %v385
    %v391 = vsel %vm389, %v282, %v386
    %v392 = vsel %vm389, %v284, %v387
    %v393 = vsel %vm389, %v286, %v388
    %vm394 = vcmp.eq.s32.totalorder %v343, 10
    %v395 = vsel %vm394, %v289, %v390
    %v396 = vsel %vm394, %v291, %v391
    %v397 = vsel %vm394, %v293, %v392
    %v398 = vsel %vm394, %v295, %v393
    %vm399 = vcmp.eq.s32.totalorder %v343, 11
    %v400 = vsel %vm399, %v298, %v395
    %v401 = vsel %vm399, %v300, %v396
    %v402 = vsel %vm399, %v302, %v397
    %v403 = vsel %vm399, %v304, %v398
    %vm404 = vcmp.eq.s32.totalorder %v343, 12
    %v405 = vsel %vm404, %v307, %v400
    %v406 = vsel %vm404, %v309, %v401
    %v407 = vsel %vm404, %v311, %v402
    %v408 = vsel %vm404, %v313, %v403
    %vm409 = vcmp.eq.s32.totalorder %v343, 13
    %v410 = vsel %vm409, %v316, %v405
    %v411 = vsel %vm409, %v318, %v406
    %v412 = vsel %vm409, %v320, %v407
    %v413 = vsel %vm409, %v322, %v408
    %vm414 = vcmp.eq.s32.totalorder %v343, 14
    %v415 = vsel %vm414, %v325, %v410
    %v416 = vsel %vm414, %v327, %v411
    %v417 = vsel %vm414, %v329, %v412
    %v418 = vsel %vm414, %v331, %v413
    %vm419 = vcmp.eq.s32.totalorder %v343, 15
    %v420 = vsel %vm419, %v334, %v415
    %v421 = vsel %vm419, %v336, %v416
    %v422 = vsel %vm419, %v338, %v417
    %v423 = vsel %vm419, %v340, %v418
    %s424 = scalar_lea.vmem [#allocation8], 16
    %v425 = vld [vmem:[%s424] sm:$0xff]
    %vm426 = vcmp.eq.s32.totalorder %v425, 0
    %v427 = vsel %vm426, %v199, 0.0
    %v428 = vsel %vm426, %v201, 0.0
    %v429 = vsel %vm426, %v203, 0.0
    %v430 = vsel %vm426, %v205, 0.0
    %vm431 = vcmp.eq.s32.totalorder %v425, 1
    %v432 = vsel %vm431, %v208, %v427
    %v433 = vsel %vm431, %v210, %v428
    %v434 = vsel %vm431, %v212, %v429
    %v435 = vsel %vm431, %v214, %v430
    %vm436 = vcmp.eq.s32.totalorder %v425, 2
    %v437 = vsel %vm436, %v217, %v432
    %v438 = vsel %vm436, %v219, %v433
    %v439 = vsel %vm436, %v221, %v434
    %v440 = vsel %vm436, %v223, %v435
    %vm441 = vcmp.eq.s32.totalorder %v425, 3
    %v442 = vsel %vm441, %v226, %v437
    %v443 = vsel %vm441, %v228, %v438
    %v444 = vsel %vm441, %v230, %v439
    %v445 = vsel %vm441, %v232, %v440
    %vm446 = vcmp.eq.s32.totalorder %v425, 4
    %v447 = vsel %vm446, %v235, %v442
    %v448 = vsel %vm446, %v237, %v443
    %v449 = vsel %vm446, %v239, %v444
    %v450 = vsel %vm446, %v241, %v445
    %vm451 = vcmp.eq.s32.totalorder %v425, 5
    %v452 = vsel %vm451, %v244, %v447
    %v453 = vsel %vm451, %v246, %v448
    %v454 = vsel %vm451, %v248, %v449
    %v455 = vsel %vm451, %v250, %v450
    %vm456 = vcmp.eq.s32.totalorder %v425, 6
    %v457 = vsel %vm456, %v253, %v452
    %v458 = vsel %vm456, %v255, %v453
    %v459 = vsel %vm456, %v257, %v454
    %v460 = vsel %vm456, %v259, %v455
    %vm461 = vcmp.eq.s32.totalorder %v425, 7
    %v462 = vsel %vm461, %v262, %v457
    %v463 = vsel %vm461, %v264, %v458
    %v464 = vsel %vm461, %v266, %v459
    %v465 = vsel %vm461, %v268, %v460
    %vm466 = vcmp.eq.s32.totalorder %v425, 8
    %v467 = vsel %vm466, %v271, %v462
    %v468 = vsel %vm466, %v273, %v463
    %v469 = vsel %vm466, %v275, %v464
    %v470 = vsel %vm466, %v277, %v465
    %vm471 = vcmp.eq.s32.totalorder %v425, 9
    %v472 = vsel %vm471, %v280, %v467
    %v473 = vsel %vm471, %v282, %v468
    %v474 = vsel %vm471, %v284, %v469
    %v475 = vsel %vm471, %v286, %v470
    %vm476 = vcmp.eq.s32.totalorder %v425, 10
    %v477 = vsel %vm476, %v289, %v472
    %v478 = vsel %vm476, %v291, %v473
    %v479 = vsel %vm476, %v293, %v474
    %v480 = vsel %vm476, %v295, %v475
    %vm481 = vcmp.eq.s32.totalorder %v425, 11
    %v482 = vsel %vm481, %v298, %v477
    %v483 = vsel %vm481, %v300, %v478
    %v484 = vsel %vm481, %v302, %v479
    %v485 = vsel %vm481, %v304, %v480
    %vm486 = vcmp.eq.s32.totalorder %v425, 12
    %v487 = vsel %vm486, %v307, %v482
    %v488 = vsel %vm486, %v309, %v483
    %v489 = vsel %vm486, %v311, %v484
    %v490 = vsel %vm486, %v313, %v485
    %vm491 = vcmp.eq.s32.totalorder %v425, 13
    %v492 = vsel %vm491, %v316, %v487
    %v493 = vsel %vm491, %v318, %v488
    %v494 = vsel %vm491, %v320, %v489
    %v495 = vsel %vm491, %v322, %v490
    %vm496 = vcmp.eq.s32.totalorder %v425, 14
    %v497 = vsel %vm496, %v325, %v492
    %v498 = vsel %vm496, %v327, %v493
    %v499 = vsel %vm496, %v329, %v494
    %v500 = vsel %vm496, %v331, %v495
    %vm501 = vcmp.eq.s32.totalorder %v425, 15
    %v502 = vsel %vm501, %v334, %v497
    %v503 = vsel %vm501, %v336, %v498
    %v504 = vsel %vm501, %v338, %v499
    %v505 = vsel %vm501, %v340, %v500
    %s506 = scalar_lea.vmem [#allocation8], 24
    %v507 = vld [vmem:[%s506] sm:$0xff]
    %vm508 = vcmp.eq.s32.totalorder %v507, 0
    %v509 = vsel %vm508, %v199, 0.0
    %v510 = vsel %vm508, %v201, 0.0
    %v511 = vsel %vm508, %v203, 0.0
    %v512 = vsel %vm508, %v205, 0.0
    %vm513 = vcmp.eq.s32.totalorder %v507, 1
    %v514 = vsel %vm513, %v208, %v509
    %v515 = vsel %vm513, %v210, %v510
    %v516 = vsel %vm513, %v212, %v511
    %v517 = vsel %vm513, %v214, %v512
    %vm518 = vcmp.eq.s32.totalorder %v507, 2
    %v519 = vsel %vm518, %v217, %v514
    %v520 = vsel %vm518, %v219, %v515
    %v521 = vsel %vm518, %v221, %v516
    %v522 = vsel %vm518, %v223, %v517
    %vm523 = vcmp.eq.s32.totalorder %v507, 3
    %v524 = vsel %vm523, %v226, %v519
    %v525 = vsel %vm523, %v228, %v520
    %v526 = vsel %vm523, %v230, %v521
    %v527 = vsel %vm523, %v232, %v522
    %vm528 = vcmp.eq.s32.totalorder %v507, 4
    %v529 = vsel %vm528, %v235, %v524
    %v530 = vsel %vm528, %v237, %v525
    %v531 = vsel %vm528, %v239, %v526
    %v532 = vsel %vm528, %v241, %v527
    %vm533 = vcmp.eq.s32.totalorder %v507, 5
    %v534 = vsel %vm533, %v244, %v529
    %v535 = vsel %vm533, %v246, %v530
    %v536 = vsel %vm533, %v248, %v531
    %v537 = vsel %vm533, %v250, %v532
    %vm538 = vcmp.eq.s32.totalorder %v507, 6
    %v539 = vsel %vm538, %v253, %v534
    %v540 = vsel %vm538, %v255, %v535
    %v541 = vsel %vm538, %v257, %v536
    %v542 = vsel %vm538, %v259, %v537
    %vm543 = vcmp.eq.s32.totalorder %v507, 7
    %v544 = vsel %vm543, %v262, %v539
    %v545 = vsel %vm543, %v264, %v540
    %v546 = vsel %vm543, %v266, %v541
    %v547 = vsel %vm543, %v268, %v542
    %vm548 = vcmp.eq.s32.totalorder %v507, 8
    %v549 = vsel %vm548, %v271, %v544
    %v550 = vsel %vm548, %v273, %v545
    %v551 = vsel %vm548, %v275, %v546
    %v552 = vsel %vm548, %v277, %v547
    %vm553 = vcmp.eq.s32.totalorder %v507, 9
    %v554 = vsel %vm553, %v280, %v549
    %v555 = vsel %vm553, %v282, %v550
    %v556 = vsel %vm553, %v284, %v551
    %v557 = vsel %vm553, %v286, %v552
    %vm558 = vcmp.eq.s32.totalorder %v507, 10
    %v559 = vsel %vm558, %v289, %v554
    %v560 = vsel %vm558, %v291, %v555
    %v561 = vsel %vm558, %v293, %v556
    %v562 = vsel %vm558, %v295, %v557
    %vm563 = vcmp.eq.s32.totalorder %v507, 11
    %v564 = vsel %vm563, %v298, %v559
    %v565 = vsel %vm563, %v300, %v560
    %v566 = vsel %vm563, %v302, %v561
    %v567 = vsel %vm563, %v304, %v562
    %vm568 = vcmp.eq.s32.totalorder %v507, 12
    %v569 = vsel %vm568, %v307, %v564
    %v570 = vsel %vm568, %v309, %v565
    %v571 = vsel %vm568, %v311, %v566
    %v572 = vsel %vm568, %v313, %v567
    %vm573 = vcmp.eq.s32.totalorder %v507, 13
    %v574 = vsel %vm573, %v316, %v569
    %v575 = vsel %vm573, %v318, %v570
    %v576 = vsel %vm573, %v320, %v571
    %v577 = vsel %vm573, %v322, %v572
    %vm578 = vcmp.eq.s32.totalorder %v507, 14
    %v579 = vsel %vm578, %v325, %v574
    %v580 = vsel %vm578, %v327, %v575
    %v581 = vsel %vm578, %v329, %v576
    %v582 = vsel %vm578, %v331, %v577
    %vm583 = vcmp.eq.s32.totalorder %v507, 15
    %v584 = vsel %vm583, %v334, %v579
    %v585 = vsel %vm583, %v336, %v580
    %v586 = vsel %vm583, %v338, %v581
    %v587 = vsel %vm583, %v340, %v582
    %v588 = vmul.f32 %v335, %v421
    %v589 = vmul.f32 %v337, %v420
    %v590 = vsub.f32 %v588, %v589
    %v591 = vmul.f32 %v335, %v422
    %v592 = vmul.f32 %v339, %v420
    %v593 = vsub.f32 %v591, %v592
    %v594 = vmul.f32 %v335, %v423
    %v595 = vmul.f32 %v341, %v420
    %v596 = vsub.f32 %v594, %v595
    %v597 = vmul.f32 %v337, %v422
    %v598 = vmul.f32 %v339, %v421
    %v599 = vsub.f32 %v597, %v598
    %v600 = vmul.f32 %v337, %v423
    %v601 = vmul.f32 %v341, %v421
    %v602 = vsub.f32 %v600, %v601
    %v603 = vmul.f32 %v339, %v423
    %v604 = vmul.f32 %v341, %v422
    %v605 = vsub.f32 %v603, %v604
    %v606 = vmul.f32 %v502, %v585
    %v607 = vmul.f32 %v503, %v584
    %v608 = vsub.f32 %v606, %v607
    %v609 = vmul.f32 %v502, %v586
    %v610 = vmul.f32 %v504, %v584
    %v611 = vsub.f32 %v609, %v610
    %v612 = vmul.f32 %v502, %v587
    %v613 = vmul.f32 %v505, %v584
    %v614 = vsub.f32 %v612, %v613
    %v615 = vmul.f32 %v503, %v586
    %v616 = vmul.f32 %v504, %v585
    %v617 = vsub.f32 %v615, %v616
    %v618 = vmul.f32 %v503, %v587
    %v619 = vmul.f32 %v505, %v585
    %v620 = vsub.f32 %v618, %v619
    %v621 = vmul.f32 %v504, %v587
    %v622 = vmul.f32 %v505, %v586
    %v623 = vsub.f32 %v621, %v622
    %v624 = vmul.f32 %v590, %v623
    %v625 = vmul.f32 %v593, %v620
    %v626 = vsub.f32 %v624, %v625
    %v627 = vmul.f32 %v596, %v617
    %v628 = vadd.f32 %v626, %v627
    %v629 = vmul.f32 %v599, %v614
    %v630 = vadd.f32 %v628, %v629
    %v631 = vmul.f32 %v602, %v611
    %v632 = vsub.f32 %v630, %v631
    %v633 = vmul.f32 %v605, %v608
    %v634 = vadd.f32 %v632, %v633
    %v635 = vld [vmem:[#allocation9] sm:$0xff]
    %vm636 = vcmp.eq.s32.totalorder %v635, 0
    %v637 = vstv %s133
    %v638 = vsel %vm636, %v637, 0.0
    %v639 = vstv %s134
    %v640 = vsel %vm636, %v639, 0.0
    %v641 = vstv %s135
    %v642 = vsel %vm636, %v641, 0.0
    %v643 = vstv %s136
    %v644 = vsel %vm636, %v643, 0.0
    %vm645 = vcmp.eq.s32.totalorder %v635, 1
    %v646 = vstv %s137
    %v647 = vsel %vm645, %v646, %v638
    %v648 = vstv %s138
    %v649 = vsel %vm645, %v648, %v640
    %v650 = vstv %s139
    %v651 = vsel %vm645, %v650, %v642
    %v652 = vstv %s140
    %v653 = vsel %vm645, %v652, %v644
    %vm654 = vcmp.eq.s32.totalorder %v635, 2
    %v655 = vstv %s141
    %v656 = vsel %vm654, %v655, %v647
    %v657 = vstv %s142
    %v658 = vsel %vm654, %v657, %v649
    %v659 = vstv %s143
    %v660 = vsel %vm654, %v659, %v651
    %v661 = vstv %s144
    %v662 = vsel %vm654, %v661, %v653
    %vm663 = vcmp.eq.s32.totalorder %v635, 3
    %v664 = vstv %s145
    %v665 = vsel %vm663, %v664, %v656
    %v666 = vstv %s146
    %v667 = vsel %vm663, %v666, %v658
    %v668 = vstv %s147
    %v669 = vsel %vm663, %v668, %v660
    %v670 = vstv %s148
    %v671 = vsel %vm663, %v670, %v662
    %vm672 = vcmp.eq.s32.totalorder %v635, 4
    %v673 = vstv %s149
    %v674 = vsel %vm672, %v673, %v665
    %v675 = vstv %s150
    %v676 = vsel %vm672, %v675, %v667
    %v677 = vstv %s151
    %v678 = vsel %vm672, %v677, %v669
    %v679 = vstv %s152
    %v680 = vsel %vm672, %v679, %v671
    %vm681 = vcmp.eq.s32.totalorder %v635, 5
    %v682 = vstv %s153
    %v683 = vsel %vm681, %v682, %v674
    %v684 = vstv %s154
    %v685 = vsel %vm681, %v684, %v676
    %v686 = vstv %s155
    %v687 = vsel %vm681, %v686, %v678
    %v688 = vstv %s156
    %v689 = vsel %vm681, %v688, %v680
    %vm690 = vcmp.eq.s32.totalorder %v635, 6
    %v691 = vstv %s157
    %v692 = vsel %vm690, %v691, %v683
    %v693 = vstv %s158
    %v694 = vsel %vm690, %v693, %v685
    %v695 = vstv %s159
    %v696 = vsel %vm690, %v695, %v687
    %v697 = vstv %s160
    %v698 = vsel %vm690, %v697, %v689
    %vm699 = vcmp.eq.s32.totalorder %v635, 7
    %v700 = vstv %s161
    %v701 = vsel %vm699, %v700, %v692
    %v702 = vstv %s162
    %v703 = vsel %vm699, %v702, %v694
    %v704 = vstv %s163
    %v705 = vsel %vm699, %v704, %v696
    %v706 = vstv %s164
    %v707 = vsel %vm699, %v706, %v698
    %vm708 = vcmp.eq.s32.totalorder %v635, 8
    %v709 = vstv %s165
    %v710 = vsel %vm708, %v709, %v701
    %v711 = vstv %s166
    %v712 = vsel %vm708, %v711, %v703
    %v713 = vstv %s167
    %v714 = vsel %vm708, %v713, %v705
    %v715 = vstv %s168
    %v716 = vsel %vm708, %v715, %v707
    %vm717 = vcmp.eq.s32.totalorder %v635, 9
    %v718 = vstv %s169
    %v719 = vsel %vm717, %v718, %v710
    %v720 = vstv %s170
    %v721 = vsel %vm717, %v720, %v712
    %v722 = vstv %s171
    %v723 = vsel %vm717, %v722, %v714
    %v724 = vstv %s172
    %v725 = vsel %vm717, %v724, %v716
    %vm726 = vcmp.eq.s32.totalorder %v635, 10
    %v727 = vstv %s173
    %v728 = vsel %vm726, %v727, %v719
    %v729 = vstv %s174
    %v730 = vsel %vm726, %v729, %v721
    %v731 = vstv %s175
    %v732 = vsel %vm726, %v731, %v723
    %v733 = vstv %s176
    %v734 = vsel %vm726, %v733, %v725
    %vm735 = vcmp.eq.s32.totalorder %v635, 11
    %v736 = vstv %s177
    %v737 = vsel %vm735, %v736, %v728
    %v738 = vstv %s178
    %v739 = vsel %vm735, %v738, %v730
    %v740 = vstv %s179
    %v741 = vsel %vm735, %v740, %v732
    %v742 = vstv %s180
    %v743 = vsel %vm735, %v742, %v734
    %vm744 = vcmp.eq.s32.totalorder %v635, 12
    %v745 = vstv %s181
    %v746 = vsel %vm744, %v745, %v737
    %v747 = vstv %s182
    %v748 = vsel %vm744, %v747, %v739
    %v749 = vstv %s183
    %v750 = vsel %vm744, %v749, %v741
    %v751 = vstv %s184
    %v752 = vsel %vm744, %v751, %v743
    %vm753 = vcmp.eq.s32.totalorder %v635, 13
    %v754 = vstv %s185
    %v755 = vsel %vm753, %v754, %v746
    %v756 = vstv %s186
    %v757 = vsel %vm753, %v756, %v748
    %v758 = vstv %s187
    %v759 = vsel %vm753, %v758, %v750
    %v760 = vstv %s188
    %v761 = vsel %vm753, %v760, %v752
    %vm762 = vcmp.eq.s32.totalorder %v635, 14
    %v763 = vstv %s189
    %v764 = vsel %vm762, %v763, %v755
    %v765 = vstv %s190
    %v766 = vsel %vm762, %v765, %v757
    %v767 = vstv %s191
    %v768 = vsel %vm762, %v767, %v759
    %v769 = vstv %s192
    %v770 = vsel %vm762, %v769, %v761
    %vm771 = vcmp.eq.s32.totalorder %v635, 15
    %v772 = vstv %s193
    %v773 = vsel %vm771, %v772, %v764
    %v774 = vstv %s194
    %v775 = vsel %vm771, %v774, %v766
    %v776 = vstv %s195
    %v777 = vsel %vm771, %v776, %v768
    %v778 = vstv %s196
    %v779 = vsel %vm771, %v778, %v770
    %s780 = scalar_lea.vmem [#allocation9], 8
    %v781 = vld [vmem:[%s780] sm:$0xff]
    %vm782 = vcmp.eq.s32.totalorder %v781, 0
    %v783 = vsel %vm782, %v637, 0.0
    %v784 = vsel %vm782, %v639, 0.0
    %v785 = vsel %vm782, %v641, 0.0
    %v786 = vsel %vm782, %v643, 0.0
    %vm787 = vcmp.eq.s32.totalorder %v781, 1
    %v788 = vsel %vm787, %v646, %v783
    %v789 = vsel %vm787, %v648, %v784
    %v790 = vsel %vm787, %v650, %v785
    %v791 = vsel %vm787, %v652, %v786
    %vm792 = vcmp.eq.s32.totalorder %v781, 2
    %v793 = vsel %vm792, %v655, %v788
    %v794 = vsel %vm792, %v657, %v789
    %v795 = vsel %vm792, %v659, %v790
    %v796 = vsel %vm792, %v661, %v791
    %vm797 = vcmp.eq.s32.totalorder %v781, 3
    %v798 = vsel %vm797, %v664, %v793
    %v799 = vsel %vm797, %v666, %v794
    %v800 = vsel %vm797, %v668, %v795
    %v801 = vsel %vm797, %v670, %v796
    %vm802 = vcmp.eq.s32.totalorder %v781, 4
    %v803 = vsel %vm802, %v673, %v798
    %v804 = vsel %vm802, %v675, %v799
    %v805 = vsel %vm802, %v677, %v800
    %v806 = vsel %vm802, %v679, %v801
    %vm807 = vcmp.eq.s32.totalorder %v781, 5
    %v808 = vsel %vm807, %v682, %v803
    %v809 = vsel %vm807, %v684, %v804
    %v810 = vsel %vm807, %v686, %v805
    %v811 = vsel %vm807, %v688, %v806
    %vm812 = vcmp.eq.s32.totalorder %v781, 6
    %v813 = vsel %vm812, %v691, %v808
    %v814 = vsel %vm812, %v693, %v809
    %v815 = vsel %vm812, %v695, %v810
    %v816 = vsel %vm812, %v697, %v811
    %vm817 = vcmp.eq.s32.totalorder %v781, 7
    %v818 = vsel %vm817, %v700, %v813
    %v819 = vsel %vm817, %v702, %v814
    %v820 = vsel %vm817, %v704, %v815
    %v821 = vsel %vm817, %v706, %v816
    %vm822 = vcmp.eq.s32.totalorder %v781, 8
    %v823 = vsel %vm822, %v709, %v818
    %v824 = vsel %vm822, %v711, %v819
    %v825 = vsel %vm822, %v713, %v820
    %v826 = vsel %vm822, %v715, %v821
    %vm827 = vcmp.eq.s32.totalorder %v781, 9
    %v828 = vsel %vm827, %v718, %v823
    %v829 = vsel %vm827, %v720, %v824
    %v830 = vsel %vm827, %v722, %v825
    %v831 = vsel %vm827, %v724, %v826
    %vm832 = vcmp.eq.s32.totalorder %v781, 10
    %v833 = vsel %vm832, %v727, %v828
    %v834 = vsel %vm832, %v729, %v829
    %v835 = vsel %vm832, %v731, %v830
    %v836 = vsel %vm832, %v733, %v831
    %vm837 = vcmp.eq.s32.totalorder %v781, 11
    %v838 = vsel %vm837, %v736, %v833
    %v839 = vsel %vm837, %v738, %v834
    %v840 = vsel %vm837, %v740, %v835
    %v841 = vsel %vm837, %v742, %v836
    %vm842 = vcmp.eq.s32.totalorder %v781, 12
    %v843 = vsel %vm842, %v745, %v838
    %v844 = vsel %vm842, %v747, %v839
    %v845 = vsel %vm842, %v749, %v840
    %v846 = vsel %vm842, %v751, %v841
    %vm847 = vcmp.eq.s32.totalorder %v781, 13
    %v848 = vsel %vm847, %v754, %v843
    %v849 = vsel %vm847, %v756, %v844
    %v850 = vsel %vm847, %v758, %v845
    %v851 = vsel %vm847, %v760, %v846
    %vm852 = vcmp.eq.s32.totalorder %v781, 14
    %v853 = vsel %vm852, %v763, %v848
    %v854 = vsel %vm852, %v765, %v849
    %v855 = vsel %vm852, %v767, %v850
    %v856 = vsel %vm852, %v769, %v851
    %vm857 = vcmp.eq.s32.totalorder %v781, 15
    %v858 = vsel %vm857, %v772, %v853
    %v859 = vsel %vm857, %v774, %v854
    %v860 = vsel %vm857, %v776, %v855
    %v861 = vsel %vm857, %v778, %v856
    %s862 = scalar_lea.vmem [#allocation9], 16
    %v863 = vld [vmem:[%s862] sm:$0xff]
    %vm864 = vcmp.eq.s32.totalorder %v863, 0
    %v865 = vsel %vm864, %v637, 0.0
    %v866 = vsel %vm864, %v639, 0.0
    %v867 = vsel %vm864, %v641, 0.0
    %v868 = vsel %vm864, %v643, 0.0
    %vm869 = vcmp.eq.s32.totalorder %v863, 1
    %v870 = vsel %vm869, %v646, %v865
    %v871 = vsel %vm869, %v648, %v866
    %v872 = vsel %vm869, %v650, %v867
    %v873 = vsel %vm869, %v652, %v868
    %vm874 = vcmp.eq.s32.totalorder %v863, 2
    %v875 = vsel %vm874, %v655, %v870
    %v876 = vsel %vm874, %v657, %v871
    %v877 = vsel %vm874, %v659, %v872
    %v878 = vsel %vm874, %v661, %v873
    %vm879 = vcmp.eq.s32.totalorder %v863, 3
    %v880 = vsel %vm879, %v664, %v875
    %v881 = vsel %vm879, %v666, %v876
    %v882 = vsel %vm879, %v668, %v877
    %v883 = vsel %vm879, %v670, %v878
    %vm884 = vcmp.eq.s32.totalorder %v863, 4
    %v885 = vsel %vm884, %v673, %v880
    %v886 = vsel %vm884, %v675, %v881
    %v887 = vsel %vm884, %v677, %v882
    %v888 = vsel %vm884, %v679, %v883
    %vm889 = vcmp.eq.s32.totalorder %v863, 5
    %v890 = vsel %vm889, %v682, %v885
    %v891 = vsel %vm889, %v684, %v886
    %v892 = vsel %vm889, %v686, %v887
    %v893 = vsel %vm889, %v688, %v888
    %vm894 = vcmp.eq.s32.totalorder %v863, 6
    %v895 = vsel %vm894, %v691, %v890
    %v896 = vsel %vm894, %v693, %v891
    %v897 = vsel %vm894, %v695, %v892
    %v898 = vsel %vm894, %v697, %v893
    %vm899 = vcmp.eq.s32.totalorder %v863, 7
    %v900 = vsel %vm899, %v700, %v895
    %v901 = vsel %vm899, %v702, %v896
    %v902 = vsel %vm899, %v704, %v897
    %v903 = vsel %vm899, %v706, %v898
    %vm904 = vcmp.eq.s32.totalorder %v863, 8
    %v905 = vsel %vm904, %v709, %v900
    %v906 = vsel %vm904, %v711, %v901
    %v907 = vsel %vm904, %v713, %v902
    %v908 = vsel %vm904, %v715, %v903
    %vm909 = vcmp.eq.s32.totalorder %v863, 9
    %v910 = vsel %vm909, %v718, %v905
    %v911 = vsel %vm909, %v720, %v906
    %v912 = vsel %vm909, %v722, %v907
    %v913 = vsel %vm909, %v724, %v908
    %vm914 = vcmp.eq.s32.totalorder %v863, 10
    %v915 = vsel %vm914, %v727, %v910
    %v916 = vsel %vm914, %v729, %v911
    %v917 = vsel %vm914, %v731, %v912
    %v918 = vsel %vm914, %v733, %v913
    %vm919 = vcmp.eq.s32.totalorder %v863, 11
    %v920 = vsel %vm919, %v736, %v915
    %v921 = vsel %vm919, %v738, %v916
    %v922 = vsel %vm919, %v740, %v917
    %v923 = vsel %vm919, %v742, %v918
    %vm924 = vcmp.eq.s32.totalorder %v863, 12
    %v925 = vsel %vm924, %v745, %v920
    %v926 = vsel %vm924, %v747, %v921
    %v927 = vsel %vm924, %v749, %v922
    %v928 = vsel %vm924, %v751, %v923
    %vm929 = vcmp.eq.s32.totalorder %v863, 13
    %v930 = vsel %vm929, %v754, %v925
    %v931 = vsel %vm929, %v756, %v926
    %v932 = vsel %vm929, %v758, %v927
    %v933 = vsel %vm929, %v760, %v928
    %vm934 = vcmp.eq.s32.totalorder %v863, 14
    %v935 = vsel %vm934, %v763, %v930
    %v936 = vsel %vm934, %v765, %v931
    %v937 = vsel %vm934, %v767, %v932
    %v938 = vsel %vm934, %v769, %v933
    %vm939 = vcmp.eq.s32.totalorder %v863, 15
    %v940 = vsel %vm939, %v772, %v935
    %v941 = vsel %vm939, %v774, %v936
    %v942 = vsel %vm939, %v776, %v937
    %v943 = vsel %vm939, %v778, %v938
    %s944 = scalar_lea.vmem [#allocation9], 24
    %v945 = vld [vmem:[%s944] sm:$0xff]
    %vm946 = vcmp.eq.s32.totalorder %v945, 0
    %v947 = vsel %vm946, %v637, 0.0
    %v948 = vsel %vm946, %v639, 0.0
    %v949 = vsel %vm946, %v641, 0.0
    %v950 = vsel %vm946, %v643, 0.0
    %vm951 = vcmp.eq.s32.totalorder %v945, 1
    %v952 = vsel %vm951, %v646, %v947
    %v953 = vsel %vm951, %v648, %v948
    %v954 = vsel %vm951, %v650, %v949
    %v955 = vsel %vm951, %v652, %v950
    %vm956 = vcmp.eq.s32.totalorder %v945, 2
    %v957 = vsel %vm956, %v655, %v952
    %v958 = vsel %vm956, %v657, %v953
    %v959 = vsel %vm956, %v659, %v954
    %v960 = vsel %vm956, %v661, %v955
    %vm961 = vcmp.eq.s32.totalorder %v945, 3
    %v962 = vsel %vm961, %v664, %v957
    %v963 = vsel %vm961, %v666, %v958
    %v964 = vsel %vm961, %v668, %v959
    %v965 = vsel %vm961, %v670, %v960
    %vm966 = vcmp.eq.s32.totalorder %v945, 4
    %v967 = vsel %vm966, %v673, %v962
    %v968 = vsel %vm966, %v675, %v963
    %v969 = vsel %vm966, %v677, %v964
    %v970 = vsel %vm966, %v679, %v965
    %vm971 = vcmp.eq.s32.totalorder %v945, 5
    %v972 = vsel %vm971, %v682, %v967
    %v973 = vsel %vm971, %v684, %v968
    %v974 = vsel %vm971, %v686, %v969
    %v975 = vsel %vm971, %v688, %v970
    %vm976 = vcmp.eq.s32.totalorder %v945, 6
    %v977 = vsel %vm976, %v691, %v972
    %v978 = vsel %vm976, %v693, %v973
    %v979 = vsel %vm976, %v695, %v974
    %v980 = vsel %vm976, %v697, %v975
    %vm981 = vcmp.eq.s32.totalorder %v945, 7
    %v982 = vsel %vm981, %v700, %v977
    %v983 = vsel %vm981, %v702, %v978
    %v984 = vsel %vm981, %v704, %v979
    %v985 = vsel %vm981, %v706, %v980
    %vm986 = vcmp.eq.s32.totalorder %v945, 8
    %v987 = vsel %vm986, %v709, %v982
    %v988 = vsel %vm986, %v711, %v983
    %v989 = vsel %vm986, %v713, %v984
    %v990 = vsel %vm986, %v715, %v985
    %vm991 = vcmp.eq.s32.totalorder %v945, 9
    %v992 = vsel %vm991, %v718, %v987
    %v993 = vsel %vm991, %v720, %v988
    %v994 = vsel %vm991, %v722, %v989
    %v995 = vsel %vm991, %v724, %v990
    %vm996 = vcmp.eq.s32.totalorder %v945, 10
    %v997 = vsel %vm996, %v727, %v992
    %v998 = vsel %vm996, %v729, %v993
    %v999 = vsel %vm996, %v731, %v994
    %v1000 = vsel %vm996, %v733, %v995
    %vm1001 = vcmp.eq.s32.totalorder %v945, 11
    %v1002 = vsel %vm1001, %v736, %v997
    %v1003 = vsel %vm1001, %v738, %v998
    %v1004 = vsel %vm1001, %v740, %v999
    %v1005 = vsel %vm1001, %v742, %v1000
    %vm1006 = vcmp.eq.s32.totalorder %v945, 12
    %v1007 = vsel %vm1006, %v745, %v1002
    %v1008 = vsel %vm1006, %v747, %v1003
    %v1009 = vsel %vm1006, %v749, %v1004
    %v1010 = vsel %vm1006, %v751, %v1005
    %vm1011 = vcmp.eq.s32.totalorder %v945, 13
    %v1012 = vsel %vm1011, %v754, %v1007
    %v1013 = vsel %vm1011, %v756, %v1008
    %v1014 = vsel %vm1011, %v758, %v1009
    %v1015 = vsel %vm1011, %v760, %v1010
    %vm1016 = vcmp.eq.s32.totalorder %v945, 14
    %v1017 = vsel %vm1016, %v763, %v1012
    %v1018 = vsel %vm1016, %v765, %v1013
    %v1019 = vsel %vm1016, %v767, %v1014
    %v1020 = vsel %vm1016, %v769, %v1015
    %vm1021 = vcmp.eq.s32.totalorder %v945, 15
    %v1022 = vsel %vm1021, %v772, %v1017
    %v1023 = vsel %vm1021, %v774, %v1018
    %v1024 = vsel %vm1021, %v776, %v1019
    %v1025 = vsel %vm1021, %v778, %v1020
    %v1026 = vmul.f32 %v773, %v859
    %v1027 = vmul.f32 %v775, %v858
    %v1028 = vsub.f32 %v1026, %v1027
    %v1029 = vmul.f32 %v773, %v860
    %v1030 = vmul.f32 %v777, %v858
    %v1031 = vsub.f32 %v1029, %v1030
    %v1032 = vmul.f32 %v773, %v861
    %v1033 = vmul.f32 %v779, %v858
    %v1034 = vsub.f32 %v1032, %v1033
    %v1035 = vmul.f32 %v775, %v860
    %v1036 = vmul.f32 %v777, %v859
    %v1037 = vsub.f32 %v1035, %v1036
    %v1038 = vmul.f32 %v775, %v861
    %v1039 = vmul.f32 %v779, %v859
    %v1040 = vsub.f32 %v1038, %v1039
    %v1041 = vmul.f32 %v777, %v861
    %v1042 = vmul.f32 %v779, %v860
    %v1043 = vsub.f32 %v1041, %v1042
    %v1044 = vmul.f32 %v940, %v1023
    %v1045 = vmul.f32 %v941, %v1022
    %v1046 = vsub.f32 %v1044, %v1045
    %v1047 = vmul.f32 %v940, %v1024
    %v1048 = vmul.f32 %v942, %v1022
    %v1049 = vsub.f32 %v1047, %v1048
    %v1050 = vmul.f32 %v940, %v1025
    %v1051 = vmul.f32 %v943, %v1022
    %v1052 = vsub.f32 %v1050, %v1051
    %v1053 = vmul.f32 %v941, %v1024
    %v1054 = vmul.f32 %v942, %v1023
    %v1055 = vsub.f32 %v1053, %v1054
    %v1056 = vmul.f32 %v941, %v1025
    %v1057 = vmul.f32 %v943, %v1023
    %v1058 = vsub.f32 %v1056, %v1057
    %v1059 = vmul.f32 %v942, %v1025
    %v1060 = vmul.f32 %v943, %v1024
    %v1061 = vsub.f32 %v1059, %v1060
    %v1062 = vmul.f32 %v1028, %v1061
    %v1063 = vmul.f32 %v1031, %v1058
    %v1064 = vsub.f32 %v1062, %v1063
    %v1065 = vmul.f32 %v1034, %v1055
    %v1066 = vadd.f32 %v1064, %v1065
    %v1067 = vmul.f32 %v1037, %v1052
    %v1068 = vadd.f32 %v1066, %v1067
    %v1069 = vmul.f32 %v1040, %v1049
    %v1070 = vsub.f32 %v1068, %v1069
    %v1071 = vmul.f32 %v1043, %v1046
    %v1072 = vadd.f32 %v1070, %v1071
    %v1073 = vmul.f32 %v634, %v1072
    %1074 = vst [vmem:[#allocation11] sm:$0xff] %v1073
    // Predicated region
    $region34: #{tpu_custom_call.1} parent=1 // pred_check
      _
    $region35: #{tpu_custom_call.1} parent=1 // pred_check_branch
      %1076 = sbr.rel (0) target = $region37
    $region36: #{tpu_custom_call.1} parent=1 // pred_region
      %s1078 = ssub.s32 128, 128
      %1079 = vsyncadd [#allocation4], %s1078
      %s1081 = sshll.u32 [#allocation11], 4
      %s1082 = int_to_ptr.vmem [resolvable:$true] %s1081
      %1084 = dma.vmem_to_hbm [thread:$0]  %s1082, 128, %s4, [#allocation4]
    $region37: #{tpu_custom_call.1} parent=1 // pred_fallthru
      _
    // Predicated region
    $region38: #{tpu_custom_call.1} parent=1 // pred_check
      _
    $region39: #{tpu_custom_call.1} parent=1 // pred_check_branch
      %1086 = sbr.rel (0) target = $region41
    $region40: #{tpu_custom_call.1} parent=1 // pred_region
      %1087 = dma.done [#allocation4], 128
    $region41: #{tpu_custom_call.1} parent=1 // pred_fallthru
      _
    %1088 = vsyncpa [#allocation3], 1
    %1089 = vsyncpa [#allocation10], 1
    %1090 = vsyncpa [#allocation4], 1
    %1091 = vsyncpa [#allocation5], 1
    %1092 = vsyncpa [#allocation6], 1

</llo_original>
